<compile_context>
chip_gen: v5e
topology: v5e:2x2
jax: 0.10.0
libtpu: 0.0.40
codegen_flags: <defaults>
</compile_context>

<pallas_src>
import jax
import jax.numpy as jnp
from jax.experimental import pallas as pl
from jax.experimental.pallas import tpu as pltpu

# ----- static "config" (mirrors the AttrDict cfg in the torch module) -----
WORD_DIM = 32
CHAR_DIM = 16
POS_DIM = 16
NUM_FILTERS = 32
KERNEL_SIZE = 3
NUM_WORDS = 100
NUM_CHARS = 50
NUM_POS = 12
PRIVACY_TERMS = (3, 5)          # pos ids considered "privacy terms" (use_dist=True)
OUT_LANES = 128                 # lane-dense padded output width

BS, LS, CHAR_LEN = 2, 8, 8


def _round_up(x, m):
    return ((x + m - 1) // m) * m


# --------------------------------------------------------------------------
# Fused encoder kernel.
#   inputs : pos (bs,ls) i32, word ids (n,1) i32, pos ids (n,1) i32, char ids (n*cl,1) i32,
#            word table (V_w, Dw), char table (V_c, Dc), pos table (V_p, Dp),
#            conv weight (K*Dc, F) [row k*Dc+c == torch conv_w[f, c, k]], bias (1, F)
#   output : (n, 128) f32 slab, features packed in lanes [0:81) as [dist, word, char, pos]
#   scratch: (n, lw, K*Dc) f32 im2col buffer (lw = conv output length rounded up to 8)
# --------------------------------------------------------------------------
def _encoder_kernel(pos_ref, wid_ref, pid_ref, cid_ref,
                    wtab_ref, ctab_ref, ptab_ref, wconv_ref, bconv_ref,
                    out_ref, xwin_ref):
    bs, ls = pos_ref.shape
    n = bs * ls
    nc = cid_ref.shape[0]
    char_len = nc // n
    num_words, word_dim = wtab_ref.shape
    num_chars, char_dim = ctab_ref.shape
    num_pos, pos_dim = ptab_ref.shape
    kc, nfilt = wconv_ref.shape
    ksz = kc // char_dim
    pad = ksz - 1
    l_out = char_len + pad                 # conv1d(padding=K-1) true output length
    lw = xwin_ref.shape[1]                 # l_out rounded up to a multiple of 8
    hp = jax.lax.Precision.HIGHEST

    # ---------------- privacy-distance feature ----------------------------------
    # dis[b, j] = min( min_{k: privacy(b,k)} |j-k|,  j + 1000,  1000 - j )
    pos = pos_ref[...]                                         # (bs, ls) int32
    mask = jnp.zeros(pos.shape, jnp.bool_)
    for term in PRIVACY_TERMS:                                 # static unroll
        mask = mask | (pos == term)
    jj = jax.lax.broadcasted_iota(jnp.int32, (ls, ls), 0)      # query position j
    kk = jax.lax.broadcasted_iota(jnp.int32, (ls, ls), 1)      # candidate position k
    absdiff = jnp.abs(jj - kk)                                 # (ls, ls)
    big = jnp.int32(10_000_000)
    cand = jnp.where(mask[:, None, :], absdiff[None, :, :], big)   # (bs, ls, ls)
    d = jnp.min(cand, axis=2, keepdims=True)                        # (bs, ls, 1)
    j3 = jax.lax.broadcasted_iota(jnp.int32, (bs, ls, 1), 1)
    d = jnp.minimum(d, j3 + 1000)          # forward sentinel  (last = -1000)
    d = jnp.minimum(d, 1000 - j3)          # backward sentinel (last =  1000)
    dist = d.reshape(n, 1).astype(jnp.float32)                      # (n, 1)
    # TODO(synk): if ls grows to hundreds, replace the O(ls^2) pairwise min with two
    # running-min fori_loop scans; at ls=8 the pairwise form is cheaper and simpler.

    # ---------------- word embedding (one-hot matmul on MXU) --------------------
    wid = wid_ref[...]                                              # (n, 1) int32
    w_oh = (jax.lax.broadcasted_iota(jnp.int32, (n, num_words), 1) == wid)
    word = jnp.dot(w_oh.astype(jnp.float32), wtab_ref[...],
                   precision=hp, preferred_element_type=jnp.float32)   # (n, word_dim)

    # ---------------- pos embedding ----------------------------------------------
    pid = pid_ref[...]                                              # (n, 1) int32
    p_oh = (jax.lax.broadcasted_iota(jnp.int32, (n, num_pos), 1) == pid)
    posf = jnp.dot(p_oh.astype(jnp.float32), ptab_ref[...],
                   precision=hp, preferred_element_type=jnp.float32)   # (n, pos_dim)

    # ---------------- char embedding ----------------------------------------------
    cid = cid_ref[...]                                              # (n*cl, 1) int32
    c_oh = (jax.lax.broadcasted_iota(jnp.int32, (nc, num_chars), 1) == cid)
    ce = jnp.dot(c_oh.astype(jnp.float32), ctab_ref[...],
                 precision=hp, preferred_element_type=jnp.float32)     # (n*cl, char_dim)
    ce = ce.reshape(n, char_len, char_dim)                             # (n, cl, C)

    # ---------------- char conv1d(padding=K-1) + maxpool + tanh -------------------
    # Build the im2col matrix in a zero-initialized VMEM scratch: the conv halo is
    # realized by the write offset of each tap (no jnp.pad, no extra HBM traffic).
    # xwin[nn, t, k*C + c] = x_padded[nn, t + k, c]
    xwin_ref[...] = jnp.zeros(xwin_ref.shape, jnp.float32)
    for k in range(ksz):                                               # static unroll (3 taps)
        t0 = pad - k
        xwin_ref[:, t0:t0 + char_len, k * char_dim:(k + 1) * char_dim] = ce
    xwin = xwin_ref[...].reshape(n * lw, kc)                           # (n*lw, K*C)
    conv = jnp.dot(xwin, wconv_ref[...],
                   precision=hp, preferred_element_type=jnp.float32)   # (n*lw, F)
    conv = conv.reshape(n, lw, nfilt)
    t_iota = jax.lax.broadcasted_iota(jnp.int32, (n, lw, nfilt), 1)
    conv = jnp.where(t_iota < l_out, conv, -1e30)    # mask the pad-only extra windows
    # bias is constant over t, so adding it after the max is exact
    charf = jnp.tanh(jnp.max(conv, axis=1) + bconv_ref[...])           # (n, F)

    # ---------------- assemble lane-dense output ----------------------------------
    out_ref[...] = jnp.zeros(out_ref.shape, jnp.float32)
    c0 = 1
    c1 = c0 + word_dim
    c2 = c1 + nfilt
    c3 = c2 + pos_dim
    out_ref[:, 0:c0] = dist
    out_ref[:, c0:c1] = word
    out_ref[:, c1:c2] = charf
    out_ref[:, c2:c3] = posf


# --------------------------------------------------------------------------
# Wrapper: one pallas_call, then a cheap slice/reshape to the torch output shape.
# --------------------------------------------------------------------------
def inp_with_dist_encoder(params, input_word, input_char, input_pos):
    bs, ls = input_word.shape
    char_len = input_char.shape[2]
    n = bs * ls
    nc = n * char_len
    feat = 1 + WORD_DIM + NUM_FILTERS + POS_DIM

    # token-major id columns for the in-kernel one-hot lookups (trivial host-side reshapes)
    wid = input_word.reshape(n, 1).astype(jnp.int32)
    pid = input_pos.reshape(n, 1).astype(jnp.int32)
    cid = input_char.reshape(nc, 1).astype(jnp.int32)

    l_out = char_len + KERNEL_SIZE - 1        # conv1d(padding=K-1) output length
    lw = _round_up(l_out, 8)                  # sublane-aligned window count

    def full2d(shape):
        return pl.BlockSpec(shape, lambda i: (0, 0))

    out = pl.pallas_call(
        _encoder_kernel,
        out_shape=jax.ShapeDtypeStruct((n, OUT_LANES), jnp.float32),
        grid=(1,),
        in_specs=[
            full2d((bs, ls)),
            full2d((n, 1)),
            full2d((n, 1)),
            full2d((nc, 1)),
            full2d(params["word_embedd"].shape),
            full2d(params["char_embedd"].shape),
            full2d(params["pos_embedd"].shape),
            full2d(params["conv_w2"].shape),
            full2d(params["conv_b2"].shape),
        ],
        out_specs=full2d((n, OUT_LANES)),
        scratch_shapes=[pltpu.VMEM((n, lw, KERNEL_SIZE * CHAR_DIM), jnp.float32)],
        compiler_params=pltpu.CompilerParams(dimension_semantics=("arbitrary",)),
    )(input_pos.astype(jnp.int32), wid, pid, cid,
      params["word_embedd"], params["char_embedd"], params["pos_embedd"],
      params["conv_w2"], params["conv_b2"])

    # same concat order as the torch module: [dist, word, char, pos]
    return out[:, :feat].reshape(bs, ls, feat)


def init_params(key):
    ks = jax.random.split(key, 5)
    # torch nn.Conv1d weight layout: (out_channels, in_channels, kernel_size)
    conv_w = 0.1 * jax.random.normal(ks[3], (NUM_FILTERS, CHAR_DIM, KERNEL_SIZE), jnp.float32)
    conv_b = 0.1 * jax.random.normal(ks[4], (NUM_FILTERS,), jnp.float32)
    return {
        "word_embedd": 0.1 * jax.random.normal(ks[0], (NUM_WORDS, WORD_DIM), jnp.float32),
        "char_embedd": 0.1 * jax.random.normal(ks[1], (NUM_CHARS, CHAR_DIM), jnp.float32),
        "pos_embedd":  0.1 * jax.random.normal(ks[2], (NUM_POS, POS_DIM), jnp.float32),
        # hoisted layouts: (F,C,K) -> im2col rows ordered k*C+c, and (1,F) bias
        "conv_w2": jnp.transpose(conv_w, (2, 1, 0)).reshape(KERNEL_SIZE * CHAR_DIM, NUM_FILTERS),
        "conv_b2": conv_b[None, :],
    }


# --------------------------------------------------------------------------
# Plain-JAX reference (mirrors the torch module) for a numerical self-check.
# --------------------------------------------------------------------------
def _reference_forward(params, input_word, input_char, input_pos):
    bs, ls = input_word.shape
    cl = input_char.shape[2]
    n = bs * ls
    pad = KERNEL_SIZE - 1

    mask = jnp.zeros(input_pos.shape, jnp.bool_)
    for term in PRIVACY_TERMS:
        mask = mask | (input_pos == term)
    idx = jnp.arange(ls)
    absdiff = jnp.abs(idx[:, None] - idx[None, :])
    cand = jnp.where(mask[:, None, :], absdiff[None, :, :], 10_000_000)
    d = cand.min(axis=2)
    d = jnp.minimum(d, idx[None, :] + 1000)
    d = jnp.minimum(d, 1000 - idx[None, :])
    dist = d.astype(jnp.float32)[..., None]                      # (bs, ls, 1)

    word = params["word_embedd"][input_word]                     # (bs, ls, word_dim)
    pos = params["pos_embedd"][input_pos]                        # (bs, ls, pos_dim)

    ce = params["char_embedd"][input_char].reshape(n, cl, CHAR_DIM)
    xp = jnp.pad(ce, ((0, 0), (pad, pad), (0, 0)))
    l_out = cl + pad
    wins = jnp.stack([xp[:, t:t + KERNEL_SIZE, :].reshape(n, -1)
                      for t in range(l_out)], axis=1)            # (n, l_out, K*C)
    conv = jnp.einsum("ntd,df->ntf", wins, params["conv_w2"],
                      precision=jax.lax.Precision.HIGHEST)
    charf = jnp.tanh(conv.max(axis=1) + params["conv_b2"]).reshape(bs, ls, NUM_FILTERS)

    return jnp.concatenate([dist, word, charf, pos], axis=2)


if __name__ == "__main__":
    key = jax.random.PRNGKey(0)
    kp, kw, kc_, ks = jax.random.split(key, 4)
    params = init_params(kp)

    input_word = jax.random.randint(kw, (BS, LS), 0, NUM_WORDS, dtype=jnp.int32)
    input_char = jax.random.randint(kc_, (BS, LS, CHAR_LEN), 0, NUM_CHARS, dtype=jnp.int32)
    input_pos = jax.random.randint(ks, (BS, LS), 0, NUM_POS, dtype=jnp.int32)

    out = inp_with_dist_encoder(params, input_word, input_char, input_pos)
    out = jax.block_until_ready(out)

    expected_dim = 1 + WORD_DIM + NUM_FILTERS + POS_DIM
    assert out.shape == (BS, LS, expected_dim), out.shape
    assert out.dtype == jnp.float32

    ref = _reference_forward(params, input_word, input_char, input_pos)
    max_err = float(jnp.max(jnp.abs(out - ref)))
    assert max_err < 2e-3, f"max abs error vs reference: {max_err}"

    print("KERNEL_OK")
</pallas_src>

<mosaic_0001>
module attributes {stable_mosaic.version = 11 : i64} {
  func.func @_encoder_kernel(%arg0: i32, %arg1: memref<2x8xi32, #tpu.memory_space<vmem>>, %arg2: memref<16x1xi32, #tpu.memory_space<vmem>>, %arg3: memref<16x1xi32, #tpu.memory_space<vmem>>, %arg4: memref<128x1xi32, #tpu.memory_space<vmem>>, %arg5: memref<100x32xf32, #tpu.memory_space<vmem>>, %arg6: memref<50x16xf32, #tpu.memory_space<vmem>>, %arg7: memref<12x16xf32, #tpu.memory_space<vmem>>, %arg8: memref<48x32xf32, #tpu.memory_space<vmem>>, %arg9: memref<1x32xf32, #tpu.memory_space<vmem>>, %arg10: memref<16x128xf32, #tpu.memory_space<vmem>>, %arg11: memref<16x16x48xf32, #tpu.memory_space<vmem>>) attributes {dimension_semantics = [#tpu.dimension_semantics<arbitrary>], iteration_bounds = array<i64: 1>, scalar_prefetch = 0 : i64, scratch_operands = 1 : i64, tpu.core_type = #tpu.core_type<tc>, window_params = [{pipeline_mode = #tpu.pipeline_mode<synchronous>, transform_indices = @transform_0, window_bounds = array<i64: 2, 8>}, {pipeline_mode = #tpu.pipeline_mode<synchronous>, transform_indices = @transform_1, window_bounds = array<i64: 16, 1>}, {pipeline_mode = #tpu.pipeline_mode<synchronous>, transform_indices = @transform_2, window_bounds = array<i64: 16, 1>}, {pipeline_mode = #tpu.pipeline_mode<synchronous>, transform_indices = @transform_3, window_bounds = array<i64: 128, 1>}, {pipeline_mode = #tpu.pipeline_mode<synchronous>, transform_indices = @transform_4, window_bounds = array<i64: 100, 32>}, {pipeline_mode = #tpu.pipeline_mode<synchronous>, transform_indices = @transform_5, window_bounds = array<i64: 50, 16>}, {pipeline_mode = #tpu.pipeline_mode<synchronous>, transform_indices = @transform_6, window_bounds = array<i64: 12, 16>}, {pipeline_mode = #tpu.pipeline_mode<synchronous>, transform_indices = @transform_7, window_bounds = array<i64: 48, 32>}, {pipeline_mode = #tpu.pipeline_mode<synchronous>, transform_indices = @transform_8, window_bounds = array<i64: 1, 32>}, {pipeline_mode = #tpu.pipeline_mode<synchronous>, transform_indices = @transform_9, window_bounds = array<i64: 16, 128>}]} {
    %c0 = arith.constant 0 : index
    %c0_0 = arith.constant 0 : index
    %0 = vector.load %arg1[%c0, %c0_0] : memref<2x8xi32, #tpu.memory_space<vmem>>, vector<2x8xi32>
    %false = arith.constant false
    %1 = vector.broadcast %false : i1 to vector<2x8xi1>
    %c3_i32 = arith.constant 3 : i32
    %2 = vector.broadcast %c3_i32 : i32 to vector<2x8xi32>
    %3 = arith.cmpi eq, %0, %2 : vector<2x8xi32>
    %4 = arith.ori %1, %3 : vector<2x8xi1>
    %c5_i32 = arith.constant 5 : i32
    %5 = vector.broadcast %c5_i32 : i32 to vector<2x8xi32>
    %6 = arith.cmpi eq, %0, %5 : vector<2x8xi32>
    %7 = arith.ori %4, %6 : vector<2x8xi1>
    %8 = tpu.iota {dimensions = array<i32: 0>} : vector<8x8xi32>
    %9 = tpu.iota {dimensions = array<i32: 1>} : vector<8x8xi32>
    %10 = arith.subi %8, %9 : vector<8x8xi32>
    %11 = math.absi %10 : vector<8x8xi32>
    %12 = vector.shape_cast %7 : vector<2x8xi1> to vector<2x1x8xi1>
    %13 = vector.shape_cast %11 : vector<8x8xi32> to vector<1x8x8xi32>
    %c10000000_i32 = arith.constant 10000000 : i32
    %14 = vector.shape_cast %12 : vector<2x1x8xi1> to vector<2x1x8xi1>
    %15 = vector.broadcast %14 : vector<2x1x8xi1> to vector<2x8x8xi1>
    %16 = vector.shape_cast %13 : vector<1x8x8xi32> to vector<1x8x8xi32>
    %17 = vector.broadcast %16 : vector<1x8x8xi32> to vector<2x8x8xi32>
    %18 = vector.broadcast %c10000000_i32 : i32 to vector<2x8x8xi32>
    %19 = arith.select %15, %17, %18 : vector<2x8x8xi1>, vector<2x8x8xi32>
    %cst = arith.constant dense<2147483647> : vector<2x8xi32>
    %20 = vector.multi_reduction <minsi>, %19, %cst [2] : vector<2x8x8xi32> to vector<2x8xi32>
    %21 = vector.shape_cast %20 : vector<2x8xi32> to vector<2x8x1xi32>
    %22 = tpu.iota {dimensions = array<i32: 1>} : vector<2x8x1xi32>
    %c1000_i32 = arith.constant 1000 : i32
    %23 = vector.broadcast %c1000_i32 : i32 to vector<2x8x1xi32>
    %24 = arith.addi %22, %23 : vector<2x8x1xi32>
    %25 = arith.minsi %21, %24 : vector<2x8x1xi32>
    %c1000_i32_1 = arith.constant 1000 : i32
    %26 = vector.broadcast %c1000_i32_1 : i32 to vector<2x8x1xi32>
    %27 = arith.subi %26, %22 : vector<2x8x1xi32>
    %28 = arith.minsi %25, %27 : vector<2x8x1xi32>
    %29 = vector.shape_cast %28 : vector<2x8x1xi32> to vector<16x1xi32>
    %30 = arith.sitofp %29 : vector<16x1xi32> to vector<16x1xf32>
    %c0_2 = arith.constant 0 : index
    %c0_3 = arith.constant 0 : index
    %31 = vector.load %arg2[%c0_2, %c0_3] : memref<16x1xi32, #tpu.memory_space<vmem>>, vector<16x1xi32>
    %32 = tpu.iota {dimensions = array<i32: 1>} : vector<16x100xi32>
    %33 = vector.broadcast %31 : vector<16x1xi32> to vector<16x100xi32>
    %34 = arith.cmpi eq, %32, %33 : vector<16x100xi32>
    %35 = arith.extui %34 : vector<16x100xi1> to vector<16x100xi32>
    %36 = arith.sitofp %35 : vector<16x100xi32> to vector<16x100xf32>
    %c0_4 = arith.constant 0 : index
    %c0_5 = arith.constant 0 : index
    %37 = vector.load %arg5[%c0_4, %c0_5] : memref<100x32xf32, #tpu.memory_space<vmem>>, vector<100x32xf32>
    %cst_6 = arith.constant dense<0.000000e+00> : vector<16x32xf32>
    %38 = tpu.matmul %36, %37, %cst_6 {dimension_numbers = #tpu.dot_dimension_numbers<[1], [0], [0], [1], [0, 0, 1, 1], [], []>, precision = #tpu.contract_precision<fp32>} : vector<16x100xf32>, vector<100x32xf32>, vector<16x32xf32> -> vector<16x32xf32>
    %c0_7 = arith.constant 0 : index
    %c0_8 = arith.constant 0 : index
    %39 = vector.load %arg3[%c0_7, %c0_8] : memref<16x1xi32, #tpu.memory_space<vmem>>, vector<16x1xi32>
    %40 = tpu.iota {dimensions = array<i32: 1>} : vector<16x12xi32>
    %41 = vector.broadcast %39 : vector<16x1xi32> to vector<16x12xi32>
    %42 = arith.cmpi eq, %40, %41 : vector<16x12xi32>
    %43 = arith.extui %42 : vector<16x12xi1> to vector<16x12xi32>
    %44 = arith.sitofp %43 : vector<16x12xi32> to vector<16x12xf32>
    %c0_9 = arith.constant 0 : index
    %c0_10 = arith.constant 0 : index
    %45 = vector.load %arg7[%c0_9, %c0_10] : memref<12x16xf32, #tpu.memory_space<vmem>>, vector<12x16xf32>
    %cst_11 = arith.constant dense<0.000000e+00> : vector<16x16xf32>
    %46 = tpu.matmul %44, %45, %cst_11 {dimension_numbers = #tpu.dot_dimension_numbers<[1], [0], [0], [1], [0, 0, 1, 1], [], []>, precision = #tpu.contract_precision<fp32>} : vector<16x12xf32>, vector<12x16xf32>, vector<16x16xf32> -> vector<16x16xf32>
    %c0_12 = arith.constant 0 : index
    %c0_13 = arith.constant 0 : index
    %47 = vector.load %arg4[%c0_12, %c0_13] : memref<128x1xi32, #tpu.memory_space<vmem>>, vector<128x1xi32>
    %48 = tpu.iota {dimensions = array<i32: 1>} : vector<128x50xi32>
    %49 = vector.broadcast %47 : vector<128x1xi32> to vector<128x50xi32>
    %50 = arith.cmpi eq, %48, %49 : vector<128x50xi32>
    %51 = arith.extui %50 : vector<128x50xi1> to vector<128x50xi32>
    %52 = arith.sitofp %51 : vector<128x50xi32> to vector<128x50xf32>
    %c0_14 = arith.constant 0 : index
    %c0_15 = arith.constant 0 : index
    %53 = vector.load %arg6[%c0_14, %c0_15] : memref<50x16xf32, #tpu.memory_space<vmem>>, vector<50x16xf32>
    %cst_16 = arith.constant dense<0.000000e+00> : vector<128x16xf32>
    %54 = tpu.matmul %52, %53, %cst_16 {dimension_numbers = #tpu.dot_dimension_numbers<[1], [0], [0], [1], [0, 0, 1, 1], [], []>, precision = #tpu.contract_precision<fp32>} : vector<128x50xf32>, vector<50x16xf32>, vector<128x16xf32> -> vector<128x16xf32>
    %55 = vector.shape_cast %54 : vector<128x16xf32> to vector<16x8x16xf32>
    %cst_17 = arith.constant 0.000000e+00 : f32
    %56 = vector.broadcast %cst_17 : f32 to vector<16x16x48xf32>
    %c0_18 = arith.constant 0 : index
    %c0_19 = arith.constant 0 : index
    %c0_20 = arith.constant 0 : index
    %57 = vector.load %arg11[%c0_18, %c0_19, %c0_20] : memref<16x16x48xf32, #tpu.memory_space<vmem>>, vector<16x16x48xf32>
    tpu.vector_store %arg11[%c0_18, %c0_19, %c0_20], %56 {strides = array<i32>} : memref<16x16x48xf32, #tpu.memory_space<vmem>>, vector<16x16x48xf32>,
    %c0_21 = arith.constant 0 : index
    %c2 = arith.constant 2 : index
    %c0_22 = arith.constant 0 : index
    %58 = vector.load %arg11[%c0_21, %c2, %c0_22] : memref<16x16x48xf32, #tpu.memory_space<vmem>>, vector<16x8x16xf32>
    tpu.vector_store %arg11[%c0_21, %c2, %c0_22], %55 {strides = array<i32>} : memref<16x16x48xf32, #tpu.memory_space<vmem>>, vector<16x8x16xf32>,
    %c0_23 = arith.constant 0 : index
    %c1 = arith.constant 1 : index
    %c16 = arith.constant 16 : index
    %59 = vector.load %arg11[%c0_23, %c1, %c16] : memref<16x16x48xf32, #tpu.memory_space<vmem>>, vector<16x8x16xf32>
    tpu.vector_store %arg11[%c0_23, %c1, %c16], %55 {strides = array<i32>} : memref<16x16x48xf32, #tpu.memory_space<vmem>>, vector<16x8x16xf32>,
    %c0_24 = arith.constant 0 : index
    %c0_25 = arith.constant 0 : index
    %c32 = arith.constant 32 : index
    %60 = vector.load %arg11[%c0_24, %c0_25, %c32] : memref<16x16x48xf32, #tpu.memory_space<vmem>>, vector<16x8x16xf32>
    tpu.vector_store %arg11[%c0_24, %c0_25, %c32], %55 {strides = array<i32>} : memref<16x16x48xf32, #tpu.memory_space<vmem>>, vector<16x8x16xf32>,
    %c0_26 = arith.constant 0 : index
    %c0_27 = arith.constant 0 : index
    %c0_28 = arith.constant 0 : index
    %61 = vector.load %arg11[%c0_26, %c0_27, %c0_28] : memref<16x16x48xf32, #tpu.memory_space<vmem>>, vector<16x16x48xf32>
    %62 = vector.shape_cast %61 : vector<16x16x48xf32> to vector<256x48xf32>
    %c0_29 = arith.constant 0 : index
    %c0_30 = arith.constant 0 : index
    %63 = vector.load %arg8[%c0_29, %c0_30] : memref<48x32xf32, #tpu.memory_space<vmem>>, vector<48x32xf32>
    %cst_31 = arith.constant dense<0.000000e+00> : vector<256x32xf32>
    %64 = tpu.matmul %62, %63, %cst_31 {dimension_numbers = #tpu.dot_dimension_numbers<[1], [0], [0], [1], [0, 0, 1, 1], [], []>, precision = #tpu.contract_precision<fp32>} : vector<256x48xf32>, vector<48x32xf32>, vector<256x32xf32> -> vector<256x32xf32>
    %65 = vector.shape_cast %64 : vector<256x32xf32> to vector<16x16x32xf32>
    %66 = tpu.iota {dimensions = array<i32: 1>} : vector<16x16x32xi32>
    %c10_i32 = arith.constant 10 : i32
    %67 = vector.broadcast %c10_i32 : i32 to vector<16x16x32xi32>
    %68 = arith.cmpi slt, %66, %67 : vector<16x16x32xi32>
    %cst_32 = arith.constant -1.000000e+30 : f32
    %69 = vector.broadcast %cst_32 : f32 to vector<16x16x32xf32>
    %70 = arith.select %68, %65, %69 : vector<16x16x32xi1>, vector<16x16x32xf32>
    %cst_33 = arith.constant dense<0xFF800000> : vector<16x32xf32>
    %71 = vector.multi_reduction <maximumf>, %70, %cst_33 [1] : vector<16x16x32xf32> to vector<16x32xf32>
    %c0_34 = arith.constant 0 : index
    %c0_35 = arith.constant 0 : index
    %72 = vector.load %arg9[%c0_34, %c0_35] : memref<1x32xf32, #tpu.memory_space<vmem>>, vector<1x32xf32>
    %73 = vector.broadcast %72 : vector<1x32xf32> to vector<16x32xf32>
    %74 = arith.addf %71, %73 : vector<16x32xf32>
    %75 = math.tanh %74 : vector<16x32xf32>
    %cst_36 = arith.constant 0.000000e+00 : f32
    %76 = vector.broadcast %cst_36 : f32 to vector<16x128xf32>
    %c0_37 = arith.constant 0 : index
    %c0_38 = arith.constant 0 : index
    %77 = vector.load %arg10[%c0_37, %c0_38] : memref<16x128xf32, #tpu.memory_space<vmem>>, vector<16x128xf32>
    tpu.vector_store %arg10[%c0_37, %c0_38], %76 {strides = array<i32>} : memref<16x128xf32, #tpu.memory_space<vmem>>, vector<16x128xf32>,
    %c0_39 = arith.constant 0 : index
    %c0_40 = arith.constant 0 : index
    %78 = vector.load %arg10[%c0_39, %c0_40] : memref<16x128xf32, #tpu.memory_space<vmem>>, vector<16x1xf32>
    tpu.vector_store %arg10[%c0_39, %c0_40], %30 {strides = array<i32>} : memref<16x128xf32, #tpu.memory_space<vmem>>, vector<16x1xf32>,
    %c0_41 = arith.constant 0 : index
    %c1_42 = arith.constant 1 : index
    %79 = vector.load %arg10[%c0_41, %c1_42] : memref<16x128xf32, #tpu.memory_space<vmem>>, vector<16x32xf32>
    tpu.vector_store %arg10[%c0_41, %c1_42], %38 {strides = array<i32>} : memref<16x128xf32, #tpu.memory_space<vmem>>, vector<16x32xf32>,
    %c0_43 = arith.constant 0 : index
    %c33 = arith.constant 33 : index
    %80 = vector.load %arg10[%c0_43, %c33] : memref<16x128xf32, #tpu.memory_space<vmem>>, vector<16x32xf32>
    tpu.vector_store %arg10[%c0_43, %c33], %75 {strides = array<i32>} : memref<16x128xf32, #tpu.memory_space<vmem>>, vector<16x32xf32>,
    %c0_44 = arith.constant 0 : index
    %c65 = arith.constant 65 : index
    %81 = vector.load %arg10[%c0_44, %c65] : memref<16x128xf32, #tpu.memory_space<vmem>>, vector<16x16xf32>
    tpu.vector_store %arg10[%c0_44, %c65], %46 {strides = array<i32>} : memref<16x128xf32, #tpu.memory_space<vmem>>, vector<16x16xf32>,
    return
  }
  func.func @transform_0(%arg0: i32) -> (i32, i32) {
    %c0_i32 = arith.constant 0 : i32
    %c0_i32_0 = arith.constant 0 : i32
    %c0_i32_1 = arith.constant 0 : i32
    return %c0_i32, %c0_i32_0 : i32, i32
  }
  func.func @transform_1(%arg0: i32) -> (i32, i32) {
    %c0_i32 = arith.constant 0 : i32
    %c0_i32_0 = arith.constant 0 : i32
    %c0_i32_1 = arith.constant 0 : i32
    return %c0_i32, %c0_i32_0 : i32, i32
  }
  func.func @transform_2(%arg0: i32) -> (i32, i32) {
    %c0_i32 = arith.constant 0 : i32
    %c0_i32_0 = arith.constant 0 : i32
    %c0_i32_1 = arith.constant 0 : i32
    return %c0_i32, %c0_i32_0 : i32, i32
  }
  func.func @transform_3(%arg0: i32) -> (i32, i32) {
    %c0_i32 = arith.constant 0 : i32
    %c0_i32_0 = arith.constant 0 : i32
    %c0_i32_1 = arith.constant 0 : i32
    return %c0_i32, %c0_i32_0 : i32, i32
  }
  func.func @transform_4(%arg0: i32) -> (i32, i32) {
    %c0_i32 = arith.constant 0 : i32
    %c0_i32_0 = arith.constant 0 : i32
    %c0_i32_1 = arith.constant 0 : i32
    return %c0_i32, %c0_i32_0 : i32, i32
  }
  func.func @transform_5(%arg0: i32) -> (i32, i32) {
    %c0_i32 = arith.constant 0 : i32
    %c0_i32_0 = arith.constant 0 : i32
    %c0_i32_1 = arith.constant 0 : i32
    return %c0_i32, %c0_i32_0 : i32, i32
  }
  func.func @transform_6(%arg0: i32) -> (i32, i32) {
    %c0_i32 = arith.constant 0 : i32
    %c0_i32_0 = arith.constant 0 : i32
    %c0_i32_1 = arith.constant 0 : i32
    return %c0_i32, %c0_i32_0 : i32, i32
  }
  func.func @transform_7(%arg0: i32) -> (i32, i32) {
    %c0_i32 = arith.constant 0 : i32
    %c0_i32_0 = arith.constant 0 : i32
    %c0_i32_1 = arith.constant 0 : i32
    return %c0_i32, %c0_i32_0 : i32, i32
  }
  func.func @transform_8(%arg0: i32) -> (i32, i32) {
    %c0_i32 = arith.constant 0 : i32
    %c0_i32_0 = arith.constant 0 : i32
    %c0_i32_1 = arith.constant 0 : i32
    return %c0_i32, %c0_i32_0 : i32, i32
  }
  func.func @transform_9(%arg0: i32) -> (i32, i32) {
    %c0_i32 = arith.constant 0 : i32
    %c0_i32_0 = arith.constant 0 : i32
    %c0_i32_1 = arith.constant 0 : i32
    return %c0_i32, %c0_i32_0 : i32, i32
  }
}

</mosaic_0001>

<llo_original>
// kernel: tpu_custom_call.1
$region0: #{tpu_custom_call.1}
  #allocation0 [shape = 'u32[]', space=smem, size = 0x4, offset = 0x4, fixed_abs, tag = 'smem constant byte address 0x4 - core index']
  #allocation1 [shape = 'u32[72,128]{1,0:T(1,128)}', space=vmem, size = 0x9000, scoped, tag = 'internal scratch']
  #allocation2 [shape = 'f32[16,16,48]{2,1,0:T(8,128)}', space=vmem, size = 0x20000, scoped, tag = 'scratch operand']
  %s0 = inlined_call_operand.vmem [shape: s32[2,8], index: 0, kind: input, shape index: {}]
  %s1 = inlined_call_operand.vmem [shape: s32[16,1], index: 1, kind: input, shape index: {}]
  %s2 = inlined_call_operand.vmem [shape: s32[16,1], index: 2, kind: input, shape index: {}]
  %s3 = inlined_call_operand.vmem [shape: s32[128,1], index: 3, kind: input, shape index: {}]
  %s4 = inlined_call_operand.vmem [shape: f32[100,32], index: 4, kind: input, shape index: {}]
  %s5 = inlined_call_operand.vmem [shape: f32[50,16], index: 5, kind: input, shape index: {}]
  %s6 = inlined_call_operand.vmem [shape: f32[12,16], index: 6, kind: input, shape index: {}]
  %s7 = inlined_call_operand.vmem [shape: f32[48,32], index: 7, kind: input, shape index: {}]
  %s8 = inlined_call_operand.vmem [shape: f32[1,32], index: 8, kind: input, shape index: {}]
  %s9 = inlined_call_operand.hbm [shape: f32[16,128], index: 9, kind: output, shape index: {}]
  %s10 = sld [smem:[#allocation0]]
  $region46: #{tpu_custom_call.1} parent=0
    _
  %s12 = ssub.s32 1, %s10
  %s13 = scalar_select 0, %s12, %s10
  $region1: #{tpu_custom_call.1} parent=0
    #allocation3 [shape = 'u8[8192]{0}', space=vmem, size = 0x2000, scoped, tag = 'output window, operand 0, single buffered']
    #allocation4 [shape = 's32[1]{0}', space=sflag, size = 0x4, scoped, tag = 'scoped memory for tpu_custom_call.1']
    %14 = vsyncpa [#allocation4], 0
    // Predicated region
    $region2: #{tpu_custom_call.1} parent=1 // pred_check
      _
    $region3: #{tpu_custom_call.1} parent=1 // pred_check_branch
      %16 = sbr.rel (0) target = $region5
    $region4: #{tpu_custom_call.1} parent=1 // pred_region
      _
    $region5: #{tpu_custom_call.1} parent=1 // pred_fallthru
      _
    // Predicated region
    $region6: #{tpu_custom_call.1} parent=1 // pred_check
      _
    $region7: #{tpu_custom_call.1} parent=1 // pred_check_branch
      %18 = sbr.rel (0) target = $region9
    $region8: #{tpu_custom_call.1} parent=1 // pred_region
      _
    $region9: #{tpu_custom_call.1} parent=1 // pred_fallthru
      _
    // Predicated region
    $region10: #{tpu_custom_call.1} parent=1 // pred_check
      _
    $region11: #{tpu_custom_call.1} parent=1 // pred_check_branch
      %20 = sbr.rel (0) target = $region13
    $region12: #{tpu_custom_call.1} parent=1 // pred_region
      _
    $region13: #{tpu_custom_call.1} parent=1 // pred_fallthru
      _
    // Predicated region
    $region14: #{tpu_custom_call.1} parent=1 // pred_check
      _
    $region15: #{tpu_custom_call.1} parent=1 // pred_check_branch
      %22 = sbr.rel (0) target = $region17
    $region16: #{tpu_custom_call.1} parent=1 // pred_region
      _
    $region17: #{tpu_custom_call.1} parent=1 // pred_fallthru
      _
    // Predicated region
    $region18: #{tpu_custom_call.1} parent=1 // pred_check
      _
    $region19: #{tpu_custom_call.1} parent=1 // pred_check_branch
      %24 = sbr.rel (0) target = $region21
    $region20: #{tpu_custom_call.1} parent=1 // pred_region
      _
    $region21: #{tpu_custom_call.1} parent=1 // pred_fallthru
      _
    // Predicated region
    $region22: #{tpu_custom_call.1} parent=1 // pred_check
      _
    $region23: #{tpu_custom_call.1} parent=1 // pred_check_branch
      %26 = sbr.rel (0) target = $region25
    $region24: #{tpu_custom_call.1} parent=1 // pred_region
      _
    $region25: #{tpu_custom_call.1} parent=1 // pred_fallthru
      _
    // Predicated region
    $region26: #{tpu_custom_call.1} parent=1 // pred_check
      _
    $region27: #{tpu_custom_call.1} parent=1 // pred_check_branch
      %28 = sbr.rel (0) target = $region29
    $region28: #{tpu_custom_call.1} parent=1 // pred_region
      _
    $region29: #{tpu_custom_call.1} parent=1 // pred_fallthru
      _
    // Predicated region
    $region30: #{tpu_custom_call.1} parent=1 // pred_check
      _
    $region31: #{tpu_custom_call.1} parent=1 // pred_check_branch
      %30 = sbr.rel (0) target = $region33
    $region32: #{tpu_custom_call.1} parent=1 // pred_region
      _
    $region33: #{tpu_custom_call.1} parent=1 // pred_fallthru
      _
    // Predicated region
    $region34: #{tpu_custom_call.1} parent=1 // pred_check
      _
    $region35: #{tpu_custom_call.1} parent=1 // pred_check_branch
      %32 = sbr.rel (0) target = $region37
    $region36: #{tpu_custom_call.1} parent=1 // pred_region
      _
    $region37: #{tpu_custom_call.1} parent=1 // pred_fallthru
      _
    %v33 = vld [vmem:[%s0] sm:$0x3]
    %vm34 = vcmp.eq.s32.totalorder %v33, 3
    %vm35 = vcmp.eq.s32.totalorder %v33, 5
    %vm36 = vmor %vm34, %vm35
    %v37 = vlaneseq
    %v38 = vshrl.u32 %v37, 7
    %v39 = vlaneseq
    %v40 = vand.u32 %v39, 127
    %v41 = vsub.s32 %v38, %v40
    %vm42 = vcmp.lt.s32.totalorder %v41, 0
    %v43 = vsub.s32 0, %v41
    %v44 = vsel %vm42, %v43, %v41
    %v45 = vsel %vm36, 1, 0
    %v46 = vrot.slane %v45, 1
    %vm47 = vcmp.ne.s32.totalorder %v46, 0
    %v48 = vsel %vm47, 1, 0
    %v49 = vperm.slane %v45, 0
    %v50 = vperm.slane %v48, 0
    %vm51 = vcmp.eq.s32.totalorder %v49, 1
    %vm52 = vcmp.eq.s32.totalorder %v50, 1
    %v53 = vsel %vm51, %v44, 10000000
    %v54 = vsel %vm52, %v44, 10000000
    %vm55 = vcmask 64512
    %v56 = vsel %vm55, %v53, 2147483647
    %v57 = vand.u32 %v56, 65535
    %v58 = vshra.s32 %v56, 16
    %v59 = vcvt.s32.f32 %v57
    %v60 = vcvt.s32.f32 %v58
    %61 = vmin.xlane.f32.xlu0 %v60
    %v62 = vpop.xlane.xlu0 %61
    %vm63 = vcmp.eq.f32.partialorder %v60, %v62
    %v64 = vsel %vm63, %v59, inf
    %65 = vmin.xlane.f32.xlu0 %v64
    %v66 = vpop.xlane.xlu0 %65
    %v67 = vcvt.f32.s32 %v66
    %v68 = vcvt.f32.s32 %v62
    %v69 = vshll.u32 %v68, 16
    %v70 = vadd.s32 %v69, %v67
    %v71 = vsel %vm55, %v54, 2147483647
    %v72 = vand.u32 %v71, 65535
    %v73 = vshra.s32 %v71, 16
    %v74 = vcvt.s32.f32 %v72
    %v75 = vcvt.s32.f32 %v73
    %76 = vmin.xlane.f32.xlu0 %v75
    %v77 = vpop.xlane.xlu0 %76
    %vm78 = vcmp.eq.f32.partialorder %v75, %v77
    %v79 = vsel %vm78, %v74, inf
    %80 = vmin.xlane.f32.xlu0 %v79
    %v81 = vpop.xlane.xlu0 %80
    %v82 = vcvt.f32.s32 %v81
    %v83 = vcvt.f32.s32 %v77
    %v84 = vshll.u32 %v83, 16
    %v85 = vadd.s32 %v84, %v82
    %v86 = vadd.s32 %v38, 1000
    %vm87 = vcmp.lt.s32.totalorder %v70, %v86
    %v88 = vsel %vm87, %v70, %v86
    %vm89 = vcmp.lt.s32.totalorder %v85, %v86
    %v90 = vsel %vm89, %v85, %v86
    %v91 = vsub.s32 1000, %v38
    %vm92 = vcmp.lt.s32.totalorder %v88, %v91
    %v93 = vsel %vm92, %v88, %v91
    %vm94 = vcmp.lt.s32.totalorder %v90, %v91
    %v95 = vsel %vm94, %v90, %v91
    %v96 = vcvt.s32.f32 %v93
    %v97 = vcvt.s32.f32 %v95
    %v98 = vld [vmem:[%s1] sm:$0xff]
    %v99 = vld [vmem:[%s1 + $0x8] sm:$0xff]
    %100 = vset.pattern.permute.xlu0 0
    %101 = vperm.xlu0 %100, %v98
    %v102 = vpop.permute.xlu0 %101
    %103 = vset.pattern.permute.xlu0 0
    %104 = vperm.xlu0 %103, %v99
    %v105 = vpop.permute.xlu0 %104
    %vm106 = vcmp.eq.s32.totalorder %v40, %v102
    %vm107 = vcmp.eq.s32.totalorder %v40, %v105
    %v108 = vsel %vm106, 1, 0
    %v109 = vsel %vm107, 1, 0
    %v110 = vcvt.s32.f32 %v108
    %v111 = vcvt.s32.f32 %v109
    %v112 = vld [vmem:[%s4] sm:$0xff]
    %v113 = vld [vmem:[%s4 + $0x8] sm:$0xff]
    %v114 = vld [vmem:[%s4 + $0x10] sm:$0xff]
    %v115 = vld [vmem:[%s4 + $0x18] sm:$0xff]
    %v116 = vld [vmem:[%s4 + $0x20] sm:$0xff]
    %v117 = vld [vmem:[%s4 + $0x28] sm:$0xff]
    %v118 = vld [vmem:[%s4 + $0x30] sm:$0xff]
    %v119 = vld [vmem:[%s4 + $0x38] sm:$0xff]
    %v120 = vld [vmem:[%s4 + $0x40] sm:$0xff]
    %v121 = vld [vmem:[%s4 + $0x48] sm:$0xff]
    %v122 = vld [vmem:[%s4 + $0x50] sm:$0xff]
    %v123 = vld [vmem:[%s4 + $0x58] sm:$0xff]
    %v124 = vld [vmem:[%s4 + $0x60] sm:$0xf]
    %vm125 = vcmask 818176
    %v127 = vsel %vm125, %v110, 0
    %v130 = vsel %vm125, %v111, 0
    %vm132 = vcmask 1043456
    %v134 = vsel %vm132, %v124, 0
    %136 = vmatpush.msra.mxu0 0.0
    %137 = vmatpush.msra.mxu0 0.0
    %138 = vmatpush.msra.mxu0 0.0
    %v139 = vand.u32 %v134, 4294901760
    %140 = vmatpush.msra.mxu0 %v139
    %v141 = vand.u32 %v123, 4294901760
    %142 = vmatpush.msra.mxu0 %v141
    %v143 = vand.u32 %v122, 4294901760
    %144 = vmatpush.msra.mxu0 %v143
    %v145 = vand.u32 %v121, 4294901760
    %146 = vmatpush.msra.mxu0 %v145
    %v147 = vand.u32 %v120, 4294901760
    %148 = vmatpush.msra.mxu0 %v147
    %v149 = vand.u32 %v119, 4294901760
    %150 = vmatpush.msra.mxu0 %v149
    %v151 = vand.u32 %v118, 4294901760
    %152 = vmatpush.msra.mxu0 %v151
    %v153 = vand.u32 %v117, 4294901760
    %154 = vmatpush.msra.mxu0 %v153
    %v155 = vand.u32 %v116, 4294901760
    %156 = vmatpush.msra.mxu0 %v155
    %v157 = vand.u32 %v115, 4294901760
    %158 = vmatpush.msra.mxu0 %v157
    %v159 = vand.u32 %v114, 4294901760
    %160 = vmatpush.msra.mxu0 %v159
    %v161 = vand.u32 %v113, 4294901760
    %162 = vmatpush.msra.mxu0 %v161
    %v163 = vand.u32 %v112, 4294901760
    %164 = vmatpush.msra.mxu0 %v163
    %v165 = vand.u32 %v127, 4294901760
    %v166 = vsub.f32 %v127, %v165
    %v167 = vand.u32 %v166, 4294901760
    %v168 = vsub.f32 %v166, %v167
    %v169 = vand.u32 %v168, 4294901760
    %170 = vmatmul.f32.gmra.mxu0 %v169
    %v171 = vpop.f32.mrf.mxu0
    %v172 = vadd.f32 0.0, %v171
    %v173 = vand.u32 %v130, 4294901760
    %v174 = vsub.f32 %v130, %v173
    %v175 = vand.u32 %v174, 4294901760
    %v176 = vsub.f32 %v174, %v175
    %v177 = vand.u32 %v176, 4294901760
    %178 = vmatmul.f32.gmra.mxu0 %v177
    %v179 = vpop.f32.mrf.mxu0
    %v180 = vadd.f32 0.0, %v179
    %181 = vdwg.mxu0
    %182 = vmatpush.msra.mxu0 0.0
    %183 = vmatpush.msra.mxu0 0.0
    %184 = vmatpush.msra.mxu0 0.0
    %v185 = vand.u32 %v134, 4294901760
    %v186 = vsub.f32 %v134, %v185
    %v187 = vand.u32 %v186, 4294901760
    %v188 = vsub.f32 %v186, %v187
    %v189 = vand.u32 %v188, 4294901760
    %190 = vmatpush.msra.mxu0 %v189
    %v191 = vand.u32 %v123, 4294901760
    %v192 = vsub.f32 %v123, %v191
    %v193 = vand.u32 %v192, 4294901760
    %v194 = vsub.f32 %v192, %v193
    %v195 = vand.u32 %v194, 4294901760
    %196 = vmatpush.msra.mxu0 %v195
    %v197 = vand.u32 %v122, 4294901760
    %v198 = vsub.f32 %v122, %v197
    %v199 = vand.u32 %v198, 4294901760
    %v200 = vsub.f32 %v198, %v199
    %v201 = vand.u32 %v200, 4294901760
    %202 = vmatpush.msra.mxu0 %v201
    %v203 = vand.u32 %v121, 4294901760
    %v204 = vsub.f32 %v121, %v203
    %v205 = vand.u32 %v204, 4294901760
    %v206 = vsub.f32 %v204, %v205
    %v207 = vand.u32 %v206, 4294901760
    %208 = vmatpush.msra.mxu0 %v207
    %v209 = vand.u32 %v120, 4294901760
    %v210 = vsub.f32 %v120, %v209
    %v211 = vand.u32 %v210, 4294901760
    %v212 = vsub.f32 %v210, %v211
    %v213 = vand.u32 %v212, 4294901760
    %214 = vmatpush.msra.mxu0 %v213
    %v215 = vand.u32 %v119, 4294901760
    %v216 = vsub.f32 %v119, %v215
    %v217 = vand.u32 %v216, 4294901760
    %v218 = vsub.f32 %v216, %v217
    %v219 = vand.u32 %v218, 4294901760
    %220 = vmatpush.msra.mxu0 %v219
    %v221 = vand.u32 %v118, 4294901760
    %v222 = vsub.f32 %v118, %v221
    %v223 = vand.u32 %v222, 4294901760
    %v224 = vsub.f32 %v222, %v223
    %v225 = vand.u32 %v224, 4294901760
    %226 = vmatpush.msra.mxu0 %v225
    %v227 = vand.u32 %v117, 4294901760
    %v228 = vsub.f32 %v117, %v227
    %v229 = vand.u32 %v228, 4294901760
    %v230 = vsub.f32 %v228, %v229
    %v231 = vand.u32 %v230, 4294901760
    %232 = vmatpush.msra.mxu0 %v231
    %v233 = vand.u32 %v116, 4294901760
    %v234 = vsub.f32 %v116, %v233
    %v235 = vand.u32 %v234, 4294901760
    %v236 = vsub.f32 %v234, %v235
    %v237 = vand.u32 %v236, 4294901760
    %238 = vmatpush.msra.mxu0 %v237
    %v239 = vand.u32 %v115, 4294901760
    %v240 = vsub.f32 %v115, %v239
    %v241 = vand.u32 %v240, 4294901760
    %v242 = vsub.f32 %v240, %v241
    %v243 = vand.u32 %v242, 4294901760
    %244 = vmatpush.msra.mxu0 %v243
    %v245 = vand.u32 %v114, 4294901760
    %v246 = vsub.f32 %v114, %v245
    %v247 = vand.u32 %v246, 4294901760
    %v248 = vsub.f32 %v246, %v247
    %v249 = vand.u32 %v248, 4294901760
    %250 = vmatpush.msra.mxu0 %v249
    %v251 = vand.u32 %v113, 4294901760
    %v252 = vsub.f32 %v113, %v251
    %v253 = vand.u32 %v252, 4294901760
    %v254 = vsub.f32 %v252, %v253
    %v255 = vand.u32 %v254, 4294901760
    %256 = vmatpush.msra.mxu0 %v255
    %v257 = vand.u32 %v112, 4294901760
    %v258 = vsub.f32 %v112, %v257
    %v259 = vand.u32 %v258, 4294901760
    %v260 = vsub.f32 %v258, %v259
    %v261 = vand.u32 %v260, 4294901760
    %262 = vmatpush.msra.mxu0 %v261
    %v263 = vand.u32 %v127, 4294901760
    %264 = vmatmul.f32.gmra.mxu0 %v263
    %v265 = vpop.f32.mrf.mxu0
    %v266 = vadd.f32 %v172, %v265
    %v267 = vand.u32 %v130, 4294901760
    %268 = vmatmul.f32.gmra.mxu0 %v267
    %v269 = vpop.f32.mrf.mxu0
    %v270 = vadd.f32 %v180, %v269
    %271 = vdwg.mxu0
    %272 = vmatpush.msra.mxu0 0.0
    %273 = vmatpush.msra.mxu0 0.0
    %274 = vmatpush.msra.mxu0 0.0
    %v275 = vand.u32 %v134, 4294901760
    %v276 = vsub.f32 %v134, %v275
    %277 = vmatpush.msra.mxu0 %v276
    %v278 = vand.u32 %v123, 4294901760
    %v279 = vsub.f32 %v123, %v278
    %280 = vmatpush.msra.mxu0 %v279
    %v281 = vand.u32 %v122, 4294901760
    %v282 = vsub.f32 %v122, %v281
    %283 = vmatpush.msra.mxu0 %v282
    %v284 = vand.u32 %v121, 4294901760
    %v285 = vsub.f32 %v121, %v284
    %286 = vmatpush.msra.mxu0 %v285
    %v287 = vand.u32 %v120, 4294901760
    %v288 = vsub.f32 %v120, %v287
    %289 = vmatpush.msra.mxu0 %v288
    %v290 = vand.u32 %v119, 4294901760
    %v291 = vsub.f32 %v119, %v290
    %292 = vmatpush.msra.mxu0 %v291
    %v293 = vand.u32 %v118, 4294901760
    %v294 = vsub.f32 %v118, %v293
    %295 = vmatpush.msra.mxu0 %v294
    %v296 = vand.u32 %v117, 4294901760
    %v297 = vsub.f32 %v117, %v296
    %298 = vmatpush.msra.mxu0 %v297
    %v299 = vand.u32 %v116, 4294901760
    %v300 = vsub.f32 %v116, %v299
    %301 = vmatpush.msra.mxu0 %v300
    %v302 = vand.u32 %v115, 4294901760
    %v303 = vsub.f32 %v115, %v302
    %304 = vmatpush.msra.mxu0 %v303
    %v305 = vand.u32 %v114, 4294901760
    %v306 = vsub.f32 %v114, %v305
    %307 = vmatpush.msra.mxu0 %v306
    %v308 = vand.u32 %v113, 4294901760
    %v309 = vsub.f32 %v113, %v308
    %310 = vmatpush.msra.mxu0 %v309
    %v311 = vand.u32 %v112, 4294901760
    %v312 = vsub.f32 %v112, %v311
    %313 = vmatpush.msra.mxu0 %v312
    %v314 = vand.u32 %v127, 4294901760
    %v315 = vsub.f32 %v127, %v314
    %316 = vmatmul.f32.gmra.mxu0 %v315
    %v317 = vpop.f32.mrf.mxu0
    %v318 = vadd.f32 %v266, %v317
    %v319 = vand.u32 %v130, 4294901760
    %v320 = vsub.f32 %v130, %v319
    %321 = vmatmul.f32.gmra.mxu0 %v320
    %v322 = vpop.f32.mrf.mxu0
    %v323 = vadd.f32 %v270, %v322
    %324 = vdwg.mxu0
    %325 = vmatpush.msra.mxu0 0.0
    %326 = vmatpush.msra.mxu0 0.0
    %327 = vmatpush.msra.mxu0 0.0
    %v328 = vand.u32 %v134, 4294901760
    %329 = vmatpush.msra.mxu0 %v328
    %v330 = vand.u32 %v123, 4294901760
    %331 = vmatpush.msra.mxu0 %v330
    %v332 = vand.u32 %v122, 4294901760
    %333 = vmatpush.msra.mxu0 %v332
    %v334 = vand.u32 %v121, 4294901760
    %335 = vmatpush.msra.mxu0 %v334
    %v336 = vand.u32 %v120, 4294901760
    %337 = vmatpush.msra.mxu0 %v336
    %v338 = vand.u32 %v119, 4294901760
    %339 = vmatpush.msra.mxu0 %v338
    %v340 = vand.u32 %v118, 4294901760
    %341 = vmatpush.msra.mxu0 %v340
    %v342 = vand.u32 %v117, 4294901760
    %343 = vmatpush.msra.mxu0 %v342
    %v344 = vand.u32 %v116, 4294901760
    %345 = vmatpush.msra.mxu0 %v344
    %v346 = vand.u32 %v115, 4294901760
    %347 = vmatpush.msra.mxu0 %v346
    %v348 = vand.u32 %v114, 4294901760
    %349 = vmatpush.msra.mxu0 %v348
    %v350 = vand.u32 %v113, 4294901760
    %351 = vmatpush.msra.mxu0 %v350
    %v352 = vand.u32 %v112, 4294901760
    %353 = vmatpush.msra.mxu0 %v352
    %v354 = vand.u32 %v127, 4294901760
    %v355 = vsub.f32 %v127, %v354
    %v356 = vand.u32 %v355, 4294901760
    %357 = vmatmul.f32.gmra.mxu0 %v356
    %v358 = vpop.f32.mrf.mxu0
    %v359 = vadd.f32 %v318, %v358
    %v360 = vand.u32 %v130, 4294901760
    %v361 = vsub.f32 %v130, %v360
    %v362 = vand.u32 %v361, 4294901760
    %363 = vmatmul.f32.gmra.mxu0 %v362
    %v364 = vpop.f32.mrf.mxu0
    %v365 = vadd.f32 %v323, %v364
    %366 = vdwg.mxu0
    %367 = vmatpush.msra.mxu0 0.0
    %368 = vmatpush.msra.mxu0 0.0
    %369 = vmatpush.msra.mxu0 0.0
    %v370 = vand.u32 %v134, 4294901760
    %v371 = vsub.f32 %v134, %v370
    %v372 = vand.u32 %v371, 4294901760
    %373 = vmatpush.msra.mxu0 %v372
    %v374 = vand.u32 %v123, 4294901760
    %v375 = vsub.f32 %v123, %v374
    %v376 = vand.u32 %v375, 4294901760
    %377 = vmatpush.msra.mxu0 %v376
    %v378 = vand.u32 %v122, 4294901760
    %v379 = vsub.f32 %v122, %v378
    %v380 = vand.u32 %v379, 4294901760
    %381 = vmatpush.msra.mxu0 %v380
    %v382 = vand.u32 %v121, 4294901760
    %v383 = vsub.f32 %v121, %v382
    %v384 = vand.u32 %v383, 4294901760
    %385 = vmatpush.msra.mxu0 %v384
    %v386 = vand.u32 %v120, 4294901760
    %v387 = vsub.f32 %v120, %v386
    %v388 = vand.u32 %v387, 4294901760
    %389 = vmatpush.msra.mxu0 %v388
    %v390 = vand.u32 %v119, 4294901760
    %v391 = vsub.f32 %v119, %v390
    %v392 = vand.u32 %v391, 4294901760
    %393 = vmatpush.msra.mxu0 %v392
    %v394 = vand.u32 %v118, 4294901760
    %v395 = vsub.f32 %v118, %v394
    %v396 = vand.u32 %v395, 4294901760
    %397 = vmatpush.msra.mxu0 %v396
    %v398 = vand.u32 %v117, 4294901760
    %v399 = vsub.f32 %v117, %v398
    %v400 = vand.u32 %v399, 4294901760
    %401 = vmatpush.msra.mxu0 %v400
    %v402 = vand.u32 %v116, 4294901760
    %v403 = vsub.f32 %v116, %v402
    %v404 = vand.u32 %v403, 4294901760
    %405 = vmatpush.msra.mxu0 %v404
    %v406 = vand.u32 %v115, 4294901760
    %v407 = vsub.f32 %v115, %v406
    %v408 = vand.u32 %v407, 4294901760
    %409 = vmatpush.msra.mxu0 %v408
    %v410 = vand.u32 %v114, 4294901760
    %v411 = vsub.f32 %v114, %v410
    %v412 = vand.u32 %v411, 4294901760
    %413 = vmatpush.msra.mxu0 %v412
    %v414 = vand.u32 %v113, 4294901760
    %v415 = vsub.f32 %v113, %v414
    %v416 = vand.u32 %v415, 4294901760
    %417 = vmatpush.msra.mxu0 %v416
    %v418 = vand.u32 %v112, 4294901760
    %v419 = vsub.f32 %v112, %v418
    %v420 = vand.u32 %v419, 4294901760
    %421 = vmatpush.msra.mxu0 %v420
    %v422 = vand.u32 %v127, 4294901760
    %423 = vmatmul.f32.gmra.mxu0 %v422
    %v424 = vpop.f32.mrf.mxu0
    %v425 = vadd.f32 %v359, %v424
    %v426 = vand.u32 %v130, 4294901760
    %427 = vmatmul.f32.gmra.mxu0 %v426
    %v428 = vpop.f32.mrf.mxu0
    %v429 = vadd.f32 %v365, %v428
    %430 = vdwg.mxu0
    %431 = vmatpush.msra.mxu0 0.0
    %432 = vmatpush.msra.mxu0 0.0
    %433 = vmatpush.msra.mxu0 0.0
    %v434 = vand.u32 %v134, 4294901760
    %435 = vmatpush.msra.mxu0 %v434
    %v436 = vand.u32 %v123, 4294901760
    %437 = vmatpush.msra.mxu0 %v436
    %v438 = vand.u32 %v122, 4294901760
    %439 = vmatpush.msra.mxu0 %v438
    %v440 = vand.u32 %v121, 4294901760
    %441 = vmatpush.msra.mxu0 %v440
    %v442 = vand.u32 %v120, 4294901760
    %443 = vmatpush.msra.mxu0 %v442
    %v444 = vand.u32 %v119, 4294901760
    %445 = vmatpush.msra.mxu0 %v444
    %v446 = vand.u32 %v118, 4294901760
    %447 = vmatpush.msra.mxu0 %v446
    %v448 = vand.u32 %v117, 4294901760
    %449 = vmatpush.msra.mxu0 %v448
    %v450 = vand.u32 %v116, 4294901760
    %451 = vmatpush.msra.mxu0 %v450
    %v452 = vand.u32 %v115, 4294901760
    %453 = vmatpush.msra.mxu0 %v452
    %v454 = vand.u32 %v114, 4294901760
    %455 = vmatpush.msra.mxu0 %v454
    %v456 = vand.u32 %v113, 4294901760
    %457 = vmatpush.msra.mxu0 %v456
    %v458 = vand.u32 %v112, 4294901760
    %459 = vmatpush.msra.mxu0 %v458
    %v460 = vand.u32 %v127, 4294901760
    %461 = vmatmul.f32.gmra.mxu0 %v460
    %v462 = vpop.f32.mrf.mxu0
    %v463 = vadd.f32 %v425, %v462
    %v464 = vand.u32 %v130, 4294901760
    %465 = vmatmul.f32.gmra.mxu0 %v464
    %v466 = vpop.f32.mrf.mxu0
    %v467 = vadd.f32 %v429, %v466
    %468 = vdwg.mxu0
    %v469 = vld [vmem:[%s2] sm:$0xff]
    %v470 = vld [vmem:[%s2 + $0x8] sm:$0xff]
    %471 = vset.pattern.permute.xlu0 0
    %472 = vperm.xlu0 %471, %v469
    %v473 = vpop.permute.xlu0 %472
    %474 = vset.pattern.permute.xlu0 0
    %475 = vperm.xlu0 %474, %v470
    %v476 = vpop.permute.xlu0 %475
    %vm477 = vcmp.eq.s32.totalorder %v40, %v473
    %vm478 = vcmp.eq.s32.totalorder %v40, %v476
    %v479 = vsel %vm477, 1, 0
    %v480 = vsel %vm478, 1, 0
    %v481 = vcvt.s32.f32 %v479
    %v482 = vcvt.s32.f32 %v480
    %v483 = vld [vmem:[%s6] sm:$0xff]
    %v484 = vld [vmem:[%s6 + $0x8] sm:$0xf]
    %vm485 = vcmask 97280
    %v487 = vsel %vm485, %v481, 0
    %v490 = vsel %vm485, %v482, 0
    %v493 = vsel %vm132, %v484, 0
    %495 = vmatpush.msra.mxu0 0.0
    %496 = vmatpush.msra.mxu0 0.0
    %497 = vmatpush.msra.mxu0 0.0
    %498 = vmatpush.msra.mxu0 0.0
    %499 = vmatpush.msra.mxu0 0.0
    %500 = vmatpush.msra.mxu0 0.0
    %501 = vmatpush.msra.mxu0 0.0
    %502 = vmatpush.msra.mxu0 0.0
    %503 = vmatpush.msra.mxu0 0.0
    %504 = vmatpush.msra.mxu0 0.0
    %505 = vmatpush.msra.mxu0 0.0
    %506 = vmatpush.msra.mxu0 0.0
    %507 = vmatpush.msra.mxu0 0.0
    %508 = vmatpush.msra.mxu0 0.0
    %v509 = vand.u32 %v493, 4294901760
    %510 = vmatpush.msra.mxu0 %v509
    %v511 = vand.u32 %v483, 4294901760
    %512 = vmatpush.msra.mxu0 %v511
    %v513 = vand.u32 %v487, 4294901760
    %v514 = vsub.f32 %v487, %v513
    %v515 = vand.u32 %v514, 4294901760
    %v516 = vsub.f32 %v514, %v515
    %v517 = vand.u32 %v516, 4294901760
    %518 = vmatmul.f32.gmra.mxu0 %v517
    %v519 = vpop.f32.mrf.mxu0
    %v520 = vadd.f32 0.0, %v519
    %v521 = vand.u32 %v490, 4294901760
    %v522 = vsub.f32 %v490, %v521
    %v523 = vand.u32 %v522, 4294901760
    %v524 = vsub.f32 %v522, %v523
    %v525 = vand.u32 %v524, 4294901760
    %526 = vmatmul.f32.gmra.mxu0 %v525
    %v527 = vpop.f32.mrf.mxu0
    %v528 = vadd.f32 0.0, %v527
    %529 = vdwg.mxu0
    %530 = vmatpush.msra.mxu0 0.0
    %531 = vmatpush.msra.mxu0 0.0
    %532 = vmatpush.msra.mxu0 0.0
    %533 = vmatpush.msra.mxu0 0.0
    %534 = vmatpush.msra.mxu0 0.0
    %535 = vmatpush.msra.mxu0 0.0
    %536 = vmatpush.msra.mxu0 0.0
    %537 = vmatpush.msra.mxu0 0.0
    %538 = vmatpush.msra.mxu0 0.0
    %539 = vmatpush.msra.mxu0 0.0
    %540 = vmatpush.msra.mxu0 0.0
    %541 = vmatpush.msra.mxu0 0.0
    %542 = vmatpush.msra.mxu0 0.0
    %543 = vmatpush.msra.mxu0 0.0
    %v544 = vand.u32 %v493, 4294901760
    %v545 = vsub.f32 %v493, %v544
    %v546 = vand.u32 %v545, 4294901760
    %v547 = vsub.f32 %v545, %v546
    %v548 = vand.u32 %v547, 4294901760
    %549 = vmatpush.msra.mxu0 %v548
    %v550 = vand.u32 %v483, 4294901760
    %v551 = vsub.f32 %v483, %v550
    %v552 = vand.u32 %v551, 4294901760
    %v553 = vsub.f32 %v551, %v552
    %v554 = vand.u32 %v553, 4294901760
    %555 = vmatpush.msra.mxu0 %v554
    %v556 = vand.u32 %v487, 4294901760
    %557 = vmatmul.f32.gmra.mxu0 %v556
    %v558 = vpop.f32.mrf.mxu0
    %v559 = vadd.f32 %v520, %v558
    %v560 = vand.u32 %v490, 4294901760
    %561 = vmatmul.f32.gmra.mxu0 %v560
    %v562 = vpop.f32.mrf.mxu0
    %v563 = vadd.f32 %v528, %v562
    %564 = vdwg.mxu0
    %565 = vmatpush.msra.mxu0 0.0
    %566 = vmatpush.msra.mxu0 0.0
    %567 = vmatpush.msra.mxu0 0.0
    %568 = vmatpush.msra.mxu0 0.0
    %569 = vmatpush.msra.mxu0 0.0
    %570 = vmatpush.msra.mxu0 0.0
    %571 = vmatpush.msra.mxu0 0.0
    %572 = vmatpush.msra.mxu0 0.0
    %573 = vmatpush.msra.mxu0 0.0
    %574 = vmatpush.msra.mxu0 0.0
    %575 = vmatpush.msra.mxu0 0.0
    %576 = vmatpush.msra.mxu0 0.0
    %577 = vmatpush.msra.mxu0 0.0
    %578 = vmatpush.msra.mxu0 0.0
    %v579 = vand.u32 %v493, 4294901760
    %v580 = vsub.f32 %v493, %v579
    %581 = vmatpush.msra.mxu0 %v580
    %v582 = vand.u32 %v483, 4294901760
    %v583 = vsub.f32 %v483, %v582
    %584 = vmatpush.msra.mxu0 %v583
    %v585 = vand.u32 %v487, 4294901760
    %v586 = vsub.f32 %v487, %v585
    %587 = vmatmul.f32.gmra.mxu0 %v586
    %v588 = vpop.f32.mrf.mxu0
    %v589 = vadd.f32 %v559, %v588
    %v590 = vand.u32 %v490, 4294901760
    %v591 = vsub.f32 %v490, %v590
    %592 = vmatmul.f32.gmra.mxu0 %v591
    %v593 = vpop.f32.mrf.mxu0
    %v594 = vadd.f32 %v563, %v593
    %595 = vdwg.mxu0
    %596 = vmatpush.msra.mxu0 0.0
    %597 = vmatpush.msra.mxu0 0.0
    %598 = vmatpush.msra.mxu0 0.0
    %599 = vmatpush.msra.mxu0 0.0
    %600 = vmatpush.msra.mxu0 0.0
    %601 = vmatpush.msra.mxu0 0.0
    %602 = vmatpush.msra.mxu0 0.0
    %603 = vmatpush.msra.mxu0 0.0
    %604 = vmatpush.msra.mxu0 0.0
    %605 = vmatpush.msra.mxu0 0.0
    %606 = vmatpush.msra.mxu0 0.0
    %607 = vmatpush.msra.mxu0 0.0
    %608 = vmatpush.msra.mxu0 0.0
    %609 = vmatpush.msra.mxu0 0.0
    %v610 = vand.u32 %v493, 4294901760
    %611 = vmatpush.msra.mxu0 %v610
    %v612 = vand.u32 %v483, 4294901760
    %613 = vmatpush.msra.mxu0 %v612
    %v614 = vand.u32 %v487, 4294901760
    %v615 = vsub.f32 %v487, %v614
    %v616 = vand.u32 %v615, 4294901760
    %617 = vmatmul.f32.gmra.mxu0 %v616
    %v618 = vpop.f32.mrf.mxu0
    %v619 = vadd.f32 %v589, %v618
    %v620 = vand.u32 %v490, 4294901760
    %v621 = vsub.f32 %v490, %v620
    %v622 = vand.u32 %v621, 4294901760
    %623 = vmatmul.f32.gmra.mxu0 %v622
    %v624 = vpop.f32.mrf.mxu0
    %v625 = vadd.f32 %v594, %v624
    %626 = vdwg.mxu0
    %627 = vmatpush.msra.mxu0 0.0
    %628 = vmatpush.msra.mxu0 0.0
    %629 = vmatpush.msra.mxu0 0.0
    %630 = vmatpush.msra.mxu0 0.0
    %631 = vmatpush.msra.mxu0 0.0
    %632 = vmatpush.msra.mxu0 0.0
    %633 = vmatpush.msra.mxu0 0.0
    %634 = vmatpush.msra.mxu0 0.0
    %635 = vmatpush.msra.mxu0 0.0
    %636 = vmatpush.msra.mxu0 0.0
    %637 = vmatpush.msra.mxu0 0.0
    %638 = vmatpush.msra.mxu0 0.0
    %639 = vmatpush.msra.mxu0 0.0
    %640 = vmatpush.msra.mxu0 0.0
    %v641 = vand.u32 %v493, 4294901760
    %v642 = vsub.f32 %v493, %v641
    %v643 = vand.u32 %v642, 4294901760
    %644 = vmatpush.msra.mxu0 %v643
    %v645 = vand.u32 %v483, 4294901760
    %v646 = vsub.f32 %v483, %v645
    %v647 = vand.u32 %v646, 4294901760
    %648 = vmatpush.msra.mxu0 %v647
    %v649 = vand.u32 %v487, 4294901760
    %650 = vmatmul.f32.gmra.mxu0 %v649
    %v651 = vpop.f32.mrf.mxu0
    %v652 = vadd.f32 %v619, %v651
    %v653 = vand.u32 %v490, 4294901760
    %654 = vmatmul.f32.gmra.mxu0 %v653
    %v655 = vpop.f32.mrf.mxu0
    %v656 = vadd.f32 %v625, %v655
    %657 = vdwg.mxu0
    %658 = vmatpush.msra.mxu0 0.0
    %659 = vmatpush.msra.mxu0 0.0
    %660 = vmatpush.msra.mxu0 0.0
    %661 = vmatpush.msra.mxu0 0.0
    %662 = vmatpush.msra.mxu0 0.0
    %663 = vmatpush.msra.mxu0 0.0
    %664 = vmatpush.msra.mxu0 0.0
    %665 = vmatpush.msra.mxu0 0.0
    %666 = vmatpush.msra.mxu0 0.0
    %667 = vmatpush.msra.mxu0 0.0
    %668 = vmatpush.msra.mxu0 0.0
    %669 = vmatpush.msra.mxu0 0.0
    %670 = vmatpush.msra.mxu0 0.0
    %671 = vmatpush.msra.mxu0 0.0
    %v672 = vand.u32 %v493, 4294901760
    %673 = vmatpush.msra.mxu0 %v672
    %v674 = vand.u32 %v483, 4294901760
    %675 = vmatpush.msra.mxu0 %v674
    %v676 = vand.u32 %v487, 4294901760
    %677 = vmatmul.f32.gmra.mxu0 %v676
    %v678 = vpop.f32.mrf.mxu0
    %v679 = vadd.f32 %v652, %v678
    %v680 = vand.u32 %v490, 4294901760
    %681 = vmatmul.f32.gmra.mxu0 %v680
    %v682 = vpop.f32.mrf.mxu0
    %v683 = vadd.f32 %v656, %v682
    %684 = vdwg.mxu0
    %v685 = vld [vmem:[%s3] sm:$0xff]
    %v686 = vld [vmem:[%s3 + $0x8] sm:$0xff]
    %v687 = vld [vmem:[%s3 + $0x10] sm:$0xff]
    %v688 = vld [vmem:[%s3 + $0x18] sm:$0xff]
    %v689 = vld [vmem:[%s3 + $0x20] sm:$0xff]
    %v690 = vld [vmem:[%s3 + $0x28] sm:$0xff]
    %v691 = vld [vmem:[%s3 + $0x30] sm:$0xff]
    %v692 = vld [vmem:[%s3 + $0x38] sm:$0xff]
    %v693 = vld [vmem:[%s3 + $0x40] sm:$0xff]
    %v694 = vld [vmem:[%s3 + $0x48] sm:$0xff]
    %v695 = vld [vmem:[%s3 + $0x50] sm:$0xff]
    %v696 = vld [vmem:[%s3 + $0x58] sm:$0xff]
    %v697 = vld [vmem:[%s3 + $0x60] sm:$0xff]
    %v698 = vld [vmem:[%s3 + $0x68] sm:$0xff]
    %v699 = vld [vmem:[%s3 + $0x70] sm:$0xff]
    %v700 = vld [vmem:[%s3 + $0x78] sm:$0xff]
    %701 = vset.pattern.permute.xlu0 0
    %702 = vperm.xlu0 %701, %v685
    %v703 = vpop.permute.xlu0 %702
    %704 = vset.pattern.permute.xlu0 0
    %705 = vperm.xlu0 %704, %v686
    %v706 = vpop.permute.xlu0 %705
    %707 = vset.pattern.permute.xlu0 0
    %708 = vperm.xlu0 %707, %v687
    %v709 = vpop.permute.xlu0 %708
    %710 = vset.pattern.permute.xlu0 0
    %711 = vperm.xlu0 %710, %v688
    %v712 = vpop.permute.xlu0 %711
    %713 = vset.pattern.permute.xlu0 0
    %714 = vperm.xlu0 %713, %v689
    %v715 = vpop.permute.xlu0 %714
    %716 = vset.pattern.permute.xlu0 0
    %717 = vperm.xlu0 %716, %v690
    %v718 = vpop.permute.xlu0 %717
    %719 = vset.pattern.permute.xlu0 0
    %720 = vperm.xlu0 %719, %v691
    %v721 = vpop.permute.xlu0 %720
    %722 = vset.pattern.permute.xlu0 0
    %723 = vperm.xlu0 %722, %v692
    %v724 = vpop.permute.xlu0 %723
    %725 = vset.pattern.permute.xlu0 0
    %726 = vperm.xlu0 %725, %v693
    %v727 = vpop.permute.xlu0 %726
    %728 = vset.pattern.permute.xlu0 0
    %729 = vperm.xlu0 %728, %v694
    %v730 = vpop.permute.xlu0 %729
    %731 = vset.pattern.permute.xlu0 0
    %732 = vperm.xlu0 %731, %v695
    %v733 = vpop.permute.xlu0 %732
    %734 = vset.pattern.permute.xlu0 0
    %735 = vperm.xlu0 %734, %v696
    %v736 = vpop.permute.xlu0 %735
    %737 = vset.pattern.permute.xlu0 0
    %738 = vperm.xlu0 %737, %v697
    %v739 = vpop.permute.xlu0 %738
    %740 = vset.pattern.permute.xlu0 0
    %741 = vperm.xlu0 %740, %v698
    %v742 = vpop.permute.xlu0 %741
    %743 = vset.pattern.permute.xlu0 0
    %744 = vperm.xlu0 %743, %v699
    %v745 = vpop.permute.xlu0 %744
    %746 = vset.pattern.permute.xlu0 0
    %747 = vperm.xlu0 %746, %v700
    %v748 = vpop.permute.xlu0 %747
    %vm749 = vcmp.eq.s32.totalorder %v40, %v703
    %vm750 = vcmp.eq.s32.totalorder %v40, %v706
    %vm751 = vcmp.eq.s32.totalorder %v40, %v709
    %vm752 = vcmp.eq.s32.totalorder %v40, %v712
    %vm753 = vcmp.eq.s32.totalorder %v40, %v715
    %vm754 = vcmp.eq.s32.totalorder %v40, %v718
    %vm755 = vcmp.eq.s32.totalorder %v40, %v721
    %vm756 = vcmp.eq.s32.totalorder %v40, %v724
    %vm757 = vcmp.eq.s32.totalorder %v40, %v727
    %vm758 = vcmp.eq.s32.totalorder %v40, %v730
    %vm759 = vcmp.eq.s32.totalorder %v40, %v733
    %vm760 = vcmp.eq.s32.totalorder %v40, %v736
    %vm761 = vcmp.eq.s32.totalorder %v40, %v739
    %vm762 = vcmp.eq.s32.totalorder %v40, %v742
    %vm763 = vcmp.eq.s32.totalorder %v40, %v745
    %vm764 = vcmp.eq.s32.totalorder %v40, %v748
    %v765 = vsel %vm749, 1, 0
    %v766 = vsel %vm750, 1, 0
    %v767 = vsel %vm751, 1, 0
    %v768 = vsel %vm752, 1, 0
    %v769 = vsel %vm753, 1, 0
    %v770 = vsel %vm754, 1, 0
    %v771 = vsel %vm755, 1, 0
    %v772 = vsel %vm756, 1, 0
    %v773 = vsel %vm757, 1, 0
    %v774 = vsel %vm758, 1, 0
    %v775 = vsel %vm759, 1, 0
    %v776 = vsel %vm760, 1, 0
    %v777 = vsel %vm761, 1, 0
    %v778 = vsel %vm762, 1, 0
    %v779 = vsel %vm763, 1, 0
    %v780 = vsel %vm764, 1, 0
    %v781 = vcvt.s32.f32 %v765
    %v782 = vcvt.s32.f32 %v766
    %v783 = vcvt.s32.f32 %v767
    %v784 = vcvt.s32.f32 %v768
    %v785 = vcvt.s32.f32 %v769
    %v786 = vcvt.s32.f32 %v770
    %v787 = vcvt.s32.f32 %v771
    %v788 = vcvt.s32.f32 %v772
    %v789 = vcvt.s32.f32 %v773
    %v790 = vcvt.s32.f32 %v774
    %v791 = vcvt.s32.f32 %v775
    %v792 = vcvt.s32.f32 %v776
    %v793 = vcvt.s32.f32 %v777
    %v794 = vcvt.s32.f32 %v778
    %v795 = vcvt.s32.f32 %v779
    %v796 = vcvt.s32.f32 %v780
    %v797 = vld [vmem:[%s5] sm:$0xff]
    %v798 = vld [vmem:[%s5 + $0x8] sm:$0xff]
    %v799 = vld [vmem:[%s5 + $0x10] sm:$0xff]
    %v800 = vld [vmem:[%s5 + $0x18] sm:$0xff]
    %v801 = vld [vmem:[%s5 + $0x20] sm:$0xff]
    %v802 = vld [vmem:[%s5 + $0x28] sm:$0xff]
    %v803 = vld [vmem:[%s5 + $0x30] sm:$0x3]
    %vm804 = vcmask 408576
    %v806 = vsel %vm804, %v781, 0
    %v809 = vsel %vm804, %v782, 0
    %v812 = vsel %vm804, %v783, 0
    %v815 = vsel %vm804, %v784, 0
    %v818 = vsel %vm804, %v785, 0
    %v821 = vsel %vm804, %v786, 0
    %v824 = vsel %vm804, %v787, 0
    %v827 = vsel %vm804, %v788, 0
    %v830 = vsel %vm804, %v789, 0
    %v833 = vsel %vm804, %v790, 0
    %v836 = vsel %vm804, %v791, 0
    %v839 = vsel %vm804, %v792, 0
    %v842 = vsel %vm804, %v793, 0
    %v845 = vsel %vm804, %v794, 0
    %v848 = vsel %vm804, %v795, 0
    %v851 = vsel %vm804, %v796, 0
    %vm853 = vcmask 1041408
    %v855 = vsel %vm853, %v803, 0
    %857 = vmatpush.msra.mxu0 0.0
    %858 = vmatpush.msra.mxu0 0.0
    %859 = vmatpush.msra.mxu0 0.0
    %860 = vmatpush.msra.mxu0 0.0
    %861 = vmatpush.msra.mxu0 0.0
    %862 = vmatpush.msra.mxu0 0.0
    %863 = vmatpush.msra.mxu0 0.0
    %864 = vmatpush.msra.mxu0 0.0
    %865 = vmatpush.msra.mxu0 0.0
    %v866 = vand.u32 %v855, 4294901760
    %867 = vmatpush.msra.mxu0 %v866
    %v868 = vand.u32 %v802, 4294901760
    %869 = vmatpush.msra.mxu0 %v868
    %v870 = vand.u32 %v801, 4294901760
    %871 = vmatpush.msra.mxu0 %v870
    %v872 = vand.u32 %v800, 4294901760
    %873 = vmatpush.msra.mxu0 %v872
    %v874 = vand.u32 %v799, 4294901760
    %875 = vmatpush.msra.mxu0 %v874
    %v876 = vand.u32 %v798, 4294901760
    %877 = vmatpush.msra.mxu0 %v876
    %v878 = vand.u32 %v797, 4294901760
    %879 = vmatpush.msra.mxu0 %v878
    %v880 = vand.u32 %v806, 4294901760
    %v881 = vsub.f32 %v806, %v880
    %v882 = vand.u32 %v881, 4294901760
    %v883 = vsub.f32 %v881, %v882
    %v884 = vand.u32 %v883, 4294901760
    %885 = vmatmul.f32.gmra.mxu0 %v884
    %v886 = vpop.f32.mrf.mxu0
    %v887 = vadd.f32 0.0, %v886
    %v888 = vand.u32 %v809, 4294901760
    %v889 = vsub.f32 %v809, %v888
    %v890 = vand.u32 %v889, 4294901760
    %v891 = vsub.f32 %v889, %v890
    %v892 = vand.u32 %v891, 4294901760
    %893 = vmatmul.f32.gmra.mxu0 %v892
    %v894 = vpop.f32.mrf.mxu0
    %v895 = vadd.f32 0.0, %v894
    %v896 = vand.u32 %v812, 4294901760
    %v897 = vsub.f32 %v812, %v896
    %v898 = vand.u32 %v897, 4294901760
    %v899 = vsub.f32 %v897, %v898
    %v900 = vand.u32 %v899, 4294901760
    %901 = vmatmul.f32.gmra.mxu0 %v900
    %v902 = vpop.f32.mrf.mxu0
    %v903 = vadd.f32 0.0, %v902
    %v904 = vand.u32 %v815, 4294901760
    %v905 = vsub.f32 %v815, %v904
    %v906 = vand.u32 %v905, 4294901760
    %v907 = vsub.f32 %v905, %v906
    %v908 = vand.u32 %v907, 4294901760
    %909 = vmatmul.f32.gmra.mxu0 %v908
    %v910 = vpop.f32.mrf.mxu0
    %v911 = vadd.f32 0.0, %v910
    %v912 = vand.u32 %v818, 4294901760
    %v913 = vsub.f32 %v818, %v912
    %v914 = vand.u32 %v913, 4294901760
    %v915 = vsub.f32 %v913, %v914
    %v916 = vand.u32 %v915, 4294901760
    %917 = vmatmul.f32.gmra.mxu0 %v916
    %v918 = vpop.f32.mrf.mxu0
    %v919 = vadd.f32 0.0, %v918
    %v920 = vand.u32 %v821, 4294901760
    %v921 = vsub.f32 %v821, %v920
    %v922 = vand.u32 %v921, 4294901760
    %v923 = vsub.f32 %v921, %v922
    %v924 = vand.u32 %v923, 4294901760
    %925 = vmatmul.f32.gmra.mxu0 %v924
    %v926 = vpop.f32.mrf.mxu0
    %v927 = vadd.f32 0.0, %v926
    %v928 = vand.u32 %v824, 4294901760
    %v929 = vsub.f32 %v824, %v928
    %v930 = vand.u32 %v929, 4294901760
    %v931 = vsub.f32 %v929, %v930
    %v932 = vand.u32 %v931, 4294901760
    %933 = vmatmul.f32.gmra.mxu0 %v932
    %v934 = vpop.f32.mrf.mxu0
    %v935 = vadd.f32 0.0, %v934
    %v936 = vand.u32 %v827, 4294901760
    %v937 = vsub.f32 %v827, %v936
    %v938 = vand.u32 %v937, 4294901760
    %v939 = vsub.f32 %v937, %v938
    %v940 = vand.u32 %v939, 4294901760
    %941 = vmatmul.f32.gmra.mxu0 %v940
    %v942 = vpop.f32.mrf.mxu0
    %v943 = vadd.f32 0.0, %v942
    %v944 = vand.u32 %v830, 4294901760
    %v945 = vsub.f32 %v830, %v944
    %v946 = vand.u32 %v945, 4294901760
    %v947 = vsub.f32 %v945, %v946
    %v948 = vand.u32 %v947, 4294901760
    %949 = vmatmul.f32.gmra.mxu0 %v948
    %v950 = vpop.f32.mrf.mxu0
    %v951 = vadd.f32 0.0, %v950
    %v952 = vand.u32 %v833, 4294901760
    %v953 = vsub.f32 %v833, %v952
    %v954 = vand.u32 %v953, 4294901760
    %v955 = vsub.f32 %v953, %v954
    %v956 = vand.u32 %v955, 4294901760
    %957 = vmatmul.f32.gmra.mxu0 %v956
    %v958 = vpop.f32.mrf.mxu0
    %v959 = vadd.f32 0.0, %v958
    %v960 = vand.u32 %v836, 4294901760
    %v961 = vsub.f32 %v836, %v960
    %v962 = vand.u32 %v961, 4294901760
    %v963 = vsub.f32 %v961, %v962
    %v964 = vand.u32 %v963, 4294901760
    %965 = vmatmul.f32.gmra.mxu0 %v964
    %v966 = vpop.f32.mrf.mxu0
    %v967 = vadd.f32 0.0, %v966
    %v968 = vand.u32 %v839, 4294901760
    %v969 = vsub.f32 %v839, %v968
    %v970 = vand.u32 %v969, 4294901760
    %v971 = vsub.f32 %v969, %v970
    %v972 = vand.u32 %v971, 4294901760
    %973 = vmatmul.f32.gmra.mxu0 %v972
    %v974 = vpop.f32.mrf.mxu0
    %v975 = vadd.f32 0.0, %v974
    %v976 = vand.u32 %v842, 4294901760
    %v977 = vsub.f32 %v842, %v976
    %v978 = vand.u32 %v977, 4294901760
    %v979 = vsub.f32 %v977, %v978
    %v980 = vand.u32 %v979, 4294901760
    %981 = vmatmul.f32.gmra.mxu0 %v980
    %v982 = vpop.f32.mrf.mxu0
    %v983 = vadd.f32 0.0, %v982
    %v984 = vand.u32 %v845, 4294901760
    %v985 = vsub.f32 %v845, %v984
    %v986 = vand.u32 %v985, 4294901760
    %v987 = vsub.f32 %v985, %v986
    %v988 = vand.u32 %v987, 4294901760
    %989 = vmatmul.f32.gmra.mxu0 %v988
    %v990 = vpop.f32.mrf.mxu0
    %v991 = vadd.f32 0.0, %v990
    %v992 = vand.u32 %v848, 4294901760
    %v993 = vsub.f32 %v848, %v992
    %v994 = vand.u32 %v993, 4294901760
    %v995 = vsub.f32 %v993, %v994
    %v996 = vand.u32 %v995, 4294901760
    %997 = vmatmul.f32.gmra.mxu0 %v996
    %v998 = vpop.f32.mrf.mxu0
    %v999 = vadd.f32 0.0, %v998
    %v1000 = vand.u32 %v851, 4294901760
    %v1001 = vsub.f32 %v851, %v1000
    %v1002 = vand.u32 %v1001, 4294901760
    %v1003 = vsub.f32 %v1001, %v1002
    %v1004 = vand.u32 %v1003, 4294901760
    %1005 = vmatmul.f32.gmra.mxu0 %v1004
    %v1006 = vpop.f32.mrf.mxu0
    %v1007 = vadd.f32 0.0, %v1006
    %1008 = vdwg.mxu0
    %1009 = vmatpush.msra.mxu0 0.0
    %1010 = vmatpush.msra.mxu0 0.0
    %1011 = vmatpush.msra.mxu0 0.0
    %1012 = vmatpush.msra.mxu0 0.0
    %1013 = vmatpush.msra.mxu0 0.0
    %1014 = vmatpush.msra.mxu0 0.0
    %1015 = vmatpush.msra.mxu0 0.0
    %1016 = vmatpush.msra.mxu0 0.0
    %1017 = vmatpush.msra.mxu0 0.0
    %v1018 = vand.u32 %v855, 4294901760
    %v1019 = vsub.f32 %v855, %v1018
    %v1020 = vand.u32 %v1019, 4294901760
    %v1021 = vsub.f32 %v1019, %v1020
    %v1022 = vand.u32 %v1021, 4294901760
    %1023 = vmatpush.msra.mxu0 %v1022
    %v1024 = vand.u32 %v802, 4294901760
    %v1025 = vsub.f32 %v802, %v1024
    %v1026 = vand.u32 %v1025, 4294901760
    %v1027 = vsub.f32 %v1025, %v1026
    %v1028 = vand.u32 %v1027, 4294901760
    %1029 = vmatpush.msra.mxu0 %v1028
    %v1030 = vand.u32 %v801, 4294901760
    %v1031 = vsub.f32 %v801, %v1030
    %v1032 = vand.u32 %v1031, 4294901760
    %v1033 = vsub.f32 %v1031, %v1032
    %v1034 = vand.u32 %v1033, 4294901760
    %1035 = vmatpush.msra.mxu0 %v1034
    %v1036 = vand.u32 %v800, 4294901760
    %v1037 = vsub.f32 %v800, %v1036
    %v1038 = vand.u32 %v1037, 4294901760
    %v1039 = vsub.f32 %v1037, %v1038
    %v1040 = vand.u32 %v1039, 4294901760
    %1041 = vmatpush.msra.mxu0 %v1040
    %v1042 = vand.u32 %v799, 4294901760
    %v1043 = vsub.f32 %v799, %v1042
    %v1044 = vand.u32 %v1043, 4294901760
    %v1045 = vsub.f32 %v1043, %v1044
    %v1046 = vand.u32 %v1045, 4294901760
    %1047 = vmatpush.msra.mxu0 %v1046
    %v1048 = vand.u32 %v798, 4294901760
    %v1049 = vsub.f32 %v798, %v1048
    %v1050 = vand.u32 %v1049, 4294901760
    %v1051 = vsub.f32 %v1049, %v1050
    %v1052 = vand.u32 %v1051, 4294901760
    %1053 = vmatpush.msra.mxu0 %v1052
    %v1054 = vand.u32 %v797, 4294901760
    %v1055 = vsub.f32 %v797, %v1054
    %v1056 = vand.u32 %v1055, 4294901760
    %v1057 = vsub.f32 %v1055, %v1056
    %v1058 = vand.u32 %v1057, 4294901760
    %1059 = vmatpush.msra.mxu0 %v1058
    %v1060 = vand.u32 %v806, 4294901760
    %1061 = vmatmul.f32.gmra.mxu0 %v1060
    %v1062 = vpop.f32.mrf.mxu0
    %v1063 = vadd.f32 %v887, %v1062
    %v1064 = vand.u32 %v809, 4294901760
    %1065 = vmatmul.f32.gmra.mxu0 %v1064
    %v1066 = vpop.f32.mrf.mxu0
    %v1067 = vadd.f32 %v895, %v1066
    %v1068 = vand.u32 %v812, 4294901760
    %1069 = vmatmul.f32.gmra.mxu0 %v1068
    %v1070 = vpop.f32.mrf.mxu0
    %v1071 = vadd.f32 %v903, %v1070
    %v1072 = vand.u32 %v815, 4294901760
    %1073 = vmatmul.f32.gmra.mxu0 %v1072
    %v1074 = vpop.f32.mrf.mxu0
    %v1075 = vadd.f32 %v911, %v1074
    %v1076 = vand.u32 %v818, 4294901760
    %1077 = vmatmul.f32.gmra.mxu0 %v1076
    %v1078 = vpop.f32.mrf.mxu0
    %v1079 = vadd.f32 %v919, %v1078
    %v1080 = vand.u32 %v821, 4294901760
    %1081 = vmatmul.f32.gmra.mxu0 %v1080
    %v1082 = vpop.f32.mrf.mxu0
    %v1083 = vadd.f32 %v927, %v1082
    %v1084 = vand.u32 %v824, 4294901760
    %1085 = vmatmul.f32.gmra.mxu0 %v1084
    %v1086 = vpop.f32.mrf.mxu0
    %v1087 = vadd.f32 %v935, %v1086
    %v1088 = vand.u32 %v827, 4294901760
    %1089 = vmatmul.f32.gmra.mxu0 %v1088
    %v1090 = vpop.f32.mrf.mxu0
    %v1091 = vadd.f32 %v943, %v1090
    %v1092 = vand.u32 %v830, 4294901760
    %1093 = vmatmul.f32.gmra.mxu0 %v1092
    %v1094 = vpop.f32.mrf.mxu0
    %v1095 = vadd.f32 %v951, %v1094
    %v1096 = vand.u32 %v833, 4294901760
    %1097 = vmatmul.f32.gmra.mxu0 %v1096
    %v1098 = vpop.f32.mrf.mxu0
    %v1099 = vadd.f32 %v959, %v1098
    %v1100 = vand.u32 %v836, 4294901760
    %1101 = vmatmul.f32.gmra.mxu0 %v1100
    %v1102 = vpop.f32.mrf.mxu0
    %v1103 = vadd.f32 %v967, %v1102
    %v1104 = vand.u32 %v839, 4294901760
    %1105 = vmatmul.f32.gmra.mxu0 %v1104
    %v1106 = vpop.f32.mrf.mxu0
    %v1107 = vadd.f32 %v975, %v1106
    %v1108 = vand.u32 %v842, 4294901760
    %1109 = vmatmul.f32.gmra.mxu0 %v1108
    %v1110 = vpop.f32.mrf.mxu0
    %v1111 = vadd.f32 %v983, %v1110
    %v1112 = vand.u32 %v845, 4294901760
    %1113 = vmatmul.f32.gmra.mxu0 %v1112
    %v1114 = vpop.f32.mrf.mxu0
    %v1115 = vadd.f32 %v991, %v1114
    %v1116 = vand.u32 %v848, 4294901760
    %1117 = vmatmul.f32.gmra.mxu0 %v1116
    %v1118 = vpop.f32.mrf.mxu0
    %v1119 = vadd.f32 %v999, %v1118
    %v1120 = vand.u32 %v851, 4294901760
    %1121 = vmatmul.f32.gmra.mxu0 %v1120
    %v1122 = vpop.f32.mrf.mxu0
    %v1123 = vadd.f32 %v1007, %v1122
    %1124 = vdwg.mxu0
    %1125 = vmatpush.msra.mxu0 0.0
    %1126 = vmatpush.msra.mxu0 0.0
    %1127 = vmatpush.msra.mxu0 0.0
    %1128 = vmatpush.msra.mxu0 0.0
    %1129 = vmatpush.msra.mxu0 0.0
    %1130 = vmatpush.msra.mxu0 0.0
    %1131 = vmatpush.msra.mxu0 0.0
    %1132 = vmatpush.msra.mxu0 0.0
    %1133 = vmatpush.msra.mxu0 0.0
    %v1134 = vand.u32 %v855, 4294901760
    %v1135 = vsub.f32 %v855, %v1134
    %1136 = vmatpush.msra.mxu0 %v1135
    %v1137 = vand.u32 %v802, 4294901760
    %v1138 = vsub.f32 %v802, %v1137
    %1139 = vmatpush.msra.mxu0 %v1138
    %v1140 = vand.u32 %v801, 4294901760
    %v1141 = vsub.f32 %v801, %v1140
    %1142 = vmatpush.msra.mxu0 %v1141
    %v1143 = vand.u32 %v800, 4294901760
    %v1144 = vsub.f32 %v800, %v1143
    %1145 = vmatpush.msra.mxu0 %v1144
    %v1146 = vand.u32 %v799, 4294901760
    %v1147 = vsub.f32 %v799, %v1146
    %1148 = vmatpush.msra.mxu0 %v1147
    %v1149 = vand.u32 %v798, 4294901760
    %v1150 = vsub.f32 %v798, %v1149
    %1151 = vmatpush.msra.mxu0 %v1150
    %v1152 = vand.u32 %v797, 4294901760
    %v1153 = vsub.f32 %v797, %v1152
    %1154 = vmatpush.msra.mxu0 %v1153
    %v1155 = vand.u32 %v806, 4294901760
    %v1156 = vsub.f32 %v806, %v1155
    %1157 = vmatmul.f32.gmra.mxu0 %v1156
    %v1158 = vpop.f32.mrf.mxu0
    %v1159 = vadd.f32 %v1063, %v1158
    %v1160 = vand.u32 %v809, 4294901760
    %v1161 = vsub.f32 %v809, %v1160
    %1162 = vmatmul.f32.gmra.mxu0 %v1161
    %v1163 = vpop.f32.mrf.mxu0
    %v1164 = vadd.f32 %v1067, %v1163
    %v1165 = vand.u32 %v812, 4294901760
    %v1166 = vsub.f32 %v812, %v1165
    %1167 = vmatmul.f32.gmra.mxu0 %v1166
    %v1168 = vpop.f32.mrf.mxu0
    %v1169 = vadd.f32 %v1071, %v1168
    %v1170 = vand.u32 %v815, 4294901760
    %v1171 = vsub.f32 %v815, %v1170
    %1172 = vmatmul.f32.gmra.mxu0 %v1171
    %v1173 = vpop.f32.mrf.mxu0
    %v1174 = vadd.f32 %v1075, %v1173
    %v1175 = vand.u32 %v818, 4294901760
    %v1176 = vsub.f32 %v818, %v1175
    %1177 = vmatmul.f32.gmra.mxu0 %v1176
    %v1178 = vpop.f32.mrf.mxu0
    %v1179 = vadd.f32 %v1079, %v1178
    %v1180 = vand.u32 %v821, 4294901760
    %v1181 = vsub.f32 %v821, %v1180
    %1182 = vmatmul.f32.gmra.mxu0 %v1181
    %v1183 = vpop.f32.mrf.mxu0
    %v1184 = vadd.f32 %v1083, %v1183
    %v1185 = vand.u32 %v824, 4294901760
    %v1186 = vsub.f32 %v824, %v1185
    %1187 = vmatmul.f32.gmra.mxu0 %v1186
    %v1188 = vpop.f32.mrf.mxu0
    %v1189 = vadd.f32 %v1087, %v1188
    %v1190 = vand.u32 %v827, 4294901760
    %v1191 = vsub.f32 %v827, %v1190
    %1192 = vmatmul.f32.gmra.mxu0 %v1191
    %v1193 = vpop.f32.mrf.mxu0
    %v1194 = vadd.f32 %v1091, %v1193
    %v1195 = vand.u32 %v830, 4294901760
    %v1196 = vsub.f32 %v830, %v1195
    %1197 = vmatmul.f32.gmra.mxu0 %v1196
    %v1198 = vpop.f32.mrf.mxu0
    %v1199 = vadd.f32 %v1095, %v1198
    %v1200 = vand.u32 %v833, 4294901760
    %v1201 = vsub.f32 %v833, %v1200
    %1202 = vmatmul.f32.gmra.mxu0 %v1201
    %v1203 = vpop.f32.mrf.mxu0
    %v1204 = vadd.f32 %v1099, %v1203
    %v1205 = vand.u32 %v836, 4294901760
    %v1206 = vsub.f32 %v836, %v1205
    %1207 = vmatmul.f32.gmra.mxu0 %v1206
    %v1208 = vpop.f32.mrf.mxu0
    %v1209 = vadd.f32 %v1103, %v1208
    %v1210 = vand.u32 %v839, 4294901760
    %v1211 = vsub.f32 %v839, %v1210
    %1212 = vmatmul.f32.gmra.mxu0 %v1211
    %v1213 = vpop.f32.mrf.mxu0
    %v1214 = vadd.f32 %v1107, %v1213
    %v1215 = vand.u32 %v842, 4294901760
    %v1216 = vsub.f32 %v842, %v1215
    %1217 = vmatmul.f32.gmra.mxu0 %v1216
    %v1218 = vpop.f32.mrf.mxu0
    %v1219 = vadd.f32 %v1111, %v1218
    %v1220 = vand.u32 %v845, 4294901760
    %v1221 = vsub.f32 %v845, %v1220
    %1222 = vmatmul.f32.gmra.mxu0 %v1221
    %v1223 = vpop.f32.mrf.mxu0
    %v1224 = vadd.f32 %v1115, %v1223
    %v1225 = vand.u32 %v848, 4294901760
    %v1226 = vsub.f32 %v848, %v1225
    %1227 = vmatmul.f32.gmra.mxu0 %v1226
    %v1228 = vpop.f32.mrf.mxu0
    %v1229 = vadd.f32 %v1119, %v1228
    %v1230 = vand.u32 %v851, 4294901760
    %v1231 = vsub.f32 %v851, %v1230
    %1232 = vmatmul.f32.gmra.mxu0 %v1231
    %v1233 = vpop.f32.mrf.mxu0
    %v1234 = vadd.f32 %v1123, %v1233
    %1235 = vdwg.mxu0
    %1236 = vmatpush.msra.mxu0 0.0
    %1237 = vmatpush.msra.mxu0 0.0
    %1238 = vmatpush.msra.mxu0 0.0
    %1239 = vmatpush.msra.mxu0 0.0
    %1240 = vmatpush.msra.mxu0 0.0
    %1241 = vmatpush.msra.mxu0 0.0
    %1242 = vmatpush.msra.mxu0 0.0
    %1243 = vmatpush.msra.mxu0 0.0
    %1244 = vmatpush.msra.mxu0 0.0
    %v1245 = vand.u32 %v855, 4294901760
    %1246 = vmatpush.msra.mxu0 %v1245
    %v1247 = vand.u32 %v802, 4294901760
    %1248 = vmatpush.msra.mxu0 %v1247
    %v1249 = vand.u32 %v801, 4294901760
    %1250 = vmatpush.msra.mxu0 %v1249
    %v1251 = vand.u32 %v800, 4294901760
    %1252 = vmatpush.msra.mxu0 %v1251
    %v1253 = vand.u32 %v799, 4294901760
    %1254 = vmatpush.msra.mxu0 %v1253
    %v1255 = vand.u32 %v798, 4294901760
    %1256 = vmatpush.msra.mxu0 %v1255
    %v1257 = vand.u32 %v797, 4294901760
    %1258 = vmatpush.msra.mxu0 %v1257
    %v1259 = vand.u32 %v806, 4294901760
    %v1260 = vsub.f32 %v806, %v1259
    %v1261 = vand.u32 %v1260, 4294901760
    %1262 = vmatmul.f32.gmra.mxu0 %v1261
    %v1263 = vpop.f32.mrf.mxu0
    %v1264 = vadd.f32 %v1159, %v1263
    %v1265 = vand.u32 %v809, 4294901760
    %v1266 = vsub.f32 %v809, %v1265
    %v1267 = vand.u32 %v1266, 4294901760
    %1268 = vmatmul.f32.gmra.mxu0 %v1267
    %v1269 = vpop.f32.mrf.mxu0
    %v1270 = vadd.f32 %v1164, %v1269
    %v1271 = vand.u32 %v812, 4294901760
    %v1272 = vsub.f32 %v812, %v1271
    %v1273 = vand.u32 %v1272, 4294901760
    %1274 = vmatmul.f32.gmra.mxu0 %v1273
    %v1275 = vpop.f32.mrf.mxu0
    %v1276 = vadd.f32 %v1169, %v1275
    %v1277 = vand.u32 %v815, 4294901760
    %v1278 = vsub.f32 %v815, %v1277
    %v1279 = vand.u32 %v1278, 4294901760
    %1280 = vmatmul.f32.gmra.mxu0 %v1279
    %v1281 = vpop.f32.mrf.mxu0
    %v1282 = vadd.f32 %v1174, %v1281
    %v1283 = vand.u32 %v818, 4294901760
    %v1284 = vsub.f32 %v818, %v1283
    %v1285 = vand.u32 %v1284, 4294901760
    %1286 = vmatmul.f32.gmra.mxu0 %v1285
    %v1287 = vpop.f32.mrf.mxu0
    %v1288 = vadd.f32 %v1179, %v1287
    %v1289 = vand.u32 %v821, 4294901760
    %v1290 = vsub.f32 %v821, %v1289
    %v1291 = vand.u32 %v1290, 4294901760
    %1292 = vmatmul.f32.gmra.mxu0 %v1291
    %v1293 = vpop.f32.mrf.mxu0
    %v1294 = vadd.f32 %v1184, %v1293
    %v1295 = vand.u32 %v824, 4294901760
    %v1296 = vsub.f32 %v824, %v1295
    %v1297 = vand.u32 %v1296, 4294901760
    %1298 = vmatmul.f32.gmra.mxu0 %v1297
    %v1299 = vpop.f32.mrf.mxu0
    %v1300 = vadd.f32 %v1189, %v1299
    %v1301 = vand.u32 %v827, 4294901760
    %v1302 = vsub.f32 %v827, %v1301
    %v1303 = vand.u32 %v1302, 4294901760
    %1304 = vmatmul.f32.gmra.mxu0 %v1303
    %v1305 = vpop.f32.mrf.mxu0
    %v1306 = vadd.f32 %v1194, %v1305
    %v1307 = vand.u32 %v830, 4294901760
    %v1308 = vsub.f32 %v830, %v1307
    %v1309 = vand.u32 %v1308, 4294901760
    %1310 = vmatmul.f32.gmra.mxu0 %v1309
    %v1311 = vpop.f32.mrf.mxu0
    %v1312 = vadd.f32 %v1199, %v1311
    %v1313 = vand.u32 %v833, 4294901760
    %v1314 = vsub.f32 %v833, %v1313
    %v1315 = vand.u32 %v1314, 4294901760
    %1316 = vmatmul.f32.gmra.mxu0 %v1315
    %v1317 = vpop.f32.mrf.mxu0
    %v1318 = vadd.f32 %v1204, %v1317
    %v1319 = vand.u32 %v836, 4294901760
    %v1320 = vsub.f32 %v836, %v1319
    %v1321 = vand.u32 %v1320, 4294901760
    %1322 = vmatmul.f32.gmra.mxu0 %v1321
    %v1323 = vpop.f32.mrf.mxu0
    %v1324 = vadd.f32 %v1209, %v1323
    %v1325 = vand.u32 %v839, 4294901760
    %v1326 = vsub.f32 %v839, %v1325
    %v1327 = vand.u32 %v1326, 4294901760
    %1328 = vmatmul.f32.gmra.mxu0 %v1327
    %v1329 = vpop.f32.mrf.mxu0
    %v1330 = vadd.f32 %v1214, %v1329
    %v1331 = vand.u32 %v842, 4294901760
    %v1332 = vsub.f32 %v842, %v1331
    %v1333 = vand.u32 %v1332, 4294901760
    %1334 = vmatmul.f32.gmra.mxu0 %v1333
    %v1335 = vpop.f32.mrf.mxu0
    %v1336 = vadd.f32 %v1219, %v1335
    %v1337 = vand.u32 %v845, 4294901760
    %v1338 = vsub.f32 %v845, %v1337
    %v1339 = vand.u32 %v1338, 4294901760
    %1340 = vmatmul.f32.gmra.mxu0 %v1339
    %v1341 = vpop.f32.mrf.mxu0
    %v1342 = vadd.f32 %v1224, %v1341
    %v1343 = vand.u32 %v848, 4294901760
    %v1344 = vsub.f32 %v848, %v1343
    %v1345 = vand.u32 %v1344, 4294901760
    %1346 = vmatmul.f32.gmra.mxu0 %v1345
    %v1347 = vpop.f32.mrf.mxu0
    %v1348 = vadd.f32 %v1229, %v1347
    %v1349 = vand.u32 %v851, 4294901760
    %v1350 = vsub.f32 %v851, %v1349
    %v1351 = vand.u32 %v1350, 4294901760
    %1352 = vmatmul.f32.gmra.mxu0 %v1351
    %v1353 = vpop.f32.mrf.mxu0
    %v1354 = vadd.f32 %v1234, %v1353
    %1355 = vdwg.mxu0
    %1356 = vmatpush.msra.mxu0 0.0
    %1357 = vmatpush.msra.mxu0 0.0
    %1358 = vmatpush.msra.mxu0 0.0
    %1359 = vmatpush.msra.mxu0 0.0
    %1360 = vmatpush.msra.mxu0 0.0
    %1361 = vmatpush.msra.mxu0 0.0
    %1362 = vmatpush.msra.mxu0 0.0
    %1363 = vmatpush.msra.mxu0 0.0
    %1364 = vmatpush.msra.mxu0 0.0
    %v1365 = vand.u32 %v855, 4294901760
    %v1366 = vsub.f32 %v855, %v1365
    %v1367 = vand.u32 %v1366, 4294901760
    %1368 = vmatpush.msra.mxu0 %v1367
    %v1369 = vand.u32 %v802, 4294901760
    %v1370 = vsub.f32 %v802, %v1369
    %v1371 = vand.u32 %v1370, 4294901760
    %1372 = vmatpush.msra.mxu0 %v1371
    %v1373 = vand.u32 %v801, 4294901760
    %v1374 = vsub.f32 %v801, %v1373
    %v1375 = vand.u32 %v1374, 4294901760
    %1376 = vmatpush.msra.mxu0 %v1375
    %v1377 = vand.u32 %v800, 4294901760
    %v1378 = vsub.f32 %v800, %v1377
    %v1379 = vand.u32 %v1378, 4294901760
    %1380 = vmatpush.msra.mxu0 %v1379
    %v1381 = vand.u32 %v799, 4294901760
    %v1382 = vsub.f32 %v799, %v1381
    %v1383 = vand.u32 %v1382, 4294901760
    %1384 = vmatpush.msra.mxu0 %v1383
    %v1385 = vand.u32 %v798, 4294901760
    %v1386 = vsub.f32 %v798, %v1385
    %v1387 = vand.u32 %v1386, 4294901760
    %1388 = vmatpush.msra.mxu0 %v1387
    %v1389 = vand.u32 %v797, 4294901760
    %v1390 = vsub.f32 %v797, %v1389
    %v1391 = vand.u32 %v1390, 4294901760
    %1392 = vmatpush.msra.mxu0 %v1391
    %v1393 = vand.u32 %v806, 4294901760
    %1394 = vmatmul.f32.gmra.mxu0 %v1393
    %v1395 = vpop.f32.mrf.mxu0
    %v1396 = vadd.f32 %v1264, %v1395
    %v1397 = vand.u32 %v809, 4294901760
    %1398 = vmatmul.f32.gmra.mxu0 %v1397
    %v1399 = vpop.f32.mrf.mxu0
    %v1400 = vadd.f32 %v1270, %v1399
    %v1401 = vand.u32 %v812, 4294901760
    %1402 = vmatmul.f32.gmra.mxu0 %v1401
    %v1403 = vpop.f32.mrf.mxu0
    %v1404 = vadd.f32 %v1276, %v1403
    %v1405 = vand.u32 %v815, 4294901760
    %1406 = vmatmul.f32.gmra.mxu0 %v1405
    %v1407 = vpop.f32.mrf.mxu0
    %v1408 = vadd.f32 %v1282, %v1407
    %v1409 = vand.u32 %v818, 4294901760
    %1410 = vmatmul.f32.gmra.mxu0 %v1409
    %v1411 = vpop.f32.mrf.mxu0
    %v1412 = vadd.f32 %v1288, %v1411
    %v1413 = vand.u32 %v821, 4294901760
    %1414 = vmatmul.f32.gmra.mxu0 %v1413
    %v1415 = vpop.f32.mrf.mxu0
    %v1416 = vadd.f32 %v1294, %v1415
    %v1417 = vand.u32 %v824, 4294901760
    %1418 = vmatmul.f32.gmra.mxu0 %v1417
    %v1419 = vpop.f32.mrf.mxu0
    %v1420 = vadd.f32 %v1300, %v1419
    %v1421 = vand.u32 %v827, 4294901760
    %1422 = vmatmul.f32.gmra.mxu0 %v1421
    %v1423 = vpop.f32.mrf.mxu0
    %v1424 = vadd.f32 %v1306, %v1423
    %v1425 = vand.u32 %v830, 4294901760
    %1426 = vmatmul.f32.gmra.mxu0 %v1425
    %v1427 = vpop.f32.mrf.mxu0
    %v1428 = vadd.f32 %v1312, %v1427
    %v1429 = vand.u32 %v833, 4294901760
    %1430 = vmatmul.f32.gmra.mxu0 %v1429
    %v1431 = vpop.f32.mrf.mxu0
    %v1432 = vadd.f32 %v1318, %v1431
    %v1433 = vand.u32 %v836, 4294901760
    %1434 = vmatmul.f32.gmra.mxu0 %v1433
    %v1435 = vpop.f32.mrf.mxu0
    %v1436 = vadd.f32 %v1324, %v1435
    %v1437 = vand.u32 %v839, 4294901760
    %1438 = vmatmul.f32.gmra.mxu0 %v1437
    %v1439 = vpop.f32.mrf.mxu0
    %v1440 = vadd.f32 %v1330, %v1439
    %v1441 = vand.u32 %v842, 4294901760
    %1442 = vmatmul.f32.gmra.mxu0 %v1441
    %v1443 = vpop.f32.mrf.mxu0
    %v1444 = vadd.f32 %v1336, %v1443
    %v1445 = vand.u32 %v845, 4294901760
    %1446 = vmatmul.f32.gmra.mxu0 %v1445
    %v1447 = vpop.f32.mrf.mxu0
    %v1448 = vadd.f32 %v1342, %v1447
    %v1449 = vand.u32 %v848, 4294901760
    %1450 = vmatmul.f32.gmra.mxu0 %v1449
    %v1451 = vpop.f32.mrf.mxu0
    %v1452 = vadd.f32 %v1348, %v1451
    %v1453 = vand.u32 %v851, 4294901760
    %1454 = vmatmul.f32.gmra.mxu0 %v1453
    %v1455 = vpop.f32.mrf.mxu0
    %v1456 = vadd.f32 %v1354, %v1455
    %1457 = vdwg.mxu0
    %1458 = vmatpush.msra.mxu0 0.0
    %1459 = vmatpush.msra.mxu0 0.0
    %1460 = vmatpush.msra.mxu0 0.0
    %1461 = vmatpush.msra.mxu0 0.0
    %1462 = vmatpush.msra.mxu0 0.0
    %1463 = vmatpush.msra.mxu0 0.0
    %1464 = vmatpush.msra.mxu0 0.0
    %1465 = vmatpush.msra.mxu0 0.0
    %1466 = vmatpush.msra.mxu0 0.0
    %v1467 = vand.u32 %v855, 4294901760
    %1468 = vmatpush.msra.mxu0 %v1467
    %v1469 = vand.u32 %v802, 4294901760
    %1470 = vmatpush.msra.mxu0 %v1469
    %v1471 = vand.u32 %v801, 4294901760
    %1472 = vmatpush.msra.mxu0 %v1471
    %v1473 = vand.u32 %v800, 4294901760
    %1474 = vmatpush.msra.mxu0 %v1473
    %v1475 = vand.u32 %v799, 4294901760
    %1476 = vmatpush.msra.mxu0 %v1475
    %v1477 = vand.u32 %v798, 4294901760
    %1478 = vmatpush.msra.mxu0 %v1477
    %v1479 = vand.u32 %v797, 4294901760
    %1480 = vmatpush.msra.mxu0 %v1479
    %v1481 = vand.u32 %v806, 4294901760
    %1482 = vmatmul.f32.gmra.mxu0 %v1481
    %v1483 = vpop.f32.mrf.mxu0
    %v1484 = vadd.f32 %v1396, %v1483
    %v1485 = vand.u32 %v809, 4294901760
    %1486 = vmatmul.f32.gmra.mxu0 %v1485
    %v1487 = vpop.f32.mrf.mxu0
    %v1488 = vadd.f32 %v1400, %v1487
    %v1489 = vand.u32 %v812, 4294901760
    %1490 = vmatmul.f32.gmra.mxu0 %v1489
    %v1491 = vpop.f32.mrf.mxu0
    %v1492 = vadd.f32 %v1404, %v1491
    %v1493 = vand.u32 %v815, 4294901760
    %1494 = vmatmul.f32.gmra.mxu0 %v1493
    %v1495 = vpop.f32.mrf.mxu0
    %v1496 = vadd.f32 %v1408, %v1495
    %v1497 = vand.u32 %v818, 4294901760
    %1498 = vmatmul.f32.gmra.mxu0 %v1497
    %v1499 = vpop.f32.mrf.mxu0
    %v1500 = vadd.f32 %v1412, %v1499
    %v1501 = vand.u32 %v821, 4294901760
    %1502 = vmatmul.f32.gmra.mxu0 %v1501
    %v1503 = vpop.f32.mrf.mxu0
    %v1504 = vadd.f32 %v1416, %v1503
    %v1505 = vand.u32 %v824, 4294901760
    %1506 = vmatmul.f32.gmra.mxu0 %v1505
    %v1507 = vpop.f32.mrf.mxu0
    %v1508 = vadd.f32 %v1420, %v1507
    %v1509 = vand.u32 %v827, 4294901760
    %1510 = vmatmul.f32.gmra.mxu0 %v1509
    %v1511 = vpop.f32.mrf.mxu0
    %v1512 = vadd.f32 %v1424, %v1511
    %v1513 = vand.u32 %v830, 4294901760
    %1514 = vmatmul.f32.gmra.mxu0 %v1513
    %v1515 = vpop.f32.mrf.mxu0
    %v1516 = vadd.f32 %v1428, %v1515
    %v1517 = vand.u32 %v833, 4294901760
    %1518 = vmatmul.f32.gmra.mxu0 %v1517
    %v1519 = vpop.f32.mrf.mxu0
    %v1520 = vadd.f32 %v1432, %v1519
    %v1521 = vand.u32 %v836, 4294901760
    %1522 = vmatmul.f32.gmra.mxu0 %v1521
    %v1523 = vpop.f32.mrf.mxu0
    %v1524 = vadd.f32 %v1436, %v1523
    %v1525 = vand.u32 %v839, 4294901760
    %1526 = vmatmul.f32.gmra.mxu0 %v1525
    %v1527 = vpop.f32.mrf.mxu0
    %v1528 = vadd.f32 %v1440, %v1527
    %v1529 = vand.u32 %v842, 4294901760
    %1530 = vmatmul.f32.gmra.mxu0 %v1529
    %v1531 = vpop.f32.mrf.mxu0
    %v1532 = vadd.f32 %v1444, %v1531
    %v1533 = vand.u32 %v845, 4294901760
    %1534 = vmatmul.f32.gmra.mxu0 %v1533
    %v1535 = vpop.f32.mrf.mxu0
    %v1536 = vadd.f32 %v1448, %v1535
    %v1537 = vand.u32 %v848, 4294901760
    %1538 = vmatmul.f32.gmra.mxu0 %v1537
    %v1539 = vpop.f32.mrf.mxu0
    %v1540 = vadd.f32 %v1452, %v1539
    %v1541 = vand.u32 %v851, 4294901760
    %1542 = vmatmul.f32.gmra.mxu0 %v1541
    %v1543 = vpop.f32.mrf.mxu0
    %v1544 = vadd.f32 %v1456, %v1543
    %1545 = vdwg.mxu0
    %vm1546 = vcmask 392192
    %1547 = vst.msk [vmem:[#allocation2] sm:$0xff] %vm1546, 0.0
    %1548 = vst.msk [vmem:[#allocation2 + $0x8] sm:$0xff] %vm1546, 0.0
    %1549 = vst.msk [vmem:[#allocation2 + $0x10] sm:$0xff] %vm1546, 0.0
    %1550 = vst.msk [vmem:[#allocation2 + $0x18] sm:$0xff] %vm1546, 0.0
    %1551 = vst.msk [vmem:[#allocation2 + $0x20] sm:$0xff] %vm1546, 0.0
    %1552 = vst.msk [vmem:[#allocation2 + $0x28] sm:$0xff] %vm1546, 0.0
    %1553 = vst.msk [vmem:[#allocation2 + $0x30] sm:$0xff] %vm1546, 0.0
    %1554 = vst.msk [vmem:[#allocation2 + $0x38] sm:$0xff] %vm1546, 0.0
    %1555 = vst.msk [vmem:[#allocation2 + $0x40] sm:$0xff] %vm1546, 0.0
    %1556 = vst.msk [vmem:[#allocation2 + $0x48] sm:$0xff] %vm1546, 0.0
    %1557 = vst.msk [vmem:[#allocation2 + $0x50] sm:$0xff] %vm1546, 0.0
    %1558 = vst.msk [vmem:[#allocation2 + $0x58] sm:$0xff] %vm1546, 0.0
    %1559 = vst.msk [vmem:[#allocation2 + $0x60] sm:$0xff] %vm1546, 0.0
    %1560 = vst.msk [vmem:[#allocation2 + $0x68] sm:$0xff] %vm1546, 0.0
    %1561 = vst.msk [vmem:[#allocation2 + $0x70] sm:$0xff] %vm1546, 0.0
    %1562 = vst.msk [vmem:[#allocation2 + $0x78] sm:$0xff] %vm1546, 0.0
    %1563 = vst.msk [vmem:[#allocation2 + $0x80] sm:$0xff] %vm1546, 0.0
    %1564 = vst.msk [vmem:[#allocation2 + $0x88] sm:$0xff] %vm1546, 0.0
    %1565 = vst.msk [vmem:[#allocation2 + $0x90] sm:$0xff] %vm1546, 0.0
    %1566 = vst.msk [vmem:[#allocation2 + $0x98] sm:$0xff] %vm1546, 0.0
    %1567 = vst.msk [vmem:[#allocation2 + $0xa0] sm:$0xff] %vm1546, 0.0
    %1568 = vst.msk [vmem:[#allocation2 + $0xa8] sm:$0xff] %vm1546, 0.0
    %1569 = vst.msk [vmem:[#allocation2 + $0xb0] sm:$0xff] %vm1546, 0.0
    %1570 = vst.msk [vmem:[#allocation2 + $0xb8] sm:$0xff] %vm1546, 0.0
    %1571 = vst.msk [vmem:[#allocation2 + $0xc0] sm:$0xff] %vm1546, 0.0
    %1572 = vst.msk [vmem:[#allocation2 + $0xc8] sm:$0xff] %vm1546, 0.0
    %1573 = vst.msk [vmem:[#allocation2 + $0xd0] sm:$0xff] %vm1546, 0.0
    %1574 = vst.msk [vmem:[#allocation2 + $0xd8] sm:$0xff] %vm1546, 0.0
    %1575 = vst.msk [vmem:[#allocation2 + $0xe0] sm:$0xff] %vm1546, 0.0
    %1576 = vst.msk [vmem:[#allocation2 + $0xe8] sm:$0xff] %vm1546, 0.0
    %1577 = vst.msk [vmem:[#allocation2 + $0xf0] sm:$0xff] %vm1546, 0.0
    %1578 = vst.msk [vmem:[#allocation2 + $0xf8] sm:$0xff] %vm1546, 0.0
    %vm1579 = vcmask 130048
    %1580 = vst.msk [vmem:[#allocation2 + $0x2] sm:$0xff] %vm1579, %v1484
    %1581 = vst.msk [vmem:[#allocation2 + $0x12] sm:$0xff] %vm1579, %v1488
    %1582 = vst.msk [vmem:[#allocation2 + $0x22] sm:$0xff] %vm1579, %v1492
    %1583 = vst.msk [vmem:[#allocation2 + $0x32] sm:$0xff] %vm1579, %v1496
    %1584 = vst.msk [vmem:[#allocation2 + $0x42] sm:$0xff] %vm1579, %v1500
    %1585 = vst.msk [vmem:[#allocation2 + $0x52] sm:$0xff] %vm1579, %v1504
    %1586 = vst.msk [vmem:[#allocation2 + $0x62] sm:$0xff] %vm1579, %v1508
    %1587 = vst.msk [vmem:[#allocation2 + $0x72] sm:$0xff] %vm1579, %v1512
    %1588 = vst.msk [vmem:[#allocation2 + $0x82] sm:$0xff] %vm1579, %v1516
    %1589 = vst.msk [vmem:[#allocation2 + $0x92] sm:$0xff] %vm1579, %v1520
    %1590 = vst.msk [vmem:[#allocation2 + $0xa2] sm:$0xff] %vm1579, %v1524
    %1591 = vst.msk [vmem:[#allocation2 + $0xb2] sm:$0xff] %vm1579, %v1528
    %1592 = vst.msk [vmem:[#allocation2 + $0xc2] sm:$0xff] %vm1579, %v1532
    %1593 = vst.msk [vmem:[#allocation2 + $0xd2] sm:$0xff] %vm1579, %v1536
    %1594 = vst.msk [vmem:[#allocation2 + $0xe2] sm:$0xff] %vm1579, %v1540
    %1595 = vst.msk [vmem:[#allocation2 + $0xf2] sm:$0xff] %vm1579, %v1544
    %1612 = vrot.lane.b32.xlu0 %v1484, 16
    %v1613 = vpop.permute.xlu0 %1612
    %1614 = vrot.lane.b32.xlu0 %v1488, 16
    %v1615 = vpop.permute.xlu0 %1614
    %1616 = vrot.lane.b32.xlu0 %v1492, 16
    %v1617 = vpop.permute.xlu0 %1616
    %1618 = vrot.lane.b32.xlu0 %v1496, 16
    %v1619 = vpop.permute.xlu0 %1618
    %1620 = vrot.lane.b32.xlu0 %v1500, 16
    %v1621 = vpop.permute.xlu0 %1620
    %1622 = vrot.lane.b32.xlu0 %v1504, 16
    %v1623 = vpop.permute.xlu0 %1622
    %1624 = vrot.lane.b32.xlu0 %v1508, 16
    %v1625 = vpop.permute.xlu0 %1624
    %1626 = vrot.lane.b32.xlu0 %v1512, 16
    %v1627 = vpop.permute.xlu0 %1626
    %1628 = vrot.lane.b32.xlu0 %v1516, 16
    %v1629 = vpop.permute.xlu0 %1628
    %1630 = vrot.lane.b32.xlu0 %v1520, 16
    %v1631 = vpop.permute.xlu0 %1630
    %1632 = vrot.lane.b32.xlu0 %v1524, 16
    %v1633 = vpop.permute.xlu0 %1632
    %1634 = vrot.lane.b32.xlu0 %v1528, 16
    %v1635 = vpop.permute.xlu0 %1634
    %1636 = vrot.lane.b32.xlu0 %v1532, 16
    %v1637 = vpop.permute.xlu0 %1636
    %1638 = vrot.lane.b32.xlu0 %v1536, 16
    %v1639 = vpop.permute.xlu0 %1638
    %1640 = vrot.lane.b32.xlu0 %v1540, 16
    %v1641 = vpop.permute.xlu0 %1640
    %1642 = vrot.lane.b32.xlu0 %v1544, 16
    %v1643 = vpop.permute.xlu0 %1642
    %vm1660 = vcmask 261248
    %1661 = vst.msk [vmem:[#allocation2 + $0x1] sm:$0xff] %vm1660, %v1613
    %1662 = vst.msk [vmem:[#allocation2 + $0x11] sm:$0xff] %vm1660, %v1615
    %1663 = vst.msk [vmem:[#allocation2 + $0x21] sm:$0xff] %vm1660, %v1617
    %1664 = vst.msk [vmem:[#allocation2 + $0x31] sm:$0xff] %vm1660, %v1619
    %1665 = vst.msk [vmem:[#allocation2 + $0x41] sm:$0xff] %vm1660, %v1621
    %1666 = vst.msk [vmem:[#allocation2 + $0x51] sm:$0xff] %vm1660, %v1623
    %1667 = vst.msk [vmem:[#allocation2 + $0x61] sm:$0xff] %vm1660, %v1625
    %1668 = vst.msk [vmem:[#allocation2 + $0x71] sm:$0xff] %vm1660, %v1627
    %1669 = vst.msk [vmem:[#allocation2 + $0x81] sm:$0xff] %vm1660, %v1629
    %1670 = vst.msk [vmem:[#allocation2 + $0x91] sm:$0xff] %vm1660, %v1631
    %1671 = vst.msk [vmem:[#allocation2 + $0xa1] sm:$0xff] %vm1660, %v1633
    %1672 = vst.msk [vmem:[#allocation2 + $0xb1] sm:$0xff] %vm1660, %v1635
    %1673 = vst.msk [vmem:[#allocation2 + $0xc1] sm:$0xff] %vm1660, %v1637
    %1674 = vst.msk [vmem:[#allocation2 + $0xd1] sm:$0xff] %vm1660, %v1639
    %1675 = vst.msk [vmem:[#allocation2 + $0xe1] sm:$0xff] %vm1660, %v1641
    %1676 = vst.msk [vmem:[#allocation2 + $0xf1] sm:$0xff] %vm1660, %v1643
    %1677 = vrot.lane.b32.xlu0 %v1484, 32
    %v1678 = vpop.permute.xlu0 %1677
    %1679 = vrot.lane.b32.xlu0 %v1488, 32
    %v1680 = vpop.permute.xlu0 %1679
    %1681 = vrot.lane.b32.xlu0 %v1492, 32
    %v1682 = vpop.permute.xlu0 %1681
    %1683 = vrot.lane.b32.xlu0 %v1496, 32
    %v1684 = vpop.permute.xlu0 %1683
    %1685 = vrot.lane.b32.xlu0 %v1500, 32
    %v1686 = vpop.permute.xlu0 %1685
    %1687 = vrot.lane.b32.xlu0 %v1504, 32
    %v1688 = vpop.permute.xlu0 %1687
    %1689 = vrot.lane.b32.xlu0 %v1508, 32
    %v1690 = vpop.permute.xlu0 %1689
    %1691 = vrot.lane.b32.xlu0 %v1512, 32
    %v1692 = vpop.permute.xlu0 %1691
    %1693 = vrot.lane.b32.xlu0 %v1516, 32
    %v1694 = vpop.permute.xlu0 %1693
    %1695 = vrot.lane.b32.xlu0 %v1520, 32
    %v1696 = vpop.permute.xlu0 %1695
    %1697 = vrot.lane.b32.xlu0 %v1524, 32
    %v1698 = vpop.permute.xlu0 %1697
    %1699 = vrot.lane.b32.xlu0 %v1528, 32
    %v1700 = vpop.permute.xlu0 %1699
    %1701 = vrot.lane.b32.xlu0 %v1532, 32
    %v1702 = vpop.permute.xlu0 %1701
    %1703 = vrot.lane.b32.xlu0 %v1536, 32
    %v1704 = vpop.permute.xlu0 %1703
    %1705 = vrot.lane.b32.xlu0 %v1540, 32
    %v1706 = vpop.permute.xlu0 %1705
    %1707 = vrot.lane.b32.xlu0 %v1544, 32
    %v1708 = vpop.permute.xlu0 %1707
    %vm1725 = vcmask 392448
    %1726 = vst.msk [vmem:[#allocation2] sm:$0xff] %vm1725, %v1678
    %1727 = vst.msk [vmem:[#allocation2 + $0x10] sm:$0xff] %vm1725, %v1680
    %1728 = vst.msk [vmem:[#allocation2 + $0x20] sm:$0xff] %vm1725, %v1682
    %1729 = vst.msk [vmem:[#allocation2 + $0x30] sm:$0xff] %vm1725, %v1684
    %1730 = vst.msk [vmem:[#allocation2 + $0x40] sm:$0xff] %vm1725, %v1686
    %1731 = vst.msk [vmem:[#allocation2 + $0x50] sm:$0xff] %vm1725, %v1688
    %1732 = vst.msk [vmem:[#allocation2 + $0x60] sm:$0xff] %vm1725, %v1690
    %1733 = vst.msk [vmem:[#allocation2 + $0x70] sm:$0xff] %vm1725, %v1692
    %1734 = vst.msk [vmem:[#allocation2 + $0x80] sm:$0xff] %vm1725, %v1694
    %1735 = vst.msk [vmem:[#allocation2 + $0x90] sm:$0xff] %vm1725, %v1696
    %1736 = vst.msk [vmem:[#allocation2 + $0xa0] sm:$0xff] %vm1725, %v1698
    %1737 = vst.msk [vmem:[#allocation2 + $0xb0] sm:$0xff] %vm1725, %v1700
    %1738 = vst.msk [vmem:[#allocation2 + $0xc0] sm:$0xff] %vm1725, %v1702
    %1739 = vst.msk [vmem:[#allocation2 + $0xd0] sm:$0xff] %vm1725, %v1704
    %1740 = vst.msk [vmem:[#allocation2 + $0xe0] sm:$0xff] %vm1725, %v1706
    %1741 = vst.msk [vmem:[#allocation2 + $0xf0] sm:$0xff] %vm1725, %v1708
    %v1742 = vld [vmem:[#allocation2] sm:$0xff]
    %v1743 = vld [vmem:[#allocation2 + $0x8] sm:$0xff]
    %v1744 = vld [vmem:[#allocation2 + $0x10] sm:$0xff]
    %v1745 = vld [vmem:[#allocation2 + $0x18] sm:$0xff]
    %v1746 = vld [vmem:[#allocation2 + $0x20] sm:$0xff]
    %v1747 = vld [vmem:[#allocation2 + $0x28] sm:$0xff]
    %v1748 = vld [vmem:[#allocation2 + $0x30] sm:$0xff]
    %v1749 = vld [vmem:[#allocation2 + $0x38] sm:$0xff]
    %v1750 = vld [vmem:[#allocation2 + $0x40] sm:$0xff]
    %v1751 = vld [vmem:[#allocation2 + $0x48] sm:$0xff]
    %v1752 = vld [vmem:[#allocation2 + $0x50] sm:$0xff]
    %v1753 = vld [vmem:[#allocation2 + $0x58] sm:$0xff]
    %v1754 = vld [vmem:[#allocation2 + $0x60] sm:$0xff]
    %v1755 = vld [vmem:[#allocation2 + $0x68] sm:$0xff]
    %v1756 = vld [vmem:[#allocation2 + $0x70] sm:$0xff]
    %v1757 = vld [vmem:[#allocation2 + $0x78] sm:$0xff]
    %v1758 = vld [vmem:[#allocation2 + $0x80] sm:$0xff]
    %v1759 = vld [vmem:[#allocation2 + $0x88] sm:$0xff]
    %v1760 = vld [vmem:[#allocation2 + $0x90] sm:$0xff]
    %v1761 = vld [vmem:[#allocation2 + $0x98] sm:$0xff]
    %v1762 = vld [vmem:[#allocation2 + $0xa0] sm:$0xff]
    %v1763 = vld [vmem:[#allocation2 + $0xa8] sm:$0xff]
    %v1764 = vld [vmem:[#allocation2 + $0xb0] sm:$0xff]
    %v1765 = vld [vmem:[#allocation2 + $0xb8] sm:$0xff]
    %v1766 = vld [vmem:[#allocation2 + $0xc0] sm:$0xff]
    %v1767 = vld [vmem:[#allocation2 + $0xc8] sm:$0xff]
    %v1768 = vld [vmem:[#allocation2 + $0xd0] sm:$0xff]
    %v1769 = vld [vmem:[#allocation2 + $0xd8] sm:$0xff]
    %v1770 = vld [vmem:[#allocation2 + $0xe0] sm:$0xff]
    %v1771 = vld [vmem:[#allocation2 + $0xe8] sm:$0xff]
    %v1772 = vld [vmem:[#allocation2 + $0xf0] sm:$0xff]
    %v1773 = vld [vmem:[#allocation2 + $0xf8] sm:$0xff]
    %v1774 = vld [vmem:[%s7] sm:$0xff]
    %v1775 = vld [vmem:[%s7 + $0x8] sm:$0xff]
    %v1776 = vld [vmem:[%s7 + $0x10] sm:$0xff]
    %v1777 = vld [vmem:[%s7 + $0x18] sm:$0xff]
    %v1778 = vld [vmem:[%s7 + $0x20] sm:$0xff]
    %v1779 = vld [vmem:[%s7 + $0x28] sm:$0xff]
    %v1781 = vsel %vm1546, %v1742, 0
    %v1784 = vsel %vm1546, %v1743, 0
    %v1787 = vsel %vm1546, %v1744, 0
    %v1790 = vsel %vm1546, %v1745, 0
    %v1793 = vsel %vm1546, %v1746, 0
    %v1796 = vsel %vm1546, %v1747, 0
    %v1799 = vsel %vm1546, %v1748, 0
    %v1802 = vsel %vm1546, %v1749, 0
    %v1805 = vsel %vm1546, %v1750, 0
    %v1808 = vsel %vm1546, %v1751, 0
    %v1811 = vsel %vm1546, %v1752, 0
    %v1814 = vsel %vm1546, %v1753, 0
    %v1817 = vsel %vm1546, %v1754, 0
    %v1820 = vsel %vm1546, %v1755, 0
    %v1823 = vsel %vm1546, %v1756, 0
    %v1826 = vsel %vm1546, %v1757, 0
    %v1829 = vsel %vm1546, %v1758, 0
    %v1832 = vsel %vm1546, %v1759, 0
    %v1835 = vsel %vm1546, %v1760, 0
    %v1838 = vsel %vm1546, %v1761, 0
    %v1841 = vsel %vm1546, %v1762, 0
    %v1844 = vsel %vm1546, %v1763, 0
    %v1847 = vsel %vm1546, %v1764, 0
    %v1850 = vsel %vm1546, %v1765, 0
    %v1853 = vsel %vm1546, %v1766, 0
    %v1856 = vsel %vm1546, %v1767, 0
    %v1859 = vsel %vm1546, %v1768, 0
    %v1862 = vsel %vm1546, %v1769, 0
    %v1865 = vsel %vm1546, %v1770, 0
    %v1868 = vsel %vm1546, %v1771, 0
    %v1871 = vsel %vm1546, %v1772, 0
    %v1874 = vsel %vm1546, %v1773, 0
    %1876 = vmatpush.msra.mxu0 0.0
    %1877 = vmatpush.msra.mxu0 0.0
    %1878 = vmatpush.msra.mxu0 0.0
    %1879 = vmatpush.msra.mxu0 0.0
    %1880 = vmatpush.msra.mxu0 0.0
    %1881 = vmatpush.msra.mxu0 0.0
    %1882 = vmatpush.msra.mxu0 0.0
    %1883 = vmatpush.msra.mxu0 0.0
    %1884 = vmatpush.msra.mxu0 0.0
    %1885 = vmatpush.msra.mxu0 0.0
    %v1886 = vand.u32 %v1779, 4294901760
    %1887 = vmatpush.msra.mxu0 %v1886
    %v1888 = vand.u32 %v1778, 4294901760
    %1889 = vmatpush.msra.mxu0 %v1888
    %v1890 = vand.u32 %v1777, 4294901760
    %1891 = vmatpush.msra.mxu0 %v1890
    %v1892 = vand.u32 %v1776, 4294901760
    %1893 = vmatpush.msra.mxu0 %v1892
    %v1894 = vand.u32 %v1775, 4294901760
    %1895 = vmatpush.msra.mxu0 %v1894
    %v1896 = vand.u32 %v1774, 4294901760
    %1897 = vmatpush.msra.mxu0 %v1896
    %v1898 = vand.u32 %v1781, 4294901760
    %v1899 = vsub.f32 %v1781, %v1898
    %v1900 = vand.u32 %v1899, 4294901760
    %v1901 = vsub.f32 %v1899, %v1900
    %v1902 = vand.u32 %v1901, 4294901760
    %1903 = vmatmul.f32.gmra.mxu0 %v1902
    %v1904 = vpop.f32.mrf.mxu0
    %v1905 = vadd.f32 0.0, %v1904
    %v1906 = vand.u32 %v1784, 4294901760
    %v1907 = vsub.f32 %v1784, %v1906
    %v1908 = vand.u32 %v1907, 4294901760
    %v1909 = vsub.f32 %v1907, %v1908
    %v1910 = vand.u32 %v1909, 4294901760
    %1911 = vmatmul.f32.gmra.mxu0 %v1910
    %v1912 = vpop.f32.mrf.mxu0
    %v1913 = vadd.f32 0.0, %v1912
    %v1914 = vand.u32 %v1787, 4294901760
    %v1915 = vsub.f32 %v1787, %v1914
    %v1916 = vand.u32 %v1915, 4294901760
    %v1917 = vsub.f32 %v1915, %v1916
    %v1918 = vand.u32 %v1917, 4294901760
    %1919 = vmatmul.f32.gmra.mxu0 %v1918
    %v1920 = vpop.f32.mrf.mxu0
    %v1921 = vadd.f32 0.0, %v1920
    %v1922 = vand.u32 %v1790, 4294901760
    %v1923 = vsub.f32 %v1790, %v1922
    %v1924 = vand.u32 %v1923, 4294901760
    %v1925 = vsub.f32 %v1923, %v1924
    %v1926 = vand.u32 %v1925, 4294901760
    %1927 = vmatmul.f32.gmra.mxu0 %v1926
    %v1928 = vpop.f32.mrf.mxu0
    %v1929 = vadd.f32 0.0, %v1928
    %v1930 = vand.u32 %v1793, 4294901760
    %v1931 = vsub.f32 %v1793, %v1930
    %v1932 = vand.u32 %v1931, 4294901760
    %v1933 = vsub.f32 %v1931, %v1932
    %v1934 = vand.u32 %v1933, 4294901760
    %1935 = vmatmul.f32.gmra.mxu0 %v1934
    %v1936 = vpop.f32.mrf.mxu0
    %v1937 = vadd.f32 0.0, %v1936
    %v1938 = vand.u32 %v1796, 4294901760
    %v1939 = vsub.f32 %v1796, %v1938
    %v1940 = vand.u32 %v1939, 4294901760
    %v1941 = vsub.f32 %v1939, %v1940
    %v1942 = vand.u32 %v1941, 4294901760
    %1943 = vmatmul.f32.gmra.mxu0 %v1942
    %v1944 = vpop.f32.mrf.mxu0
    %v1945 = vadd.f32 0.0, %v1944
    %v1946 = vand.u32 %v1799, 4294901760
    %v1947 = vsub.f32 %v1799, %v1946
    %v1948 = vand.u32 %v1947, 4294901760
    %v1949 = vsub.f32 %v1947, %v1948
    %v1950 = vand.u32 %v1949, 4294901760
    %1951 = vmatmul.f32.gmra.mxu0 %v1950
    %v1952 = vpop.f32.mrf.mxu0
    %v1953 = vadd.f32 0.0, %v1952
    %v1954 = vand.u32 %v1802, 4294901760
    %v1955 = vsub.f32 %v1802, %v1954
    %v1956 = vand.u32 %v1955, 4294901760
    %v1957 = vsub.f32 %v1955, %v1956
    %v1958 = vand.u32 %v1957, 4294901760
    %1959 = vmatmul.f32.gmra.mxu0 %v1958
    %v1960 = vpop.f32.mrf.mxu0
    %v1961 = vadd.f32 0.0, %v1960
    %v1962 = vand.u32 %v1805, 4294901760
    %v1963 = vsub.f32 %v1805, %v1962
    %v1964 = vand.u32 %v1963, 4294901760
    %v1965 = vsub.f32 %v1963, %v1964
    %v1966 = vand.u32 %v1965, 4294901760
    %1967 = vmatmul.f32.gmra.mxu0 %v1966
    %v1968 = vpop.f32.mrf.mxu0
    %v1969 = vadd.f32 0.0, %v1968
    %v1970 = vand.u32 %v1808, 4294901760
    %v1971 = vsub.f32 %v1808, %v1970
    %v1972 = vand.u32 %v1971, 4294901760
    %v1973 = vsub.f32 %v1971, %v1972
    %v1974 = vand.u32 %v1973, 4294901760
    %1975 = vmatmul.f32.gmra.mxu0 %v1974
    %v1976 = vpop.f32.mrf.mxu0
    %v1977 = vadd.f32 0.0, %v1976
    %v1978 = vand.u32 %v1811, 4294901760
    %v1979 = vsub.f32 %v1811, %v1978
    %v1980 = vand.u32 %v1979, 4294901760
    %v1981 = vsub.f32 %v1979, %v1980
    %v1982 = vand.u32 %v1981, 4294901760
    %1983 = vmatmul.f32.gmra.mxu0 %v1982
    %v1984 = vpop.f32.mrf.mxu0
    %v1985 = vadd.f32 0.0, %v1984
    %v1986 = vand.u32 %v1814, 4294901760
    %v1987 = vsub.f32 %v1814, %v1986
    %v1988 = vand.u32 %v1987, 4294901760
    %v1989 = vsub.f32 %v1987, %v1988
    %v1990 = vand.u32 %v1989, 4294901760
    %1991 = vmatmul.f32.gmra.mxu0 %v1990
    %v1992 = vpop.f32.mrf.mxu0
    %v1993 = vadd.f32 0.0, %v1992
    %v1994 = vand.u32 %v1817, 4294901760
    %v1995 = vsub.f32 %v1817, %v1994
    %v1996 = vand.u32 %v1995, 4294901760
    %v1997 = vsub.f32 %v1995, %v1996
    %v1998 = vand.u32 %v1997, 4294901760
    %1999 = vmatmul.f32.gmra.mxu0 %v1998
    %v2000 = vpop.f32.mrf.mxu0
    %v2001 = vadd.f32 0.0, %v2000
    %v2002 = vand.u32 %v1820, 4294901760
    %v2003 = vsub.f32 %v1820, %v2002
    %v2004 = vand.u32 %v2003, 4294901760
    %v2005 = vsub.f32 %v2003, %v2004
    %v2006 = vand.u32 %v2005, 4294901760
    %2007 = vmatmul.f32.gmra.mxu0 %v2006
    %v2008 = vpop.f32.mrf.mxu0
    %v2009 = vadd.f32 0.0, %v2008
    %v2010 = vand.u32 %v1823, 4294901760
    %v2011 = vsub.f32 %v1823, %v2010
    %v2012 = vand.u32 %v2011, 4294901760
    %v2013 = vsub.f32 %v2011, %v2012
    %v2014 = vand.u32 %v2013, 4294901760
    %2015 = vmatmul.f32.gmra.mxu0 %v2014
    %v2016 = vpop.f32.mrf.mxu0
    %v2017 = vadd.f32 0.0, %v2016
    %v2018 = vand.u32 %v1826, 4294901760
    %v2019 = vsub.f32 %v1826, %v2018
    %v2020 = vand.u32 %v2019, 4294901760
    %v2021 = vsub.f32 %v2019, %v2020
    %v2022 = vand.u32 %v2021, 4294901760
    %2023 = vmatmul.f32.gmra.mxu0 %v2022
    %v2024 = vpop.f32.mrf.mxu0
    %v2025 = vadd.f32 0.0, %v2024
    %v2026 = vand.u32 %v1829, 4294901760
    %v2027 = vsub.f32 %v1829, %v2026
    %v2028 = vand.u32 %v2027, 4294901760
    %v2029 = vsub.f32 %v2027, %v2028
    %v2030 = vand.u32 %v2029, 4294901760
    %2031 = vmatmul.f32.gmra.mxu0 %v2030
    %v2032 = vpop.f32.mrf.mxu0
    %v2033 = vadd.f32 0.0, %v2032
    %v2034 = vand.u32 %v1832, 4294901760
    %v2035 = vsub.f32 %v1832, %v2034
    %v2036 = vand.u32 %v2035, 4294901760
    %v2037 = vsub.f32 %v2035, %v2036
    %v2038 = vand.u32 %v2037, 4294901760
    %2039 = vmatmul.f32.gmra.mxu0 %v2038
    %v2040 = vpop.f32.mrf.mxu0
    %v2041 = vadd.f32 0.0, %v2040
    %v2042 = vand.u32 %v1835, 4294901760
    %v2043 = vsub.f32 %v1835, %v2042
    %v2044 = vand.u32 %v2043, 4294901760
    %v2045 = vsub.f32 %v2043, %v2044
    %v2046 = vand.u32 %v2045, 4294901760
    %2047 = vmatmul.f32.gmra.mxu0 %v2046
    %v2048 = vpop.f32.mrf.mxu0
    %v2049 = vadd.f32 0.0, %v2048
    %v2050 = vand.u32 %v1838, 4294901760
    %v2051 = vsub.f32 %v1838, %v2050
    %v2052 = vand.u32 %v2051, 4294901760
    %v2053 = vsub.f32 %v2051, %v2052
    %v2054 = vand.u32 %v2053, 4294901760
    %2055 = vmatmul.f32.gmra.mxu0 %v2054
    %v2056 = vpop.f32.mrf.mxu0
    %v2057 = vadd.f32 0.0, %v2056
    %v2058 = vand.u32 %v1841, 4294901760
    %v2059 = vsub.f32 %v1841, %v2058
    %v2060 = vand.u32 %v2059, 4294901760
    %v2061 = vsub.f32 %v2059, %v2060
    %v2062 = vand.u32 %v2061, 4294901760
    %2063 = vmatmul.f32.gmra.mxu0 %v2062
    %v2064 = vpop.f32.mrf.mxu0
    %v2065 = vadd.f32 0.0, %v2064
    %v2066 = vand.u32 %v1844, 4294901760
    %v2067 = vsub.f32 %v1844, %v2066
    %v2068 = vand.u32 %v2067, 4294901760
    %v2069 = vsub.f32 %v2067, %v2068
    %v2070 = vand.u32 %v2069, 4294901760
    %2071 = vmatmul.f32.gmra.mxu0 %v2070
    %v2072 = vpop.f32.mrf.mxu0
    %v2073 = vadd.f32 0.0, %v2072
    %v2074 = vand.u32 %v1847, 4294901760
    %v2075 = vsub.f32 %v1847, %v2074
    %v2076 = vand.u32 %v2075, 4294901760
    %v2077 = vsub.f32 %v2075, %v2076
    %v2078 = vand.u32 %v2077, 4294901760
    %2079 = vmatmul.f32.gmra.mxu0 %v2078
    %v2080 = vpop.f32.mrf.mxu0
    %v2081 = vadd.f32 0.0, %v2080
    %v2082 = vand.u32 %v1850, 4294901760
    %v2083 = vsub.f32 %v1850, %v2082
    %v2084 = vand.u32 %v2083, 4294901760
    %v2085 = vsub.f32 %v2083, %v2084
    %v2086 = vand.u32 %v2085, 4294901760
    %2087 = vmatmul.f32.gmra.mxu0 %v2086
    %v2088 = vpop.f32.mrf.mxu0
    %v2089 = vadd.f32 0.0, %v2088
    %v2090 = vand.u32 %v1853, 4294901760
    %v2091 = vsub.f32 %v1853, %v2090
    %v2092 = vand.u32 %v2091, 4294901760
    %v2093 = vsub.f32 %v2091, %v2092
    %v2094 = vand.u32 %v2093, 4294901760
    %2095 = vmatmul.f32.gmra.mxu0 %v2094
    %v2096 = vpop.f32.mrf.mxu0
    %v2097 = vadd.f32 0.0, %v2096
    %v2098 = vand.u32 %v1856, 4294901760
    %v2099 = vsub.f32 %v1856, %v2098
    %v2100 = vand.u32 %v2099, 4294901760
    %v2101 = vsub.f32 %v2099, %v2100
    %v2102 = vand.u32 %v2101, 4294901760
    %2103 = vmatmul.f32.gmra.mxu0 %v2102
    %v2104 = vpop.f32.mrf.mxu0
    %v2105 = vadd.f32 0.0, %v2104
    %v2106 = vand.u32 %v1859, 4294901760
    %v2107 = vsub.f32 %v1859, %v2106
    %v2108 = vand.u32 %v2107, 4294901760
    %v2109 = vsub.f32 %v2107, %v2108
    %v2110 = vand.u32 %v2109, 4294901760
    %2111 = vmatmul.f32.gmra.mxu0 %v2110
    %v2112 = vpop.f32.mrf.mxu0
    %v2113 = vadd.f32 0.0, %v2112
    %v2114 = vand.u32 %v1862, 4294901760
    %v2115 = vsub.f32 %v1862, %v2114
    %v2116 = vand.u32 %v2115, 4294901760
    %v2117 = vsub.f32 %v2115, %v2116
    %v2118 = vand.u32 %v2117, 4294901760
    %2119 = vmatmul.f32.gmra.mxu0 %v2118
    %v2120 = vpop.f32.mrf.mxu0
    %v2121 = vadd.f32 0.0, %v2120
    %v2122 = vand.u32 %v1865, 4294901760
    %v2123 = vsub.f32 %v1865, %v2122
    %v2124 = vand.u32 %v2123, 4294901760
    %v2125 = vsub.f32 %v2123, %v2124
    %v2126 = vand.u32 %v2125, 4294901760
    %2127 = vmatmul.f32.gmra.mxu0 %v2126
    %v2128 = vpop.f32.mrf.mxu0
    %v2129 = vadd.f32 0.0, %v2128
    %v2130 = vand.u32 %v1868, 4294901760
    %v2131 = vsub.f32 %v1868, %v2130
    %v2132 = vand.u32 %v2131, 4294901760
    %v2133 = vsub.f32 %v2131, %v2132
    %v2134 = vand.u32 %v2133, 4294901760
    %2135 = vmatmul.f32.gmra.mxu0 %v2134
    %v2136 = vpop.f32.mrf.mxu0
    %v2137 = vadd.f32 0.0, %v2136
    %v2138 = vand.u32 %v1871, 4294901760
    %v2139 = vsub.f32 %v1871, %v2138
    %v2140 = vand.u32 %v2139, 4294901760
    %v2141 = vsub.f32 %v2139, %v2140
    %v2142 = vand.u32 %v2141, 4294901760
    %2143 = vmatmul.f32.gmra.mxu0 %v2142
    %v2144 = vpop.f32.mrf.mxu0
    %v2145 = vadd.f32 0.0, %v2144
    %v2146 = vand.u32 %v1874, 4294901760
    %v2147 = vsub.f32 %v1874, %v2146
    %v2148 = vand.u32 %v2147, 4294901760
    %v2149 = vsub.f32 %v2147, %v2148
    %v2150 = vand.u32 %v2149, 4294901760
    %2151 = vmatmul.f32.gmra.mxu0 %v2150
    %v2152 = vpop.f32.mrf.mxu0
    %v2153 = vadd.f32 0.0, %v2152
    %2154 = vdwg.mxu0
    %2155 = vmatpush.msra.mxu0 0.0
    %2156 = vmatpush.msra.mxu0 0.0
    %2157 = vmatpush.msra.mxu0 0.0
    %2158 = vmatpush.msra.mxu0 0.0
    %2159 = vmatpush.msra.mxu0 0.0
    %2160 = vmatpush.msra.mxu0 0.0
    %2161 = vmatpush.msra.mxu0 0.0
    %2162 = vmatpush.msra.mxu0 0.0
    %2163 = vmatpush.msra.mxu0 0.0
    %2164 = vmatpush.msra.mxu0 0.0
    %v2165 = vand.u32 %v1779, 4294901760
    %v2166 = vsub.f32 %v1779, %v2165
    %v2167 = vand.u32 %v2166, 4294901760
    %v2168 = vsub.f32 %v2166, %v2167
    %v2169 = vand.u32 %v2168, 4294901760
    %2170 = vmatpush.msra.mxu0 %v2169
    %v2171 = vand.u32 %v1778, 4294901760
    %v2172 = vsub.f32 %v1778, %v2171
    %v2173 = vand.u32 %v2172, 4294901760
    %v2174 = vsub.f32 %v2172, %v2173
    %v2175 = vand.u32 %v2174, 4294901760
    %2176 = vmatpush.msra.mxu0 %v2175
    %v2177 = vand.u32 %v1777, 4294901760
    %v2178 = vsub.f32 %v1777, %v2177
    %v2179 = vand.u32 %v2178, 4294901760
    %v2180 = vsub.f32 %v2178, %v2179
    %v2181 = vand.u32 %v2180, 4294901760
    %2182 = vmatpush.msra.mxu0 %v2181
    %v2183 = vand.u32 %v1776, 4294901760
    %v2184 = vsub.f32 %v1776, %v2183
    %v2185 = vand.u32 %v2184, 4294901760
    %v2186 = vsub.f32 %v2184, %v2185
    %v2187 = vand.u32 %v2186, 4294901760
    %2188 = vmatpush.msra.mxu0 %v2187
    %v2189 = vand.u32 %v1775, 4294901760
    %v2190 = vsub.f32 %v1775, %v2189
    %v2191 = vand.u32 %v2190, 4294901760
    %v2192 = vsub.f32 %v2190, %v2191
    %v2193 = vand.u32 %v2192, 4294901760
    %2194 = vmatpush.msra.mxu0 %v2193
    %v2195 = vand.u32 %v1774, 4294901760
    %v2196 = vsub.f32 %v1774, %v2195
    %v2197 = vand.u32 %v2196, 4294901760
    %v2198 = vsub.f32 %v2196, %v2197
    %v2199 = vand.u32 %v2198, 4294901760
    %2200 = vmatpush.msra.mxu0 %v2199
    %v2201 = vand.u32 %v1781, 4294901760
    %2202 = vmatmul.f32.gmra.mxu0 %v2201
    %v2203 = vpop.f32.mrf.mxu0
    %v2204 = vadd.f32 %v1905, %v2203
    %v2205 = vand.u32 %v1784, 4294901760
    %2206 = vmatmul.f32.gmra.mxu0 %v2205
    %v2207 = vpop.f32.mrf.mxu0
    %v2208 = vadd.f32 %v1913, %v2207
    %v2209 = vand.u32 %v1787, 4294901760
    %2210 = vmatmul.f32.gmra.mxu0 %v2209
    %v2211 = vpop.f32.mrf.mxu0
    %v2212 = vadd.f32 %v1921, %v2211
    %v2213 = vand.u32 %v1790, 4294901760
    %2214 = vmatmul.f32.gmra.mxu0 %v2213
    %v2215 = vpop.f32.mrf.mxu0
    %v2216 = vadd.f32 %v1929, %v2215
    %v2217 = vand.u32 %v1793, 4294901760
    %2218 = vmatmul.f32.gmra.mxu0 %v2217
    %v2219 = vpop.f32.mrf.mxu0
    %v2220 = vadd.f32 %v1937, %v2219
    %v2221 = vand.u32 %v1796, 4294901760
    %2222 = vmatmul.f32.gmra.mxu0 %v2221
    %v2223 = vpop.f32.mrf.mxu0
    %v2224 = vadd.f32 %v1945, %v2223
    %v2225 = vand.u32 %v1799, 4294901760
    %2226 = vmatmul.f32.gmra.mxu0 %v2225
    %v2227 = vpop.f32.mrf.mxu0
    %v2228 = vadd.f32 %v1953, %v2227
    %v2229 = vand.u32 %v1802, 4294901760
    %2230 = vmatmul.f32.gmra.mxu0 %v2229
    %v2231 = vpop.f32.mrf.mxu0
    %v2232 = vadd.f32 %v1961, %v2231
    %v2233 = vand.u32 %v1805, 4294901760
    %2234 = vmatmul.f32.gmra.mxu0 %v2233
    %v2235 = vpop.f32.mrf.mxu0
    %v2236 = vadd.f32 %v1969, %v2235
    %v2237 = vand.u32 %v1808, 4294901760
    %2238 = vmatmul.f32.gmra.mxu0 %v2237
    %v2239 = vpop.f32.mrf.mxu0
    %v2240 = vadd.f32 %v1977, %v2239
    %v2241 = vand.u32 %v1811, 4294901760
    %2242 = vmatmul.f32.gmra.mxu0 %v2241
    %v2243 = vpop.f32.mrf.mxu0
    %v2244 = vadd.f32 %v1985, %v2243
    %v2245 = vand.u32 %v1814, 4294901760
    %2246 = vmatmul.f32.gmra.mxu0 %v2245
    %v2247 = vpop.f32.mrf.mxu0
    %v2248 = vadd.f32 %v1993, %v2247
    %v2249 = vand.u32 %v1817, 4294901760
    %2250 = vmatmul.f32.gmra.mxu0 %v2249
    %v2251 = vpop.f32.mrf.mxu0
    %v2252 = vadd.f32 %v2001, %v2251
    %v2253 = vand.u32 %v1820, 4294901760
    %2254 = vmatmul.f32.gmra.mxu0 %v2253
    %v2255 = vpop.f32.mrf.mxu0
    %v2256 = vadd.f32 %v2009, %v2255
    %v2257 = vand.u32 %v1823, 4294901760
    %2258 = vmatmul.f32.gmra.mxu0 %v2257
    %v2259 = vpop.f32.mrf.mxu0
    %v2260 = vadd.f32 %v2017, %v2259
    %v2261 = vand.u32 %v1826, 4294901760
    %2262 = vmatmul.f32.gmra.mxu0 %v2261
    %v2263 = vpop.f32.mrf.mxu0
    %v2264 = vadd.f32 %v2025, %v2263
    %v2265 = vand.u32 %v1829, 4294901760
    %2266 = vmatmul.f32.gmra.mxu0 %v2265
    %v2267 = vpop.f32.mrf.mxu0
    %v2268 = vadd.f32 %v2033, %v2267
    %v2269 = vand.u32 %v1832, 4294901760
    %2270 = vmatmul.f32.gmra.mxu0 %v2269
    %v2271 = vpop.f32.mrf.mxu0
    %v2272 = vadd.f32 %v2041, %v2271
    %v2273 = vand.u32 %v1835, 4294901760
    %2274 = vmatmul.f32.gmra.mxu0 %v2273
    %v2275 = vpop.f32.mrf.mxu0
    %v2276 = vadd.f32 %v2049, %v2275
    %v2277 = vand.u32 %v1838, 4294901760
    %2278 = vmatmul.f32.gmra.mxu0 %v2277
    %v2279 = vpop.f32.mrf.mxu0
    %v2280 = vadd.f32 %v2057, %v2279
    %v2281 = vand.u32 %v1841, 4294901760
    %2282 = vmatmul.f32.gmra.mxu0 %v2281
    %v2283 = vpop.f32.mrf.mxu0
    %v2284 = vadd.f32 %v2065, %v2283
    %v2285 = vand.u32 %v1844, 4294901760
    %2286 = vmatmul.f32.gmra.mxu0 %v2285
    %v2287 = vpop.f32.mrf.mxu0
    %v2288 = vadd.f32 %v2073, %v2287
    %v2289 = vand.u32 %v1847, 4294901760
    %2290 = vmatmul.f32.gmra.mxu0 %v2289
    %v2291 = vpop.f32.mrf.mxu0
    %v2292 = vadd.f32 %v2081, %v2291
    %v2293 = vand.u32 %v1850, 4294901760
    %2294 = vmatmul.f32.gmra.mxu0 %v2293
    %v2295 = vpop.f32.mrf.mxu0
    %v2296 = vadd.f32 %v2089, %v2295
    %v2297 = vand.u32 %v1853, 4294901760
    %2298 = vmatmul.f32.gmra.mxu0 %v2297
    %v2299 = vpop.f32.mrf.mxu0
    %v2300 = vadd.f32 %v2097, %v2299
    %v2301 = vand.u32 %v1856, 4294901760
    %2302 = vmatmul.f32.gmra.mxu0 %v2301
    %v2303 = vpop.f32.mrf.mxu0
    %v2304 = vadd.f32 %v2105, %v2303
    %v2305 = vand.u32 %v1859, 4294901760
    %2306 = vmatmul.f32.gmra.mxu0 %v2305
    %v2307 = vpop.f32.mrf.mxu0
    %v2308 = vadd.f32 %v2113, %v2307
    %v2309 = vand.u32 %v1862, 4294901760
    %2310 = vmatmul.f32.gmra.mxu0 %v2309
    %v2311 = vpop.f32.mrf.mxu0
    %v2312 = vadd.f32 %v2121, %v2311
    %v2313 = vand.u32 %v1865, 4294901760
    %2314 = vmatmul.f32.gmra.mxu0 %v2313
    %v2315 = vpop.f32.mrf.mxu0
    %v2316 = vadd.f32 %v2129, %v2315
    %v2317 = vand.u32 %v1868, 4294901760
    %2318 = vmatmul.f32.gmra.mxu0 %v2317
    %v2319 = vpop.f32.mrf.mxu0
    %v2320 = vadd.f32 %v2137, %v2319
    %v2321 = vand.u32 %v1871, 4294901760
    %2322 = vmatmul.f32.gmra.mxu0 %v2321
    %v2323 = vpop.f32.mrf.mxu0
    %v2324 = vadd.f32 %v2145, %v2323
    %v2325 = vand.u32 %v1874, 4294901760
    %2326 = vmatmul.f32.gmra.mxu0 %v2325
    %v2327 = vpop.f32.mrf.mxu0
    %v2328 = vadd.f32 %v2153, %v2327
    %2329 = vdwg.mxu0
    %2330 = vmatpush.msra.mxu0 0.0
    %2331 = vmatpush.msra.mxu0 0.0
    %2332 = vmatpush.msra.mxu0 0.0
    %2333 = vmatpush.msra.mxu0 0.0
    %2334 = vmatpush.msra.mxu0 0.0
    %2335 = vmatpush.msra.mxu0 0.0
    %2336 = vmatpush.msra.mxu0 0.0
    %2337 = vmatpush.msra.mxu0 0.0
    %2338 = vmatpush.msra.mxu0 0.0
    %2339 = vmatpush.msra.mxu0 0.0
    %v2340 = vand.u32 %v1779, 4294901760
    %v2341 = vsub.f32 %v1779, %v2340
    %2342 = vmatpush.msra.mxu0 %v2341
    %v2343 = vand.u32 %v1778, 4294901760
    %v2344 = vsub.f32 %v1778, %v2343
    %2345 = vmatpush.msra.mxu0 %v2344
    %v2346 = vand.u32 %v1777, 4294901760
    %v2347 = vsub.f32 %v1777, %v2346
    %2348 = vmatpush.msra.mxu0 %v2347
    %v2349 = vand.u32 %v1776, 4294901760
    %v2350 = vsub.f32 %v1776, %v2349
    %2351 = vmatpush.msra.mxu0 %v2350
    %v2352 = vand.u32 %v1775, 4294901760
    %v2353 = vsub.f32 %v1775, %v2352
    %2354 = vmatpush.msra.mxu0 %v2353
    %v2355 = vand.u32 %v1774, 4294901760
    %v2356 = vsub.f32 %v1774, %v2355
    %2357 = vmatpush.msra.mxu0 %v2356
    %v2358 = vand.u32 %v1781, 4294901760
    %v2359 = vsub.f32 %v1781, %v2358
    %2360 = vmatmul.f32.gmra.mxu0 %v2359
    %v2361 = vpop.f32.mrf.mxu0
    %v2362 = vadd.f32 %v2204, %v2361
    %v2363 = vand.u32 %v1784, 4294901760
    %v2364 = vsub.f32 %v1784, %v2363
    %2365 = vmatmul.f32.gmra.mxu0 %v2364
    %v2366 = vpop.f32.mrf.mxu0
    %v2367 = vadd.f32 %v2208, %v2366
    %v2368 = vand.u32 %v1787, 4294901760
    %v2369 = vsub.f32 %v1787, %v2368
    %2370 = vmatmul.f32.gmra.mxu0 %v2369
    %v2371 = vpop.f32.mrf.mxu0
    %v2372 = vadd.f32 %v2212, %v2371
    %v2373 = vand.u32 %v1790, 4294901760
    %v2374 = vsub.f32 %v1790, %v2373
    %2375 = vmatmul.f32.gmra.mxu0 %v2374
    %v2376 = vpop.f32.mrf.mxu0
    %v2377 = vadd.f32 %v2216, %v2376
    %v2378 = vand.u32 %v1793, 4294901760
    %v2379 = vsub.f32 %v1793, %v2378
    %2380 = vmatmul.f32.gmra.mxu0 %v2379
    %v2381 = vpop.f32.mrf.mxu0
    %v2382 = vadd.f32 %v2220, %v2381
    %v2383 = vand.u32 %v1796, 4294901760
    %v2384 = vsub.f32 %v1796, %v2383
    %2385 = vmatmul.f32.gmra.mxu0 %v2384
    %v2386 = vpop.f32.mrf.mxu0
    %v2387 = vadd.f32 %v2224, %v2386
    %v2388 = vand.u32 %v1799, 4294901760
    %v2389 = vsub.f32 %v1799, %v2388
    %2390 = vmatmul.f32.gmra.mxu0 %v2389
    %v2391 = vpop.f32.mrf.mxu0
    %v2392 = vadd.f32 %v2228, %v2391
    %v2393 = vand.u32 %v1802, 4294901760
    %v2394 = vsub.f32 %v1802, %v2393
    %2395 = vmatmul.f32.gmra.mxu0 %v2394
    %v2396 = vpop.f32.mrf.mxu0
    %v2397 = vadd.f32 %v2232, %v2396
    %v2398 = vand.u32 %v1805, 4294901760
    %v2399 = vsub.f32 %v1805, %v2398
    %2400 = vmatmul.f32.gmra.mxu0 %v2399
    %v2401 = vpop.f32.mrf.mxu0
    %v2402 = vadd.f32 %v2236, %v2401
    %v2403 = vand.u32 %v1808, 4294901760
    %v2404 = vsub.f32 %v1808, %v2403
    %2405 = vmatmul.f32.gmra.mxu0 %v2404
    %v2406 = vpop.f32.mrf.mxu0
    %v2407 = vadd.f32 %v2240, %v2406
    %v2408 = vand.u32 %v1811, 4294901760
    %v2409 = vsub.f32 %v1811, %v2408
    %2410 = vmatmul.f32.gmra.mxu0 %v2409
    %v2411 = vpop.f32.mrf.mxu0
    %v2412 = vadd.f32 %v2244, %v2411
    %v2413 = vand.u32 %v1814, 4294901760
    %v2414 = vsub.f32 %v1814, %v2413
    %2415 = vmatmul.f32.gmra.mxu0 %v2414
    %v2416 = vpop.f32.mrf.mxu0
    %v2417 = vadd.f32 %v2248, %v2416
    %v2418 = vand.u32 %v1817, 4294901760
    %v2419 = vsub.f32 %v1817, %v2418
    %2420 = vmatmul.f32.gmra.mxu0 %v2419
    %v2421 = vpop.f32.mrf.mxu0
    %v2422 = vadd.f32 %v2252, %v2421
    %v2423 = vand.u32 %v1820, 4294901760
    %v2424 = vsub.f32 %v1820, %v2423
    %2425 = vmatmul.f32.gmra.mxu0 %v2424
    %v2426 = vpop.f32.mrf.mxu0
    %v2427 = vadd.f32 %v2256, %v2426
    %v2428 = vand.u32 %v1823, 4294901760
    %v2429 = vsub.f32 %v1823, %v2428
    %2430 = vmatmul.f32.gmra.mxu0 %v2429
    %v2431 = vpop.f32.mrf.mxu0
    %v2432 = vadd.f32 %v2260, %v2431
    %v2433 = vand.u32 %v1826, 4294901760
    %v2434 = vsub.f32 %v1826, %v2433
    %2435 = vmatmul.f32.gmra.mxu0 %v2434
    %v2436 = vpop.f32.mrf.mxu0
    %v2437 = vadd.f32 %v2264, %v2436
    %v2438 = vand.u32 %v1829, 4294901760
    %v2439 = vsub.f32 %v1829, %v2438
    %2440 = vmatmul.f32.gmra.mxu0 %v2439
    %v2441 = vpop.f32.mrf.mxu0
    %v2442 = vadd.f32 %v2268, %v2441
    %v2443 = vand.u32 %v1832, 4294901760
    %v2444 = vsub.f32 %v1832, %v2443
    %2445 = vmatmul.f32.gmra.mxu0 %v2444
    %v2446 = vpop.f32.mrf.mxu0
    %v2447 = vadd.f32 %v2272, %v2446
    %v2448 = vand.u32 %v1835, 4294901760
    %v2449 = vsub.f32 %v1835, %v2448
    %2450 = vmatmul.f32.gmra.mxu0 %v2449
    %v2451 = vpop.f32.mrf.mxu0
    %v2452 = vadd.f32 %v2276, %v2451
    %v2453 = vand.u32 %v1838, 4294901760
    %v2454 = vsub.f32 %v1838, %v2453
    %2455 = vmatmul.f32.gmra.mxu0 %v2454
    %v2456 = vpop.f32.mrf.mxu0
    %v2457 = vadd.f32 %v2280, %v2456
    %v2458 = vand.u32 %v1841, 4294901760
    %v2459 = vsub.f32 %v1841, %v2458
    %2460 = vmatmul.f32.gmra.mxu0 %v2459
    %v2461 = vpop.f32.mrf.mxu0
    %v2462 = vadd.f32 %v2284, %v2461
    %v2463 = vand.u32 %v1844, 4294901760
    %v2464 = vsub.f32 %v1844, %v2463
    %2465 = vmatmul.f32.gmra.mxu0 %v2464
    %v2466 = vpop.f32.mrf.mxu0
    %v2467 = vadd.f32 %v2288, %v2466
    %v2468 = vand.u32 %v1847, 4294901760
    %v2469 = vsub.f32 %v1847, %v2468
    %2470 = vmatmul.f32.gmra.mxu0 %v2469
    %v2471 = vpop.f32.mrf.mxu0
    %v2472 = vadd.f32 %v2292, %v2471
    %v2473 = vand.u32 %v1850, 4294901760
    %v2474 = vsub.f32 %v1850, %v2473
    %2475 = vmatmul.f32.gmra.mxu0 %v2474
    %v2476 = vpop.f32.mrf.mxu0
    %v2477 = vadd.f32 %v2296, %v2476
    %v2478 = vand.u32 %v1853, 4294901760
    %v2479 = vsub.f32 %v1853, %v2478
    %2480 = vmatmul.f32.gmra.mxu0 %v2479
    %v2481 = vpop.f32.mrf.mxu0
    %v2482 = vadd.f32 %v2300, %v2481
    %v2483 = vand.u32 %v1856, 4294901760
    %v2484 = vsub.f32 %v1856, %v2483
    %2485 = vmatmul.f32.gmra.mxu0 %v2484
    %v2486 = vpop.f32.mrf.mxu0
    %v2487 = vadd.f32 %v2304, %v2486
    %v2488 = vand.u32 %v1859, 4294901760
    %v2489 = vsub.f32 %v1859, %v2488
    %2490 = vmatmul.f32.gmra.mxu0 %v2489
    %v2491 = vpop.f32.mrf.mxu0
    %v2492 = vadd.f32 %v2308, %v2491
    %v2493 = vand.u32 %v1862, 4294901760
    %v2494 = vsub.f32 %v1862, %v2493
    %2495 = vmatmul.f32.gmra.mxu0 %v2494
    %v2496 = vpop.f32.mrf.mxu0
    %v2497 = vadd.f32 %v2312, %v2496
    %v2498 = vand.u32 %v1865, 4294901760
    %v2499 = vsub.f32 %v1865, %v2498
    %2500 = vmatmul.f32.gmra.mxu0 %v2499
    %v2501 = vpop.f32.mrf.mxu0
    %v2502 = vadd.f32 %v2316, %v2501
    %v2503 = vand.u32 %v1868, 4294901760
    %v2504 = vsub.f32 %v1868, %v2503
    %2505 = vmatmul.f32.gmra.mxu0 %v2504
    %v2506 = vpop.f32.mrf.mxu0
    %v2507 = vadd.f32 %v2320, %v2506
    %v2508 = vand.u32 %v1871, 4294901760
    %v2509 = vsub.f32 %v1871, %v2508
    %2510 = vmatmul.f32.gmra.mxu0 %v2509
    %v2511 = vpop.f32.mrf.mxu0
    %v2512 = vadd.f32 %v2324, %v2511
    %v2513 = vand.u32 %v1874, 4294901760
    %v2514 = vsub.f32 %v1874, %v2513
    %2515 = vmatmul.f32.gmra.mxu0 %v2514
    %v2516 = vpop.f32.mrf.mxu0
    %v2517 = vadd.f32 %v2328, %v2516
    %2518 = vdwg.mxu0
    %2519 = vmatpush.msra.mxu0 0.0
    %2520 = vmatpush.msra.mxu0 0.0
    %2521 = vmatpush.msra.mxu0 0.0
    %2522 = vmatpush.msra.mxu0 0.0
    %2523 = vmatpush.msra.mxu0 0.0
    %2524 = vmatpush.msra.mxu0 0.0
    %2525 = vmatpush.msra.mxu0 0.0
    %2526 = vmatpush.msra.mxu0 0.0
    %2527 = vmatpush.msra.mxu0 0.0
    %2528 = vmatpush.msra.mxu0 0.0
    %v2529 = vand.u32 %v1779, 4294901760
    %2530 = vmatpush.msra.mxu0 %v2529
    %v2531 = vand.u32 %v1778, 4294901760
    %2532 = vmatpush.msra.mxu0 %v2531
    %v2533 = vand.u32 %v1777, 4294901760
    %2534 = vmatpush.msra.mxu0 %v2533
    %v2535 = vand.u32 %v1776, 4294901760
    %2536 = vmatpush.msra.mxu0 %v2535
    %v2537 = vand.u32 %v1775, 4294901760
    %2538 = vmatpush.msra.mxu0 %v2537
    %v2539 = vand.u32 %v1774, 4294901760
    %2540 = vmatpush.msra.mxu0 %v2539
    %v2541 = vand.u32 %v1781, 4294901760
    %v2542 = vsub.f32 %v1781, %v2541
    %v2543 = vand.u32 %v2542, 4294901760
    %2544 = vmatmul.f32.gmra.mxu0 %v2543
    %v2545 = vpop.f32.mrf.mxu0
    %v2546 = vadd.f32 %v2362, %v2545
    %v2547 = vand.u32 %v1784, 4294901760
    %v2548 = vsub.f32 %v1784, %v2547
    %v2549 = vand.u32 %v2548, 4294901760
    %2550 = vmatmul.f32.gmra.mxu0 %v2549
    %v2551 = vpop.f32.mrf.mxu0
    %v2552 = vadd.f32 %v2367, %v2551
    %v2553 = vand.u32 %v1787, 4294901760
    %v2554 = vsub.f32 %v1787, %v2553
    %v2555 = vand.u32 %v2554, 4294901760
    %2556 = vmatmul.f32.gmra.mxu0 %v2555
    %v2557 = vpop.f32.mrf.mxu0
    %v2558 = vadd.f32 %v2372, %v2557
    %v2559 = vand.u32 %v1790, 4294901760
    %v2560 = vsub.f32 %v1790, %v2559
    %v2561 = vand.u32 %v2560, 4294901760
    %2562 = vmatmul.f32.gmra.mxu0 %v2561
    %v2563 = vpop.f32.mrf.mxu0
    %v2564 = vadd.f32 %v2377, %v2563
    %v2565 = vand.u32 %v1793, 4294901760
    %v2566 = vsub.f32 %v1793, %v2565
    %v2567 = vand.u32 %v2566, 4294901760
    %2568 = vmatmul.f32.gmra.mxu0 %v2567
    %v2569 = vpop.f32.mrf.mxu0
    %v2570 = vadd.f32 %v2382, %v2569
    %v2571 = vand.u32 %v1796, 4294901760
    %v2572 = vsub.f32 %v1796, %v2571
    %v2573 = vand.u32 %v2572, 4294901760
    %2574 = vmatmul.f32.gmra.mxu0 %v2573
    %v2575 = vpop.f32.mrf.mxu0
    %v2576 = vadd.f32 %v2387, %v2575
    %v2577 = vand.u32 %v1799, 4294901760
    %v2578 = vsub.f32 %v1799, %v2577
    %v2579 = vand.u32 %v2578, 4294901760
    %2580 = vmatmul.f32.gmra.mxu0 %v2579
    %v2581 = vpop.f32.mrf.mxu0
    %v2582 = vadd.f32 %v2392, %v2581
    %v2583 = vand.u32 %v1802, 4294901760
    %v2584 = vsub.f32 %v1802, %v2583
    %v2585 = vand.u32 %v2584, 4294901760
    %2586 = vmatmul.f32.gmra.mxu0 %v2585
    %v2587 = vpop.f32.mrf.mxu0
    %v2588 = vadd.f32 %v2397, %v2587
    %v2589 = vand.u32 %v1805, 4294901760
    %v2590 = vsub.f32 %v1805, %v2589
    %v2591 = vand.u32 %v2590, 4294901760
    %2592 = vmatmul.f32.gmra.mxu0 %v2591
    %v2593 = vpop.f32.mrf.mxu0
    %v2594 = vadd.f32 %v2402, %v2593
    %v2595 = vand.u32 %v1808, 4294901760
    %v2596 = vsub.f32 %v1808, %v2595
    %v2597 = vand.u32 %v2596, 4294901760
    %2598 = vmatmul.f32.gmra.mxu0 %v2597
    %v2599 = vpop.f32.mrf.mxu0
    %v2600 = vadd.f32 %v2407, %v2599
    %v2601 = vand.u32 %v1811, 4294901760
    %v2602 = vsub.f32 %v1811, %v2601
    %v2603 = vand.u32 %v2602, 4294901760
    %2604 = vmatmul.f32.gmra.mxu0 %v2603
    %v2605 = vpop.f32.mrf.mxu0
    %v2606 = vadd.f32 %v2412, %v2605
    %v2607 = vand.u32 %v1814, 4294901760
    %v2608 = vsub.f32 %v1814, %v2607
    %v2609 = vand.u32 %v2608, 4294901760
    %2610 = vmatmul.f32.gmra.mxu0 %v2609
    %v2611 = vpop.f32.mrf.mxu0
    %v2612 = vadd.f32 %v2417, %v2611
    %v2613 = vand.u32 %v1817, 4294901760
    %v2614 = vsub.f32 %v1817, %v2613
    %v2615 = vand.u32 %v2614, 4294901760
    %2616 = vmatmul.f32.gmra.mxu0 %v2615
    %v2617 = vpop.f32.mrf.mxu0
    %v2618 = vadd.f32 %v2422, %v2617
    %v2619 = vand.u32 %v1820, 4294901760
    %v2620 = vsub.f32 %v1820, %v2619
    %v2621 = vand.u32 %v2620, 4294901760
    %2622 = vmatmul.f32.gmra.mxu0 %v2621
    %v2623 = vpop.f32.mrf.mxu0
    %v2624 = vadd.f32 %v2427, %v2623
    %v2625 = vand.u32 %v1823, 4294901760
    %v2626 = vsub.f32 %v1823, %v2625
    %v2627 = vand.u32 %v2626, 4294901760
    %2628 = vmatmul.f32.gmra.mxu0 %v2627
    %v2629 = vpop.f32.mrf.mxu0
    %v2630 = vadd.f32 %v2432, %v2629
    %v2631 = vand.u32 %v1826, 4294901760
    %v2632 = vsub.f32 %v1826, %v2631
    %v2633 = vand.u32 %v2632, 4294901760
    %2634 = vmatmul.f32.gmra.mxu0 %v2633
    %v2635 = vpop.f32.mrf.mxu0
    %v2636 = vadd.f32 %v2437, %v2635
    %v2637 = vand.u32 %v1829, 4294901760
    %v2638 = vsub.f32 %v1829, %v2637
    %v2639 = vand.u32 %v2638, 4294901760
    %2640 = vmatmul.f32.gmra.mxu0 %v2639
    %v2641 = vpop.f32.mrf.mxu0
    %v2642 = vadd.f32 %v2442, %v2641
    %v2643 = vand.u32 %v1832, 4294901760
    %v2644 = vsub.f32 %v1832, %v2643
    %v2645 = vand.u32 %v2644, 4294901760
    %2646 = vmatmul.f32.gmra.mxu0 %v2645
    %v2647 = vpop.f32.mrf.mxu0
    %v2648 = vadd.f32 %v2447, %v2647
    %v2649 = vand.u32 %v1835, 4294901760
    %v2650 = vsub.f32 %v1835, %v2649
    %v2651 = vand.u32 %v2650, 4294901760
    %2652 = vmatmul.f32.gmra.mxu0 %v2651
    %v2653 = vpop.f32.mrf.mxu0
    %v2654 = vadd.f32 %v2452, %v2653
    %v2655 = vand.u32 %v1838, 4294901760
    %v2656 = vsub.f32 %v1838, %v2655
    %v2657 = vand.u32 %v2656, 4294901760
    %2658 = vmatmul.f32.gmra.mxu0 %v2657
    %v2659 = vpop.f32.mrf.mxu0
    %v2660 = vadd.f32 %v2457, %v2659
    %v2661 = vand.u32 %v1841, 4294901760
    %v2662 = vsub.f32 %v1841, %v2661
    %v2663 = vand.u32 %v2662, 4294901760
    %2664 = vmatmul.f32.gmra.mxu0 %v2663
    %v2665 = vpop.f32.mrf.mxu0
    %v2666 = vadd.f32 %v2462, %v2665
    %v2667 = vand.u32 %v1844, 4294901760
    %v2668 = vsub.f32 %v1844, %v2667
    %v2669 = vand.u32 %v2668, 4294901760
    %2670 = vmatmul.f32.gmra.mxu0 %v2669
    %v2671 = vpop.f32.mrf.mxu0
    %v2672 = vadd.f32 %v2467, %v2671
    %v2673 = vand.u32 %v1847, 4294901760
    %v2674 = vsub.f32 %v1847, %v2673
    %v2675 = vand.u32 %v2674, 4294901760
    %2676 = vmatmul.f32.gmra.mxu0 %v2675
    %v2677 = vpop.f32.mrf.mxu0
    %v2678 = vadd.f32 %v2472, %v2677
    %v2679 = vand.u32 %v1850, 4294901760
    %v2680 = vsub.f32 %v1850, %v2679
    %v2681 = vand.u32 %v2680, 4294901760
    %2682 = vmatmul.f32.gmra.mxu0 %v2681
    %v2683 = vpop.f32.mrf.mxu0
    %v2684 = vadd.f32 %v2477, %v2683
    %v2685 = vand.u32 %v1853, 4294901760
    %v2686 = vsub.f32 %v1853, %v2685
    %v2687 = vand.u32 %v2686, 4294901760
    %2688 = vmatmul.f32.gmra.mxu0 %v2687
    %v2689 = vpop.f32.mrf.mxu0
    %v2690 = vadd.f32 %v2482, %v2689
    %v2691 = vand.u32 %v1856, 4294901760
    %v2692 = vsub.f32 %v1856, %v2691
    %v2693 = vand.u32 %v2692, 4294901760
    %2694 = vmatmul.f32.gmra.mxu0 %v2693
    %v2695 = vpop.f32.mrf.mxu0
    %v2696 = vadd.f32 %v2487, %v2695
    %v2697 = vand.u32 %v1859, 4294901760
    %v2698 = vsub.f32 %v1859, %v2697
    %v2699 = vand.u32 %v2698, 4294901760
    %2700 = vmatmul.f32.gmra.mxu0 %v2699
    %v2701 = vpop.f32.mrf.mxu0
    %v2702 = vadd.f32 %v2492, %v2701
    %v2703 = vand.u32 %v1862, 4294901760
    %v2704 = vsub.f32 %v1862, %v2703
    %v2705 = vand.u32 %v2704, 4294901760
    %2706 = vmatmul.f32.gmra.mxu0 %v2705
    %v2707 = vpop.f32.mrf.mxu0
    %v2708 = vadd.f32 %v2497, %v2707
    %v2709 = vand.u32 %v1865, 4294901760
    %v2710 = vsub.f32 %v1865, %v2709
    %v2711 = vand.u32 %v2710, 4294901760
    %2712 = vmatmul.f32.gmra.mxu0 %v2711
    %v2713 = vpop.f32.mrf.mxu0
    %v2714 = vadd.f32 %v2502, %v2713
    %v2715 = vand.u32 %v1868, 4294901760
    %v2716 = vsub.f32 %v1868, %v2715
    %v2717 = vand.u32 %v2716, 4294901760
    %2718 = vmatmul.f32.gmra.mxu0 %v2717
    %v2719 = vpop.f32.mrf.mxu0
    %v2720 = vadd.f32 %v2507, %v2719
    %v2721 = vand.u32 %v1871, 4294901760
    %v2722 = vsub.f32 %v1871, %v2721
    %v2723 = vand.u32 %v2722, 4294901760
    %2724 = vmatmul.f32.gmra.mxu0 %v2723
    %v2725 = vpop.f32.mrf.mxu0
    %v2726 = vadd.f32 %v2512, %v2725
    %v2727 = vand.u32 %v1874, 4294901760
    %v2728 = vsub.f32 %v1874, %v2727
    %v2729 = vand.u32 %v2728, 4294901760
    %2730 = vmatmul.f32.gmra.mxu0 %v2729
    %v2731 = vpop.f32.mrf.mxu0
    %v2732 = vadd.f32 %v2517, %v2731
    %2733 = vdwg.mxu0
    %2734 = vmatpush.msra.mxu0 0.0
    %2735 = vmatpush.msra.mxu0 0.0
    %2736 = vmatpush.msra.mxu0 0.0
    %2737 = vmatpush.msra.mxu0 0.0
    %2738 = vmatpush.msra.mxu0 0.0
    %2739 = vmatpush.msra.mxu0 0.0
    %2740 = vmatpush.msra.mxu0 0.0
    %2741 = vmatpush.msra.mxu0 0.0
    %2742 = vmatpush.msra.mxu0 0.0
    %2743 = vmatpush.msra.mxu0 0.0
    %v2744 = vand.u32 %v1779, 4294901760
    %v2745 = vsub.f32 %v1779, %v2744
    %v2746 = vand.u32 %v2745, 4294901760
    %2747 = vmatpush.msra.mxu0 %v2746
    %v2748 = vand.u32 %v1778, 4294901760
    %v2749 = vsub.f32 %v1778, %v2748
    %v2750 = vand.u32 %v2749, 4294901760
    %2751 = vmatpush.msra.mxu0 %v2750
    %v2752 = vand.u32 %v1777, 4294901760
    %v2753 = vsub.f32 %v1777, %v2752
    %v2754 = vand.u32 %v2753, 4294901760
    %2755 = vmatpush.msra.mxu0 %v2754
    %v2756 = vand.u32 %v1776, 4294901760
    %v2757 = vsub.f32 %v1776, %v2756
    %v2758 = vand.u32 %v2757, 4294901760
    %2759 = vmatpush.msra.mxu0 %v2758
    %v2760 = vand.u32 %v1775, 4294901760
    %v2761 = vsub.f32 %v1775, %v2760
    %v2762 = vand.u32 %v2761, 4294901760
    %2763 = vmatpush.msra.mxu0 %v2762
    %v2764 = vand.u32 %v1774, 4294901760
    %v2765 = vsub.f32 %v1774, %v2764
    %v2766 = vand.u32 %v2765, 4294901760
    %2767 = vmatpush.msra.mxu0 %v2766
    %v2768 = vand.u32 %v1781, 4294901760
    %2769 = vmatmul.f32.gmra.mxu0 %v2768
    %v2770 = vpop.f32.mrf.mxu0
    %v2771 = vadd.f32 %v2546, %v2770
    %v2772 = vand.u32 %v1784, 4294901760
    %2773 = vmatmul.f32.gmra.mxu0 %v2772
    %v2774 = vpop.f32.mrf.mxu0
    %v2775 = vadd.f32 %v2552, %v2774
    %v2776 = vand.u32 %v1787, 4294901760
    %2777 = vmatmul.f32.gmra.mxu0 %v2776
    %v2778 = vpop.f32.mrf.mxu0
    %v2779 = vadd.f32 %v2558, %v2778
    %v2780 = vand.u32 %v1790, 4294901760
    %2781 = vmatmul.f32.gmra.mxu0 %v2780
    %v2782 = vpop.f32.mrf.mxu0
    %v2783 = vadd.f32 %v2564, %v2782
    %v2784 = vand.u32 %v1793, 4294901760
    %2785 = vmatmul.f32.gmra.mxu0 %v2784
    %v2786 = vpop.f32.mrf.mxu0
    %v2787 = vadd.f32 %v2570, %v2786
    %v2788 = vand.u32 %v1796, 4294901760
    %2789 = vmatmul.f32.gmra.mxu0 %v2788
    %v2790 = vpop.f32.mrf.mxu0
    %v2791 = vadd.f32 %v2576, %v2790
    %v2792 = vand.u32 %v1799, 4294901760
    %2793 = vmatmul.f32.gmra.mxu0 %v2792
    %v2794 = vpop.f32.mrf.mxu0
    %v2795 = vadd.f32 %v2582, %v2794
    %v2796 = vand.u32 %v1802, 4294901760
    %2797 = vmatmul.f32.gmra.mxu0 %v2796
    %v2798 = vpop.f32.mrf.mxu0
    %v2799 = vadd.f32 %v2588, %v2798
    %v2800 = vand.u32 %v1805, 4294901760
    %2801 = vmatmul.f32.gmra.mxu0 %v2800
    %v2802 = vpop.f32.mrf.mxu0
    %v2803 = vadd.f32 %v2594, %v2802
    %v2804 = vand.u32 %v1808, 4294901760
    %2805 = vmatmul.f32.gmra.mxu0 %v2804
    %v2806 = vpop.f32.mrf.mxu0
    %v2807 = vadd.f32 %v2600, %v2806
    %v2808 = vand.u32 %v1811, 4294901760
    %2809 = vmatmul.f32.gmra.mxu0 %v2808
    %v2810 = vpop.f32.mrf.mxu0
    %v2811 = vadd.f32 %v2606, %v2810
    %v2812 = vand.u32 %v1814, 4294901760
    %2813 = vmatmul.f32.gmra.mxu0 %v2812
    %v2814 = vpop.f32.mrf.mxu0
    %v2815 = vadd.f32 %v2612, %v2814
    %v2816 = vand.u32 %v1817, 4294901760
    %2817 = vmatmul.f32.gmra.mxu0 %v2816
    %v2818 = vpop.f32.mrf.mxu0
    %v2819 = vadd.f32 %v2618, %v2818
    %v2820 = vand.u32 %v1820, 4294901760
    %2821 = vmatmul.f32.gmra.mxu0 %v2820
    %v2822 = vpop.f32.mrf.mxu0
    %v2823 = vadd.f32 %v2624, %v2822
    %v2824 = vand.u32 %v1823, 4294901760
    %2825 = vmatmul.f32.gmra.mxu0 %v2824
    %v2826 = vpop.f32.mrf.mxu0
    %v2827 = vadd.f32 %v2630, %v2826
    %v2828 = vand.u32 %v1826, 4294901760
    %2829 = vmatmul.f32.gmra.mxu0 %v2828
    %v2830 = vpop.f32.mrf.mxu0
    %v2831 = vadd.f32 %v2636, %v2830
    %v2832 = vand.u32 %v1829, 4294901760
    %2833 = vmatmul.f32.gmra.mxu0 %v2832
    %v2834 = vpop.f32.mrf.mxu0
    %v2835 = vadd.f32 %v2642, %v2834
    %v2836 = vand.u32 %v1832, 4294901760
    %2837 = vmatmul.f32.gmra.mxu0 %v2836
    %v2838 = vpop.f32.mrf.mxu0
    %v2839 = vadd.f32 %v2648, %v2838
    %v2840 = vand.u32 %v1835, 4294901760
    %2841 = vmatmul.f32.gmra.mxu0 %v2840
    %v2842 = vpop.f32.mrf.mxu0
    %v2843 = vadd.f32 %v2654, %v2842
    %v2844 = vand.u32 %v1838, 4294901760
    %2845 = vmatmul.f32.gmra.mxu0 %v2844
    %v2846 = vpop.f32.mrf.mxu0
    %v2847 = vadd.f32 %v2660, %v2846
    %v2848 = vand.u32 %v1841, 4294901760
    %2849 = vmatmul.f32.gmra.mxu0 %v2848
    %v2850 = vpop.f32.mrf.mxu0
    %v2851 = vadd.f32 %v2666, %v2850
    %v2852 = vand.u32 %v1844, 4294901760
    %2853 = vmatmul.f32.gmra.mxu0 %v2852
    %v2854 = vpop.f32.mrf.mxu0
    %v2855 = vadd.f32 %v2672, %v2854
    %v2856 = vand.u32 %v1847, 4294901760
    %2857 = vmatmul.f32.gmra.mxu0 %v2856
    %v2858 = vpop.f32.mrf.mxu0
    %v2859 = vadd.f32 %v2678, %v2858
    %v2860 = vand.u32 %v1850, 4294901760
    %2861 = vmatmul.f32.gmra.mxu0 %v2860
    %v2862 = vpop.f32.mrf.mxu0
    %v2863 = vadd.f32 %v2684, %v2862
    %v2864 = vand.u32 %v1853, 4294901760
    %2865 = vmatmul.f32.gmra.mxu0 %v2864
    %v2866 = vpop.f32.mrf.mxu0
    %v2867 = vadd.f32 %v2690, %v2866
    %v2868 = vand.u32 %v1856, 4294901760
    %2869 = vmatmul.f32.gmra.mxu0 %v2868
    %v2870 = vpop.f32.mrf.mxu0
    %v2871 = vadd.f32 %v2696, %v2870
    %v2872 = vand.u32 %v1859, 4294901760
    %2873 = vmatmul.f32.gmra.mxu0 %v2872
    %v2874 = vpop.f32.mrf.mxu0
    %v2875 = vadd.f32 %v2702, %v2874
    %v2876 = vand.u32 %v1862, 4294901760
    %2877 = vmatmul.f32.gmra.mxu0 %v2876
    %v2878 = vpop.f32.mrf.mxu0
    %v2879 = vadd.f32 %v2708, %v2878
    %v2880 = vand.u32 %v1865, 4294901760
    %2881 = vmatmul.f32.gmra.mxu0 %v2880
    %v2882 = vpop.f32.mrf.mxu0
    %v2883 = vadd.f32 %v2714, %v2882
    %v2884 = vand.u32 %v1868, 4294901760
    %2885 = vmatmul.f32.gmra.mxu0 %v2884
    %v2886 = vpop.f32.mrf.mxu0
    %v2887 = vadd.f32 %v2720, %v2886
    %v2888 = vand.u32 %v1871, 4294901760
    %2889 = vmatmul.f32.gmra.mxu0 %v2888
    %v2890 = vpop.f32.mrf.mxu0
    %v2891 = vadd.f32 %v2726, %v2890
    %v2892 = vand.u32 %v1874, 4294901760
    %2893 = vmatmul.f32.gmra.mxu0 %v2892
    %v2894 = vpop.f32.mrf.mxu0
    %v2895 = vadd.f32 %v2732, %v2894
    %2896 = vdwg.mxu0
    %2897 = vmatpush.msra.mxu0 0.0
    %2898 = vmatpush.msra.mxu0 0.0
    %2899 = vmatpush.msra.mxu0 0.0
    %2900 = vmatpush.msra.mxu0 0.0
    %2901 = vmatpush.msra.mxu0 0.0
    %2902 = vmatpush.msra.mxu0 0.0
    %2903 = vmatpush.msra.mxu0 0.0
    %2904 = vmatpush.msra.mxu0 0.0
    %2905 = vmatpush.msra.mxu0 0.0
    %2906 = vmatpush.msra.mxu0 0.0
    %v2907 = vand.u32 %v1779, 4294901760
    %2908 = vmatpush.msra.mxu0 %v2907
    %v2909 = vand.u32 %v1778, 4294901760
    %2910 = vmatpush.msra.mxu0 %v2909
    %v2911 = vand.u32 %v1777, 4294901760
    %2912 = vmatpush.msra.mxu0 %v2911
    %v2913 = vand.u32 %v1776, 4294901760
    %2914 = vmatpush.msra.mxu0 %v2913
    %v2915 = vand.u32 %v1775, 4294901760
    %2916 = vmatpush.msra.mxu0 %v2915
    %v2917 = vand.u32 %v1774, 4294901760
    %2918 = vmatpush.msra.mxu0 %v2917
    %v2919 = vand.u32 %v1781, 4294901760
    %2920 = vmatmul.f32.gmra.mxu0 %v2919
    %v2921 = vpop.f32.mrf.mxu0
    %v2922 = vadd.f32 %v2771, %v2921
    %v2923 = vand.u32 %v1784, 4294901760
    %2924 = vmatmul.f32.gmra.mxu0 %v2923
    %v2925 = vpop.f32.mrf.mxu0
    %v2926 = vadd.f32 %v2775, %v2925
    %v2927 = vand.u32 %v1787, 4294901760
    %2928 = vmatmul.f32.gmra.mxu0 %v2927
    %v2929 = vpop.f32.mrf.mxu0
    %v2930 = vadd.f32 %v2779, %v2929
    %v2931 = vand.u32 %v1790, 4294901760
    %2932 = vmatmul.f32.gmra.mxu0 %v2931
    %v2933 = vpop.f32.mrf.mxu0
    %v2934 = vadd.f32 %v2783, %v2933
    %v2935 = vand.u32 %v1793, 4294901760
    %2936 = vmatmul.f32.gmra.mxu0 %v2935
    %v2937 = vpop.f32.mrf.mxu0
    %v2938 = vadd.f32 %v2787, %v2937
    %v2939 = vand.u32 %v1796, 4294901760
    %2940 = vmatmul.f32.gmra.mxu0 %v2939
    %v2941 = vpop.f32.mrf.mxu0
    %v2942 = vadd.f32 %v2791, %v2941
    %v2943 = vand.u32 %v1799, 4294901760
    %2944 = vmatmul.f32.gmra.mxu0 %v2943
    %v2945 = vpop.f32.mrf.mxu0
    %v2946 = vadd.f32 %v2795, %v2945
    %v2947 = vand.u32 %v1802, 4294901760
    %2948 = vmatmul.f32.gmra.mxu0 %v2947
    %v2949 = vpop.f32.mrf.mxu0
    %v2950 = vadd.f32 %v2799, %v2949
    %v2951 = vand.u32 %v1805, 4294901760
    %2952 = vmatmul.f32.gmra.mxu0 %v2951
    %v2953 = vpop.f32.mrf.mxu0
    %v2954 = vadd.f32 %v2803, %v2953
    %v2955 = vand.u32 %v1808, 4294901760
    %2956 = vmatmul.f32.gmra.mxu0 %v2955
    %v2957 = vpop.f32.mrf.mxu0
    %v2958 = vadd.f32 %v2807, %v2957
    %v2959 = vand.u32 %v1811, 4294901760
    %2960 = vmatmul.f32.gmra.mxu0 %v2959
    %v2961 = vpop.f32.mrf.mxu0
    %v2962 = vadd.f32 %v2811, %v2961
    %v2963 = vand.u32 %v1814, 4294901760
    %2964 = vmatmul.f32.gmra.mxu0 %v2963
    %v2965 = vpop.f32.mrf.mxu0
    %v2966 = vadd.f32 %v2815, %v2965
    %v2967 = vand.u32 %v1817, 4294901760
    %2968 = vmatmul.f32.gmra.mxu0 %v2967
    %v2969 = vpop.f32.mrf.mxu0
    %v2970 = vadd.f32 %v2819, %v2969
    %v2971 = vand.u32 %v1820, 4294901760
    %2972 = vmatmul.f32.gmra.mxu0 %v2971
    %v2973 = vpop.f32.mrf.mxu0
    %v2974 = vadd.f32 %v2823, %v2973
    %v2975 = vand.u32 %v1823, 4294901760
    %2976 = vmatmul.f32.gmra.mxu0 %v2975
    %v2977 = vpop.f32.mrf.mxu0
    %v2978 = vadd.f32 %v2827, %v2977
    %v2979 = vand.u32 %v1826, 4294901760
    %2980 = vmatmul.f32.gmra.mxu0 %v2979
    %v2981 = vpop.f32.mrf.mxu0
    %v2982 = vadd.f32 %v2831, %v2981
    %v2983 = vand.u32 %v1829, 4294901760
    %2984 = vmatmul.f32.gmra.mxu0 %v2983
    %v2985 = vpop.f32.mrf.mxu0
    %v2986 = vadd.f32 %v2835, %v2985
    %v2987 = vand.u32 %v1832, 4294901760
    %2988 = vmatmul.f32.gmra.mxu0 %v2987
    %v2989 = vpop.f32.mrf.mxu0
    %v2990 = vadd.f32 %v2839, %v2989
    %v2991 = vand.u32 %v1835, 4294901760
    %2992 = vmatmul.f32.gmra.mxu0 %v2991
    %v2993 = vpop.f32.mrf.mxu0
    %v2994 = vadd.f32 %v2843, %v2993
    %v2995 = vand.u32 %v1838, 4294901760
    %2996 = vmatmul.f32.gmra.mxu0 %v2995
    %v2997 = vpop.f32.mrf.mxu0
    %v2998 = vadd.f32 %v2847, %v2997
    %v2999 = vand.u32 %v1841, 4294901760
    %3000 = vmatmul.f32.gmra.mxu0 %v2999
    %v3001 = vpop.f32.mrf.mxu0
    %v3002 = vadd.f32 %v2851, %v3001
    %v3003 = vand.u32 %v1844, 4294901760
    %3004 = vmatmul.f32.gmra.mxu0 %v3003
    %v3005 = vpop.f32.mrf.mxu0
    %v3006 = vadd.f32 %v2855, %v3005
    %v3007 = vand.u32 %v1847, 4294901760
    %3008 = vmatmul.f32.gmra.mxu0 %v3007
    %v3009 = vpop.f32.mrf.mxu0
    %v3010 = vadd.f32 %v2859, %v3009
    %v3011 = vand.u32 %v1850, 4294901760
    %3012 = vmatmul.f32.gmra.mxu0 %v3011
    %v3013 = vpop.f32.mrf.mxu0
    %v3014 = vadd.f32 %v2863, %v3013
    %v3015 = vand.u32 %v1853, 4294901760
    %3016 = vmatmul.f32.gmra.mxu0 %v3015
    %v3017 = vpop.f32.mrf.mxu0
    %v3018 = vadd.f32 %v2867, %v3017
    %v3019 = vand.u32 %v1856, 4294901760
    %3020 = vmatmul.f32.gmra.mxu0 %v3019
    %v3021 = vpop.f32.mrf.mxu0
    %v3022 = vadd.f32 %v2871, %v3021
    %v3023 = vand.u32 %v1859, 4294901760
    %3024 = vmatmul.f32.gmra.mxu0 %v3023
    %v3025 = vpop.f32.mrf.mxu0
    %v3026 = vadd.f32 %v2875, %v3025
    %v3027 = vand.u32 %v1862, 4294901760
    %3028 = vmatmul.f32.gmra.mxu0 %v3027
    %v3029 = vpop.f32.mrf.mxu0
    %v3030 = vadd.f32 %v2879, %v3029
    %v3031 = vand.u32 %v1865, 4294901760
    %3032 = vmatmul.f32.gmra.mxu0 %v3031
    %v3033 = vpop.f32.mrf.mxu0
    %v3034 = vadd.f32 %v2883, %v3033
    %v3035 = vand.u32 %v1868, 4294901760
    %3036 = vmatmul.f32.gmra.mxu0 %v3035
    %v3037 = vpop.f32.mrf.mxu0
    %v3038 = vadd.f32 %v2887, %v3037
    %v3039 = vand.u32 %v1871, 4294901760
    %3040 = vmatmul.f32.gmra.mxu0 %v3039
    %v3041 = vpop.f32.mrf.mxu0
    %v3042 = vadd.f32 %v2891, %v3041
    %v3043 = vand.u32 %v1874, 4294901760
    %3044 = vmatmul.f32.gmra.mxu0 %v3043
    %v3045 = vpop.f32.mrf.mxu0
    %v3046 = vadd.f32 %v2895, %v3045
    %3047 = vdwg.mxu0
    %v3048 = vadd.s32 %v38, 8
    %vm3049 = vcmp.lt.s32.totalorder %v38, 10
    %vm3050 = vcmp.lt.s32.totalorder %v3048, 10
    %v3051 = vsel %vm3049, %v2922, -1e+30
    %v3052 = vsel %vm3050, %v2926, -1e+30
    %v3053 = vsel %vm3049, %v2930, -1e+30
    %v3054 = vsel %vm3050, %v2934, -1e+30
    %v3055 = vsel %vm3049, %v2938, -1e+30
    %v3056 = vsel %vm3050, %v2942, -1e+30
    %v3057 = vsel %vm3049, %v2946, -1e+30
    %v3058 = vsel %vm3050, %v2950, -1e+30
    %v3059 = vsel %vm3049, %v2954, -1e+30
    %v3060 = vsel %vm3050, %v2958, -1e+30
    %v3061 = vsel %vm3049, %v2962, -1e+30
    %v3062 = vsel %vm3050, %v2966, -1e+30
    %v3063 = vsel %vm3049, %v2970, -1e+30
    %v3064 = vsel %vm3050, %v2974, -1e+30
    %v3065 = vsel %vm3049, %v2978, -1e+30
    %v3066 = vsel %vm3050, %v2982, -1e+30
    %v3067 = vsel %vm3049, %v2986, -1e+30
    %v3068 = vsel %vm3050, %v2990, -1e+30
    %v3069 = vsel %vm3049, %v2994, -1e+30
    %v3070 = vsel %vm3050, %v2998, -1e+30
    %v3071 = vsel %vm3049, %v3002, -1e+30
    %v3072 = vsel %vm3050, %v3006, -1e+30
    %v3073 = vsel %vm3049, %v3010, -1e+30
    %v3074 = vsel %vm3050, %v3014, -1e+30
    %v3075 = vsel %vm3049, %v3018, -1e+30
    %v3076 = vsel %vm3050, %v3022, -1e+30
    %v3077 = vsel %vm3049, %v3026, -1e+30
    %v3078 = vsel %vm3050, %v3030, -1e+30
    %v3079 = vsel %vm3049, %v3034, -1e+30
    %v3080 = vsel %vm3050, %v3038, -1e+30
    %v3081 = vsel %vm3049, %v3042, -1e+30
    %v3082 = vsel %vm3050, %v3046, -1e+30
    %vm3083 = vcmask 261120
    %v3084 = vsel %vm3083, %v3051, -inf
    %v3085 = vsel %vm3083, %v3052, -inf
    %v3086 = vmax.f32 %v3084, %v3085
    %v3087 = vrot.slane %v3086, 4
    %v3088 = vmax.f32 %v3086, %v3087
    %v3089 = vrot.slane %v3088, 2
    %v3090 = vmax.f32 %v3088, %v3089
    %v3091 = vrot.slane %v3090, 1
    %v3092 = vmax.f32 %v3090, %v3091
    %v3093 = vsel %vm3083, %v3053, -inf
    %v3094 = vsel %vm3083, %v3054, -inf
    %v3095 = vmax.f32 %v3093, %v3094
    %v3096 = vrot.slane %v3095, 4
    %v3097 = vmax.f32 %v3095, %v3096
    %v3098 = vrot.slane %v3097, 2
    %v3099 = vmax.f32 %v3097, %v3098
    %v3100 = vrot.slane %v3099, 1
    %v3101 = vmax.f32 %v3099, %v3100
    %v3102 = vsel %vm3083, %v3055, -inf
    %v3103 = vsel %vm3083, %v3056, -inf
    %v3104 = vmax.f32 %v3102, %v3103
    %v3105 = vrot.slane %v3104, 4
    %v3106 = vmax.f32 %v3104, %v3105
    %v3107 = vrot.slane %v3106, 2
    %v3108 = vmax.f32 %v3106, %v3107
    %v3109 = vrot.slane %v3108, 1
    %v3110 = vmax.f32 %v3108, %v3109
    %v3111 = vsel %vm3083, %v3057, -inf
    %v3112 = vsel %vm3083, %v3058, -inf
    %v3113 = vmax.f32 %v3111, %v3112
    %v3114 = vrot.slane %v3113, 4
    %v3115 = vmax.f32 %v3113, %v3114
    %v3116 = vrot.slane %v3115, 2
    %v3117 = vmax.f32 %v3115, %v3116
    %v3118 = vrot.slane %v3117, 1
    %v3119 = vmax.f32 %v3117, %v3118
    %v3120 = vsel %vm3083, %v3059, -inf
    %v3121 = vsel %vm3083, %v3060, -inf
    %v3122 = vmax.f32 %v3120, %v3121
    %v3123 = vrot.slane %v3122, 4
    %v3124 = vmax.f32 %v3122, %v3123
    %v3125 = vrot.slane %v3124, 2
    %v3126 = vmax.f32 %v3124, %v3125
    %v3127 = vrot.slane %v3126, 1
    %v3128 = vmax.f32 %v3126, %v3127
    %v3129 = vsel %vm3083, %v3061, -inf
    %v3130 = vsel %vm3083, %v3062, -inf
    %v3131 = vmax.f32 %v3129, %v3130
    %v3132 = vrot.slane %v3131, 4
    %v3133 = vmax.f32 %v3131, %v3132
    %v3134 = vrot.slane %v3133, 2
    %v3135 = vmax.f32 %v3133, %v3134
    %v3136 = vrot.slane %v3135, 1
    %v3137 = vmax.f32 %v3135, %v3136
    %v3138 = vsel %vm3083, %v3063, -inf
    %v3139 = vsel %vm3083, %v3064, -inf
    %v3140 = vmax.f32 %v3138, %v3139
    %v3141 = vrot.slane %v3140, 4
    %v3142 = vmax.f32 %v3140, %v3141
    %v3143 = vrot.slane %v3142, 2
    %v3144 = vmax.f32 %v3142, %v3143
    %v3145 = vrot.slane %v3144, 1
    %v3146 = vmax.f32 %v3144, %v3145
    %v3147 = vsel %vm3083, %v3065, -inf
    %v3148 = vsel %vm3083, %v3066, -inf
    %v3149 = vmax.f32 %v3147, %v3148
    %v3150 = vrot.slane %v3149, 4
    %v3151 = vmax.f32 %v3149, %v3150
    %v3152 = vrot.slane %v3151, 2
    %v3153 = vmax.f32 %v3151, %v3152
    %v3154 = vrot.slane %v3153, 1
    %v3155 = vmax.f32 %v3153, %v3154
    %v3156 = vsel %vm3083, %v3067, -inf
    %v3157 = vsel %vm3083, %v3068, -inf
    %v3158 = vmax.f32 %v3156, %v3157
    %v3159 = vrot.slane %v3158, 4
    %v3160 = vmax.f32 %v3158, %v3159
    %v3161 = vrot.slane %v3160, 2
    %v3162 = vmax.f32 %v3160, %v3161
    %v3163 = vrot.slane %v3162, 1
    %v3164 = vmax.f32 %v3162, %v3163
    %v3165 = vsel %vm3083, %v3069, -inf
    %v3166 = vsel %vm3083, %v3070, -inf
    %v3167 = vmax.f32 %v3165, %v3166
    %v3168 = vrot.slane %v3167, 4
    %v3169 = vmax.f32 %v3167, %v3168
    %v3170 = vrot.slane %v3169, 2
    %v3171 = vmax.f32 %v3169, %v3170
    %v3172 = vrot.slane %v3171, 1
    %v3173 = vmax.f32 %v3171, %v3172
    %v3174 = vsel %vm3083, %v3071, -inf
    %v3175 = vsel %vm3083, %v3072, -inf
    %v3176 = vmax.f32 %v3174, %v3175
    %v3177 = vrot.slane %v3176, 4
    %v3178 = vmax.f32 %v3176, %v3177
    %v3179 = vrot.slane %v3178, 2
    %v3180 = vmax.f32 %v3178, %v3179
    %v3181 = vrot.slane %v3180, 1
    %v3182 = vmax.f32 %v3180, %v3181
    %v3183 = vsel %vm3083, %v3073, -inf
    %v3184 = vsel %vm3083, %v3074, -inf
    %v3185 = vmax.f32 %v3183, %v3184
    %v3186 = vrot.slane %v3185, 4
    %v3187 = vmax.f32 %v3185, %v3186
    %v3188 = vrot.slane %v3187, 2
    %v3189 = vmax.f32 %v3187, %v3188
    %v3190 = vrot.slane %v3189, 1
    %v3191 = vmax.f32 %v3189, %v3190
    %v3192 = vsel %vm3083, %v3075, -inf
    %v3193 = vsel %vm3083, %v3076, -inf
    %v3194 = vmax.f32 %v3192, %v3193
    %v3195 = vrot.slane %v3194, 4
    %v3196 = vmax.f32 %v3194, %v3195
    %v3197 = vrot.slane %v3196, 2
    %v3198 = vmax.f32 %v3196, %v3197
    %v3199 = vrot.slane %v3198, 1
    %v3200 = vmax.f32 %v3198, %v3199
    %v3201 = vsel %vm3083, %v3077, -inf
    %v3202 = vsel %vm3083, %v3078, -inf
    %v3203 = vmax.f32 %v3201, %v3202
    %v3204 = vrot.slane %v3203, 4
    %v3205 = vmax.f32 %v3203, %v3204
    %v3206 = vrot.slane %v3205, 2
    %v3207 = vmax.f32 %v3205, %v3206
    %v3208 = vrot.slane %v3207, 1
    %v3209 = vmax.f32 %v3207, %v3208
    %v3210 = vsel %vm3083, %v3079, -inf
    %v3211 = vsel %vm3083, %v3080, -inf
    %v3212 = vmax.f32 %v3210, %v3211
    %v3213 = vrot.slane %v3212, 4
    %v3214 = vmax.f32 %v3212, %v3213
    %v3215 = vrot.slane %v3214, 2
    %v3216 = vmax.f32 %v3214, %v3215
    %v3217 = vrot.slane %v3216, 1
    %v3218 = vmax.f32 %v3216, %v3217
    %v3219 = vsel %vm3083, %v3081, -inf
    %v3220 = vsel %vm3083, %v3082, -inf
    %v3221 = vmax.f32 %v3219, %v3220
    %v3222 = vrot.slane %v3221, 4
    %v3223 = vmax.f32 %v3221, %v3222
    %v3224 = vrot.slane %v3223, 2
    %v3225 = vmax.f32 %v3223, %v3224
    %v3226 = vrot.slane %v3225, 1
    %v3227 = vmax.f32 %v3225, %v3226
    %v3228 = vld [vmem:[%s8] sm:$0x1]
    %v3230 = vperm.slane %v3228, 0
    %v3232 = vadd.f32 %v3092, %v3230
    %v3233 = vadd.f32 %v3101, %v3230
    %v3234 = vadd.f32 %v3110, %v3230
    %v3235 = vadd.f32 %v3119, %v3230
    %v3236 = vadd.f32 %v3128, %v3230
    %v3237 = vadd.f32 %v3137, %v3230
    %v3238 = vadd.f32 %v3146, %v3230
    %v3239 = vadd.f32 %v3155, %v3230
    %v3240 = vadd.f32 %v3164, %v3230
    %v3241 = vadd.f32 %v3173, %v3230
    %v3242 = vadd.f32 %v3182, %v3230
    %v3243 = vadd.f32 %v3191, %v3230
    %v3244 = vadd.f32 %v3200, %v3230
    %v3245 = vadd.f32 %v3209, %v3230
    %v3246 = vadd.f32 %v3218, %v3230
    %v3247 = vadd.f32 %v3227, %v3230
    %v3248 = vtanh.pop %v3232
    %v3249 = vtanh.pop %v3233
    %v3250 = vtanh.pop %v3234
    %v3251 = vtanh.pop %v3235
    %v3252 = vtanh.pop %v3236
    %v3253 = vtanh.pop %v3237
    %v3254 = vtanh.pop %v3238
    %v3255 = vtanh.pop %v3239
    %v3256 = vtanh.pop %v3240
    %v3257 = vtanh.pop %v3241
    %v3258 = vtanh.pop %v3242
    %v3259 = vtanh.pop %v3243
    %v3260 = vtanh.pop %v3244
    %v3261 = vtanh.pop %v3245
    %v3262 = vtanh.pop %v3246
    %v3263 = vtanh.pop %v3247
    %3264 = vst [vmem:[#allocation3] sm:$0xff] 0.0
    %3265 = vst [vmem:[#allocation3 + $0x8] sm:$0xff] 0.0
    %vm3266 = vcmask 7168
    %3267 = vst.msk [vmem:[#allocation3] sm:$0xff] %vm3266, %v96
    %3268 = vst.msk [vmem:[#allocation3 + $0x8] sm:$0xff] %vm3266, %v97
    %3271 = vrot.lane.b32.xlu0 %v463, 1
    %v3272 = vpop.permute.xlu0 %3271
    %3273 = vrot.lane.b32.xlu0 %v467, 1
    %v3274 = vpop.permute.xlu0 %3273
    %vm3277 = vcmask 269320
    %3278 = vst.msk [vmem:[#allocation3] sm:$0xff] %vm3277, %v3272
    %3279 = vst.msk [vmem:[#allocation3 + $0x8] sm:$0xff] %vm3277, %v3274
    %v3296 = vrot.slane %v3249, 7
    %vm3297 = vcmask 1041409
    %v3298 = vsel %vm3297, %v3296, %v3248
    %v3299 = vrot.slane %v3250, 6
    %vm3300 = vcmask 1042434
    %v3301 = vsel %vm3300, %v3299, %v3298
    %v3302 = vrot.slane %v3251, 5
    %vm3303 = vcmask 1043459
    %v3304 = vsel %vm3303, %v3302, %v3301
    %v3305 = vrot.slane %v3252, 4
    %vm3306 = vcmask 1044484
    %v3307 = vsel %vm3306, %v3305, %v3304
    %v3308 = vrot.slane %v3253, 3
    %vm3309 = vcmask 1045509
    %v3310 = vsel %vm3309, %v3308, %v3307
    %v3311 = vrot.slane %v3254, 2
    %vm3312 = vcmask 1046534
    %v3313 = vsel %vm3312, %v3311, %v3310
    %v3314 = vrot.slane %v3255, 1
    %vm3315 = vcmask 1047559
    %v3316 = vsel %vm3315, %v3314, %v3313
    %v3317 = vrot.slane %v3257, 7
    %v3318 = vsel %vm3297, %v3317, %v3256
    %v3319 = vrot.slane %v3258, 6
    %v3320 = vsel %vm3300, %v3319, %v3318
    %v3321 = vrot.slane %v3259, 5
    %v3322 = vsel %vm3303, %v3321, %v3320
    %v3323 = vrot.slane %v3260, 4
    %v3324 = vsel %vm3306, %v3323, %v3322
    %v3325 = vrot.slane %v3261, 3
    %v3326 = vsel %vm3309, %v3325, %v3324
    %v3327 = vrot.slane %v3262, 2
    %v3328 = vsel %vm3312, %v3327, %v3326
    %v3329 = vrot.slane %v3263, 1
    %v3330 = vsel %vm3315, %v3329, %v3328
    %3331 = vrot.lane.b32.xlu0 %v3316, 33
    %v3332 = vpop.permute.xlu0 %3331
    %3333 = vrot.lane.b32.xlu0 %v3330, 33
    %v3334 = vpop.permute.xlu0 %3333
    %vm3337 = vcmask 531720
    %3338 = vst.msk [vmem:[#allocation3] sm:$0xff] %vm3337, %v3332
    %3339 = vst.msk [vmem:[#allocation3 + $0x8] sm:$0xff] %vm3337, %v3334
    %3342 = vrot.lane.b32.xlu0 %v679, 65
    %v3343 = vpop.permute.xlu0 %3342
    %3344 = vrot.lane.b32.xlu0 %v683, 65
    %v3345 = vpop.permute.xlu0 %3344
    %vm3348 = vcmask 663048
    %3349 = vst.msk [vmem:[#allocation3] sm:$0xff] %vm3348, %v3343
    %3350 = vst.msk [vmem:[#allocation3 + $0x8] sm:$0xff] %vm3348, %v3345
    // Predicated region
    $region38: #{tpu_custom_call.1} parent=1 // pred_check
      _
    $region39: #{tpu_custom_call.1} parent=1 // pred_check_branch
      %3352 = sbr.rel (0) target = $region41
    $region40: #{tpu_custom_call.1} parent=1 // pred_region
      %3354 = vsyncadd [#allocation4], 0
      %s3355 = sshll.u32 [#allocation3], 4
      %s3356 = int_to_ptr.vmem [resolvable:$true] %s3355
      %s3357 = sshll.u32 %s9, 4
      %s3358 = int_to_ptr.hbm [resolvable:$true] %s3357
      %3363 = dma.vmem_to_hbm [thread:$0]  %s3356, 256, %s3358, [#allocation4], 128, 128, 8
    $region41: #{tpu_custom_call.1} parent=1 // pred_fallthru
      _
    // Predicated region
    $region42: #{tpu_custom_call.1} parent=1 // pred_check
      _
    $region43: #{tpu_custom_call.1} parent=1 // pred_check_branch
      %3365 = sbr.rel (0) target = $region45
    $region44: #{tpu_custom_call.1} parent=1 // pred_region
      %3367 = dma.done [#allocation4], 256
    $region45: #{tpu_custom_call.1} parent=1 // pred_fallthru
      _
    %3368 = vsyncpa [#allocation4], 1

</llo_original>
